<compile_context>
chip_gen: v7x
topology: tpu7x:2x2x1
jax: 0.10.0
libtpu: 0.0.40
codegen_flags: <defaults>
</compile_context>

<pallas_src>
import functools

import jax
import jax.numpy as jnp
import numpy as np
from jax import lax
from jax.experimental import pallas as pl
from jax.experimental.pallas import tpu as pltpu


# ---------------------------------------------------------------------------
# Fused BasicBlock kernel: conv1+bn1+relu -> conv2+bn2 -> (+shortcut) -> relu
# ---------------------------------------------------------------------------
def _basic_block_kernel(xph_ref, w1_ref, b1_ref, w2_ref, b2_ref, sc_ref, o_ref,
                        hpad_ref, *, stride, N, Ho, Wo, Cin, planes):
    s = stride
    M = N * Ho * Wo

    # ---- conv1 + bn1 + relu : 9 shifted-slice matmuls, f32 accumulation ----
    acc1 = jnp.zeros((M, planes), jnp.float32)
    for di in range(3):
        for dj in range(3):
            p = (di % s) * s + (dj % s)            # which (row,col) phase slab
            r0, c0 = di // s, dj // s              # offset inside that phase
            slab = xph_ref[p * N:(p + 1) * N, r0:r0 + Ho, c0:c0 + Wo, :]
            slab = slab.reshape(M, Cin)            # (M, Cin) bf16
            tap = di * 3 + dj
            w_tap = w1_ref[tap * Cin:(tap + 1) * Cin, :]
            acc1 = acc1 + jnp.dot(slab, w_tap,
                                  preferred_element_type=jnp.float32)
    h = jnp.maximum(acc1 + b1_ref[...], 0.0).astype(jnp.bfloat16)

    # Zero-padded intermediate activation — stays in VMEM, never hits HBM.
    hpad_ref[...] = jnp.zeros_like(hpad_ref)
    hpad_ref[:, 1:Ho + 1, 1:Wo + 1, :] = h.reshape(N, Ho, Wo, planes)

    # ---- conv2 + bn2 + residual (f32 skip path) + relu ----
    acc2 = jnp.zeros((M, planes), jnp.float32)
    for di in range(3):
        for dj in range(3):
            slab = hpad_ref[:, di:di + Ho, dj:dj + Wo, :].reshape(M, planes)
            tap = di * 3 + dj
            w_tap = w2_ref[tap * planes:(tap + 1) * planes, :]
            acc2 = acc2 + jnp.dot(slab, w_tap,
                                  preferred_element_type=jnp.float32)
    out = acc2 + b2_ref[...] + sc_ref[...]
    o_ref[...] = jnp.maximum(out, 0.0)


# ---------------------------------------------------------------------------
# Hoisted (per-layer, not per-forward) weight preparation
# ---------------------------------------------------------------------------
def fold_bn(bn, eps=1e-5):
    scale = bn["gamma"] / jnp.sqrt(bn["var"] + eps)
    bias = bn["beta"] - bn["mean"] * scale
    return scale, bias


def conv_w_to_mat(w):
    """(Cout, Cin, kh, kw) torch layout -> (kh*kw*Cin, Cout) matmul layout."""
    Cout, Cin, kh, kw = w.shape
    return jnp.transpose(w, (2, 3, 1, 0)).reshape(kh * kw * Cin, Cout)


def prepare_basic_block(params):
    """Fold BN into the weights, cast to bf16, reshape — done once per layer."""
    s1, b1 = fold_bn(params["bn1"])
    s2, b2 = fold_bn(params["bn2"])
    w1 = (conv_w_to_mat(params["conv1"]) * s1[None, :]).astype(jnp.bfloat16)
    w2 = (conv_w_to_mat(params["conv2"]) * s2[None, :]).astype(jnp.bfloat16)
    return dict(
        w1=w1, b1=b1.reshape(1, -1).astype(jnp.float32),
        w2=w2, b2=b2.reshape(1, -1).astype(jnp.float32),
    )


# ---------------------------------------------------------------------------
# Forward pass (single fused pallas_call), NCHW in / NCHW out
# ---------------------------------------------------------------------------
@functools.partial(jax.jit, static_argnames=("stride",))
def basic_block_forward(prep, x_nchw, *, stride):
    x = jnp.transpose(x_nchw, (0, 2, 3, 1)).astype(jnp.float32)      # NHWC f32
    N, H, W, Cin = x.shape
    planes = prep["w1"].shape[1]
    s = stride
    Ho = (H + 2 - 3) // s + 1
    Wo = (W + 2 - 3) // s + 1
    M = N * Ho * Wo

    # Phase-split, spatially padded, bf16 conv1 input (same total bytes as x;
    # lets the kernel use only contiguous, unstrided slices for every tap).
    xp = jnp.pad(x.astype(jnp.bfloat16), ((0, 0), (1, 1), (1, 1), (0, 0)))
    Hph = -(-(H + 2) // s)
    Wph = -(-(W + 2) // s)
    phases = []
    for a in range(s):
        for b in range(s):
            ph = xp[:, a::s, b::s, :]
            ph = jnp.pad(ph, ((0, 0), (0, Hph - ph.shape[1]),
                              (0, Wph - ph.shape[2]), (0, 0)))
            phases.append(ph)
    xph = jnp.concatenate(phases, axis=0)          # (s*s*N, Hph, Wph, Cin) bf16

    # option-'A' shortcut, kept in f32 (matches PyTorch skip-path numerics).
    if s != 1 or Cin != planes:
        pad_c = planes // 4
        sc = jnp.pad(x[:, ::2, ::2, :], ((0, 0), (0, 0), (0, 0), (pad_c, pad_c)))
    else:
        sc = x
    sc = sc.reshape(M, planes)

    kernel = functools.partial(_basic_block_kernel, stride=s, N=N, Ho=Ho, Wo=Wo,
                               Cin=Cin, planes=planes)
    out = pl.pallas_call(
        kernel,
        out_shape=jax.ShapeDtypeStruct((M, planes), jnp.float32),
        grid=(1,),                                 # whole block fits in VMEM
        in_specs=[
            pl.BlockSpec((s * s * N, Hph, Wph, Cin), lambda i: (0, 0, 0, 0)),
            pl.BlockSpec(prep["w1"].shape, lambda i: (0, 0)),
            pl.BlockSpec(prep["b1"].shape, lambda i: (0, 0)),
            pl.BlockSpec(prep["w2"].shape, lambda i: (0, 0)),
            pl.BlockSpec(prep["b2"].shape, lambda i: (0, 0)),
            pl.BlockSpec((M, planes), lambda i: (0, 0)),
        ],
        out_specs=pl.BlockSpec((M, planes), lambda i: (0, 0)),
        scratch_shapes=[pltpu.VMEM((N, Ho + 2, Wo + 2, planes), jnp.bfloat16)],
        compiler_params=pltpu.CompilerParams(
            dimension_semantics=("arbitrary",),
            vmem_limit_bytes=32 * 1024 * 1024,
        ),
    )(xph, prep["w1"], prep["b1"], prep["w2"], prep["b2"], sc)

    out = out.reshape(N, Ho, Wo, planes)
    return jnp.transpose(out, (0, 3, 1, 2))                          # NCHW


# ---------------------------------------------------------------------------
# References
# ---------------------------------------------------------------------------
def basic_block_matched_ref(prep, x_nchw, stride):
    """Mirrors the kernel math (bf16 activations/weights, f32 acc, f32 skip)."""
    x = jnp.transpose(x_nchw, (0, 2, 3, 1)).astype(jnp.float32)
    N, H, W, Cin = x.shape
    planes = prep["w1"].shape[1]

    def conv3x3(h_bf16, wmat_bf16, s):
        cin = wmat_bf16.shape[0] // 9
        w = wmat_bf16.reshape(3, 3, cin, planes)
        return lax.conv_general_dilated(
            h_bf16, w, (s, s), ((1, 1), (1, 1)),
            dimension_numbers=("NHWC", "HWIO", "NHWC"),
            preferred_element_type=jnp.float32)

    h = conv3x3(x.astype(jnp.bfloat16), prep["w1"], stride) + prep["b1"].reshape(1, 1, 1, -1)
    h = jnp.maximum(h, 0.0).astype(jnp.bfloat16)
    out = conv3x3(h, prep["w2"], 1) + prep["b2"].reshape(1, 1, 1, -1)
    if stride != 1 or Cin != planes:
        pad_c = planes // 4
        sc = jnp.pad(x[:, ::2, ::2, :], ((0, 0), (0, 0), (0, 0), (pad_c, pad_c)))
    else:
        sc = x
    out = jnp.maximum(out + sc, 0.0)
    return jnp.transpose(out, (0, 3, 1, 2))


def basic_block_ref_f32(params, x_nchw, stride):
    """Full-precision independent reference (lax.conv path)."""
    x = jnp.transpose(x_nchw, (0, 2, 3, 1)).astype(jnp.float32)
    Cin = x.shape[-1]
    planes = params["conv1"].shape[0]

    def conv_bn(h, w, bn, s):
        y = lax.conv_general_dilated(
            h, jnp.transpose(w, (2, 3, 1, 0)), (s, s), ((1, 1), (1, 1)),
            dimension_numbers=("NHWC", "HWIO", "NHWC"),
            precision=lax.Precision.HIGHEST)
        sc, b = fold_bn(bn)
        return y * sc + b

    out = jax.nn.relu(conv_bn(x, params["conv1"], params["bn1"], stride))
    out = conv_bn(out, params["conv2"], params["bn2"], 1)
    if stride != 1 or Cin != planes:
        pad = planes // 4
        bypass = jnp.pad(x[:, ::2, ::2, :], ((0, 0), (0, 0), (0, 0), (pad, pad)))
    else:
        bypass = x
    out = jax.nn.relu(out + bypass)
    return jnp.transpose(out, (0, 3, 1, 2))


# ---------------------------------------------------------------------------
# Deterministic parameter init (mirrors the PyTorch module's shapes)
# ---------------------------------------------------------------------------
def init_basic_block_params(key, in_planes, planes):
    k1, k2, k3, k4 = jax.random.split(key, 4)

    def conv(k, cout, cin):
        fan_in = cin * 9
        return jax.random.normal(k, (cout, cin, 3, 3), jnp.float32) * (2.0 / fan_in) ** 0.5

    def bn(k, c):
        ka, kb, kc, kd = jax.random.split(k, 4)
        return dict(
            gamma=1.0 + 0.1 * jax.random.normal(ka, (c,), jnp.float32),
            beta=0.1 * jax.random.normal(kb, (c,), jnp.float32),
            mean=0.1 * jax.random.normal(kc, (c,), jnp.float32),
            var=1.0 + 0.1 * jax.random.uniform(kd, (c,), jnp.float32),
        )

    return dict(
        conv1=conv(k1, planes, in_planes),
        bn1=bn(k2, planes),
        conv2=conv(k3, planes, planes),
        bn2=bn(k4, planes),
    )


# ---------------------------------------------------------------------------
if __name__ == "__main__":
    key = jax.random.PRNGKey(0)
    kp1, kp2, kx1, kx2 = jax.random.split(key, 4)

    # Spec instance from the docstring: in_planes=16, planes=32, stride=2 ('A').
    params_a = init_basic_block_params(kp1, 16, 32)
    x_a = jax.random.normal(kx1, (2, 16, 16, 16), jnp.float32)   # NCHW

    # Identity-shortcut instance: in_planes=planes=32, stride=1.
    params_b = init_basic_block_params(kp2, 32, 32)
    x_b = jax.random.normal(kx2, (2, 32, 8, 8), jnp.float32)     # NCHW

    for params, x, stride in ((params_a, x_a, 2), (params_b, x_b, 1)):
        prep = prepare_basic_block(params)       # hoisted: once per layer
        out = jax.block_until_ready(basic_block_forward(prep, x, stride=stride))

        # Matched-math reference (same bf16 quantization, f32 acc, f32 skip).
        matched = basic_block_matched_ref(prep, x, stride)
        np.testing.assert_allclose(
            np.asarray(out), np.asarray(matched), rtol=5e-3, atol=5e-3
        )

        # Full-f32 semantic reference (bf16 operand quantization -> loose tol).
        ref = basic_block_ref_f32(params, x, stride)
        np.testing.assert_allclose(
            np.asarray(out), np.asarray(ref), rtol=1e-1, atol=1e-1
        )

    print("KERNEL_OK")
</pallas_src>

<mosaic_0001>
module attributes {stable_mosaic.version = 11 : i64} {
  func.func @_basic_block_kernel(%arg0: i32, %arg1: memref<8x9x9x16xbf16, #tpu.memory_space<vmem>>, %arg2: memref<144x32xbf16, #tpu.memory_space<vmem>>, %arg3: memref<1x32xf32, #tpu.memory_space<vmem>>, %arg4: memref<288x32xbf16, #tpu.memory_space<vmem>>, %arg5: memref<1x32xf32, #tpu.memory_space<vmem>>, %arg6: memref<128x32xf32, #tpu.memory_space<vmem>>, %arg7: memref<128x32xf32, #tpu.memory_space<vmem>>, %arg8: memref<2x10x10x32xbf16, #tpu.memory_space<vmem>>) attributes {dimension_semantics = [#tpu.dimension_semantics<arbitrary>], iteration_bounds = array<i64: 1>, scalar_prefetch = 0 : i64, scratch_operands = 1 : i64, tpu.core_type = #tpu.core_type<tc>, window_params = [{pipeline_mode = #tpu.pipeline_mode<synchronous>, transform_indices = @transform_0, window_bounds = array<i64: 8, 9, 9, 16>}, {pipeline_mode = #tpu.pipeline_mode<synchronous>, transform_indices = @transform_1, window_bounds = array<i64: 144, 32>}, {pipeline_mode = #tpu.pipeline_mode<synchronous>, transform_indices = @transform_2, window_bounds = array<i64: 1, 32>}, {pipeline_mode = #tpu.pipeline_mode<synchronous>, transform_indices = @transform_3, window_bounds = array<i64: 288, 32>}, {pipeline_mode = #tpu.pipeline_mode<synchronous>, transform_indices = @transform_4, window_bounds = array<i64: 1, 32>}, {pipeline_mode = #tpu.pipeline_mode<synchronous>, transform_indices = @transform_5, window_bounds = array<i64: 128, 32>}, {pipeline_mode = #tpu.pipeline_mode<synchronous>, transform_indices = @transform_6, window_bounds = array<i64: 128, 32>}]} {
    %cst = arith.constant 0.000000e+00 : f32
    %0 = vector.broadcast %cst : f32 to vector<128x32xf32>
    %c0 = arith.constant 0 : index
    %c0_0 = arith.constant 0 : index
    %c0_1 = arith.constant 0 : index
    %c0_2 = arith.constant 0 : index
    %1 = vector.load %arg1[%c0, %c0_0, %c0_1, %c0_2] : memref<8x9x9x16xbf16, #tpu.memory_space<vmem>>, vector<2x8x8x16xbf16>
    %2 = vector.shape_cast %1 : vector<2x8x8x16xbf16> to vector<128x16xbf16>
    %c0_3 = arith.constant 0 : index
    %c0_4 = arith.constant 0 : index
    %3 = vector.load %arg2[%c0_3, %c0_4] : memref<144x32xbf16, #tpu.memory_space<vmem>>, vector<16x32xbf16>
    %cst_5 = arith.constant dense<0.000000e+00> : vector<128x32xf32>
    %4 = tpu.matmul %2, %3, %cst_5 {dimension_numbers = #tpu.dot_dimension_numbers<[1], [0], [0], [1], [0, 0, 1, 1], [], []>} : vector<128x16xbf16>, vector<16x32xbf16>, vector<128x32xf32> -> vector<128x32xf32>
    %5 = arith.addf %0, %4 : vector<128x32xf32>
    %c2 = arith.constant 2 : index
    %c0_6 = arith.constant 0 : index
    %c0_7 = arith.constant 0 : index
    %c0_8 = arith.constant 0 : index
    %6 = vector.load %arg1[%c2, %c0_6, %c0_7, %c0_8] : memref<8x9x9x16xbf16, #tpu.memory_space<vmem>>, vector<2x8x8x16xbf16>
    %7 = vector.shape_cast %6 : vector<2x8x8x16xbf16> to vector<128x16xbf16>
    %c16 = arith.constant 16 : index
    %c0_9 = arith.constant 0 : index
    %8 = vector.load %arg2[%c16, %c0_9] : memref<144x32xbf16, #tpu.memory_space<vmem>>, vector<16x32xbf16>
    %cst_10 = arith.constant dense<0.000000e+00> : vector<128x32xf32>
    %9 = tpu.matmul %7, %8, %cst_10 {dimension_numbers = #tpu.dot_dimension_numbers<[1], [0], [0], [1], [0, 0, 1, 1], [], []>} : vector<128x16xbf16>, vector<16x32xbf16>, vector<128x32xf32> -> vector<128x32xf32>
    %10 = arith.addf %5, %9 : vector<128x32xf32>
    %c0_11 = arith.constant 0 : index
    %c0_12 = arith.constant 0 : index
    %c1 = arith.constant 1 : index
    %c0_13 = arith.constant 0 : index
    %11 = vector.load %arg1[%c0_11, %c0_12, %c1, %c0_13] : memref<8x9x9x16xbf16, #tpu.memory_space<vmem>>, vector<2x8x8x16xbf16>
    %12 = vector.shape_cast %11 : vector<2x8x8x16xbf16> to vector<128x16xbf16>
    %c32 = arith.constant 32 : index
    %c0_14 = arith.constant 0 : index
    %13 = vector.load %arg2[%c32, %c0_14] : memref<144x32xbf16, #tpu.memory_space<vmem>>, vector<16x32xbf16>
    %cst_15 = arith.constant dense<0.000000e+00> : vector<128x32xf32>
    %14 = tpu.matmul %12, %13, %cst_15 {dimension_numbers = #tpu.dot_dimension_numbers<[1], [0], [0], [1], [0, 0, 1, 1], [], []>} : vector<128x16xbf16>, vector<16x32xbf16>, vector<128x32xf32> -> vector<128x32xf32>
    %15 = arith.addf %10, %14 : vector<128x32xf32>
    %c4 = arith.constant 4 : index
    %c0_16 = arith.constant 0 : index
    %c0_17 = arith.constant 0 : index
    %c0_18 = arith.constant 0 : index
    %16 = vector.load %arg1[%c4, %c0_16, %c0_17, %c0_18] : memref<8x9x9x16xbf16, #tpu.memory_space<vmem>>, vector<2x8x8x16xbf16>
    %17 = vector.shape_cast %16 : vector<2x8x8x16xbf16> to vector<128x16xbf16>
    %c48 = arith.constant 48 : index
    %c0_19 = arith.constant 0 : index
    %18 = vector.load %arg2[%c48, %c0_19] : memref<144x32xbf16, #tpu.memory_space<vmem>>, vector<16x32xbf16>
    %cst_20 = arith.constant dense<0.000000e+00> : vector<128x32xf32>
    %19 = tpu.matmul %17, %18, %cst_20 {dimension_numbers = #tpu.dot_dimension_numbers<[1], [0], [0], [1], [0, 0, 1, 1], [], []>} : vector<128x16xbf16>, vector<16x32xbf16>, vector<128x32xf32> -> vector<128x32xf32>
    %20 = arith.addf %15, %19 : vector<128x32xf32>
    %c6 = arith.constant 6 : index
    %c0_21 = arith.constant 0 : index
    %c0_22 = arith.constant 0 : index
    %c0_23 = arith.constant 0 : index
    %21 = vector.load %arg1[%c6, %c0_21, %c0_22, %c0_23] : memref<8x9x9x16xbf16, #tpu.memory_space<vmem>>, vector<2x8x8x16xbf16>
    %22 = vector.shape_cast %21 : vector<2x8x8x16xbf16> to vector<128x16xbf16>
    %c64 = arith.constant 64 : index
    %c0_24 = arith.constant 0 : index
    %23 = vector.load %arg2[%c64, %c0_24] : memref<144x32xbf16, #tpu.memory_space<vmem>>, vector<16x32xbf16>
    %cst_25 = arith.constant dense<0.000000e+00> : vector<128x32xf32>
    %24 = tpu.matmul %22, %23, %cst_25 {dimension_numbers = #tpu.dot_dimension_numbers<[1], [0], [0], [1], [0, 0, 1, 1], [], []>} : vector<128x16xbf16>, vector<16x32xbf16>, vector<128x32xf32> -> vector<128x32xf32>
    %25 = arith.addf %20, %24 : vector<128x32xf32>
    %c4_26 = arith.constant 4 : index
    %c0_27 = arith.constant 0 : index
    %c1_28 = arith.constant 1 : index
    %c0_29 = arith.constant 0 : index
    %26 = vector.load %arg1[%c4_26, %c0_27, %c1_28, %c0_29] : memref<8x9x9x16xbf16, #tpu.memory_space<vmem>>, vector<2x8x8x16xbf16>
    %27 = vector.shape_cast %26 : vector<2x8x8x16xbf16> to vector<128x16xbf16>
    %c80 = arith.constant 80 : index
    %c0_30 = arith.constant 0 : index
    %28 = vector.load %arg2[%c80, %c0_30] : memref<144x32xbf16, #tpu.memory_space<vmem>>, vector<16x32xbf16>
    %cst_31 = arith.constant dense<0.000000e+00> : vector<128x32xf32>
    %29 = tpu.matmul %27, %28, %cst_31 {dimension_numbers = #tpu.dot_dimension_numbers<[1], [0], [0], [1], [0, 0, 1, 1], [], []>} : vector<128x16xbf16>, vector<16x32xbf16>, vector<128x32xf32> -> vector<128x32xf32>
    %30 = arith.addf %25, %29 : vector<128x32xf32>
    %c0_32 = arith.constant 0 : index
    %c1_33 = arith.constant 1 : index
    %c0_34 = arith.constant 0 : index
    %c0_35 = arith.constant 0 : index
    %31 = vector.load %arg1[%c0_32, %c1_33, %c0_34, %c0_35] : memref<8x9x9x16xbf16, #tpu.memory_space<vmem>>, vector<2x8x8x16xbf16>
    %32 = vector.shape_cast %31 : vector<2x8x8x16xbf16> to vector<128x16xbf16>
    %c96 = arith.constant 96 : index
    %c0_36 = arith.constant 0 : index
    %33 = vector.load %arg2[%c96, %c0_36] : memref<144x32xbf16, #tpu.memory_space<vmem>>, vector<16x32xbf16>
    %cst_37 = arith.constant dense<0.000000e+00> : vector<128x32xf32>
    %34 = tpu.matmul %32, %33, %cst_37 {dimension_numbers = #tpu.dot_dimension_numbers<[1], [0], [0], [1], [0, 0, 1, 1], [], []>} : vector<128x16xbf16>, vector<16x32xbf16>, vector<128x32xf32> -> vector<128x32xf32>
    %35 = arith.addf %30, %34 : vector<128x32xf32>
    %c2_38 = arith.constant 2 : index
    %c1_39 = arith.constant 1 : index
    %c0_40 = arith.constant 0 : index
    %c0_41 = arith.constant 0 : index
    %36 = vector.load %arg1[%c2_38, %c1_39, %c0_40, %c0_41] : memref<8x9x9x16xbf16, #tpu.memory_space<vmem>>, vector<2x8x8x16xbf16>
    %37 = vector.shape_cast %36 : vector<2x8x8x16xbf16> to vector<128x16xbf16>
    %c112 = arith.constant 112 : index
    %c0_42 = arith.constant 0 : index
    %38 = vector.load %arg2[%c112, %c0_42] : memref<144x32xbf16, #tpu.memory_space<vmem>>, vector<16x32xbf16>
    %cst_43 = arith.constant dense<0.000000e+00> : vector<128x32xf32>
    %39 = tpu.matmul %37, %38, %cst_43 {dimension_numbers = #tpu.dot_dimension_numbers<[1], [0], [0], [1], [0, 0, 1, 1], [], []>} : vector<128x16xbf16>, vector<16x32xbf16>, vector<128x32xf32> -> vector<128x32xf32>
    %40 = arith.addf %35, %39 : vector<128x32xf32>
    %c0_44 = arith.constant 0 : index
    %c1_45 = arith.constant 1 : index
    %c1_46 = arith.constant 1 : index
    %c0_47 = arith.constant 0 : index
    %41 = vector.load %arg1[%c0_44, %c1_45, %c1_46, %c0_47] : memref<8x9x9x16xbf16, #tpu.memory_space<vmem>>, vector<2x8x8x16xbf16>
    %42 = vector.shape_cast %41 : vector<2x8x8x16xbf16> to vector<128x16xbf16>
    %c128 = arith.constant 128 : index
    %c0_48 = arith.constant 0 : index
    %43 = vector.load %arg2[%c128, %c0_48] : memref<144x32xbf16, #tpu.memory_space<vmem>>, vector<16x32xbf16>
    %cst_49 = arith.constant dense<0.000000e+00> : vector<128x32xf32>
    %44 = tpu.matmul %42, %43, %cst_49 {dimension_numbers = #tpu.dot_dimension_numbers<[1], [0], [0], [1], [0, 0, 1, 1], [], []>} : vector<128x16xbf16>, vector<16x32xbf16>, vector<128x32xf32> -> vector<128x32xf32>
    %45 = arith.addf %40, %44 : vector<128x32xf32>
    %c0_50 = arith.constant 0 : index
    %c0_51 = arith.constant 0 : index
    %46 = vector.load %arg3[%c0_50, %c0_51] : memref<1x32xf32, #tpu.memory_space<vmem>>, vector<1x32xf32>
    %47 = vector.broadcast %46 : vector<1x32xf32> to vector<128x32xf32>
    %48 = arith.addf %45, %47 : vector<128x32xf32>
    %cst_52 = arith.constant 0.000000e+00 : f32
    %49 = vector.broadcast %cst_52 : f32 to vector<128x32xf32>
    %50 = arith.maximumf %48, %49 : vector<128x32xf32>
    %51 = arith.truncf %50 : vector<128x32xf32> to vector<128x32xbf16>
    %cst_53 = arith.constant 0.000000e+00 : bf16
    %52 = vector.broadcast %cst_53 : bf16 to vector<2x10x10x32xbf16>
    %c0_54 = arith.constant 0 : index
    %c0_55 = arith.constant 0 : index
    %c0_56 = arith.constant 0 : index
    %c0_57 = arith.constant 0 : index
    %53 = vector.load %arg8[%c0_54, %c0_55, %c0_56, %c0_57] : memref<2x10x10x32xbf16, #tpu.memory_space<vmem>>, vector<2x10x10x32xbf16>
    tpu.vector_store %arg8[%c0_54, %c0_55, %c0_56, %c0_57], %52 {strides = array<i32>} : memref<2x10x10x32xbf16, #tpu.memory_space<vmem>>, vector<2x10x10x32xbf16>,
    %54 = vector.shape_cast %51 : vector<128x32xbf16> to vector<2x8x8x32xbf16>
    %c0_58 = arith.constant 0 : index
    %c1_59 = arith.constant 1 : index
    %c1_60 = arith.constant 1 : index
    %c0_61 = arith.constant 0 : index
    %55 = vector.load %arg8[%c0_58, %c1_59, %c1_60, %c0_61] : memref<2x10x10x32xbf16, #tpu.memory_space<vmem>>, vector<2x8x8x32xbf16>
    tpu.vector_store %arg8[%c0_58, %c1_59, %c1_60, %c0_61], %54 {strides = array<i32>} : memref<2x10x10x32xbf16, #tpu.memory_space<vmem>>, vector<2x8x8x32xbf16>,
    %cst_62 = arith.constant 0.000000e+00 : f32
    %56 = vector.broadcast %cst_62 : f32 to vector<128x32xf32>
    %c0_63 = arith.constant 0 : index
    %c0_64 = arith.constant 0 : index
    %c0_65 = arith.constant 0 : index
    %c0_66 = arith.constant 0 : index
    %57 = vector.load %arg8[%c0_63, %c0_64, %c0_65, %c0_66] : memref<2x10x10x32xbf16, #tpu.memory_space<vmem>>, vector<2x8x8x32xbf16>
    %58 = vector.shape_cast %57 : vector<2x8x8x32xbf16> to vector<128x32xbf16>
    %c0_67 = arith.constant 0 : index
    %c0_68 = arith.constant 0 : index
    %59 = vector.load %arg4[%c0_67, %c0_68] : memref<288x32xbf16, #tpu.memory_space<vmem>>, vector<32x32xbf16>
    %cst_69 = arith.constant dense<0.000000e+00> : vector<128x32xf32>
    %60 = tpu.matmul %58, %59, %cst_69 {dimension_numbers = #tpu.dot_dimension_numbers<[1], [0], [0], [1], [0, 0, 1, 1], [], []>} : vector<128x32xbf16>, vector<32x32xbf16>, vector<128x32xf32> -> vector<128x32xf32>
    %61 = arith.addf %56, %60 : vector<128x32xf32>
    %c0_70 = arith.constant 0 : index
    %c0_71 = arith.constant 0 : index
    %c1_72 = arith.constant 1 : index
    %c0_73 = arith.constant 0 : index
    %62 = vector.load %arg8[%c0_70, %c0_71, %c1_72, %c0_73] : memref<2x10x10x32xbf16, #tpu.memory_space<vmem>>, vector<2x8x8x32xbf16>
    %63 = vector.shape_cast %62 : vector<2x8x8x32xbf16> to vector<128x32xbf16>
    %c32_74 = arith.constant 32 : index
    %c0_75 = arith.constant 0 : index
    %64 = vector.load %arg4[%c32_74, %c0_75] : memref<288x32xbf16, #tpu.memory_space<vmem>>, vector<32x32xbf16>
    %cst_76 = arith.constant dense<0.000000e+00> : vector<128x32xf32>
    %65 = tpu.matmul %63, %64, %cst_76 {dimension_numbers = #tpu.dot_dimension_numbers<[1], [0], [0], [1], [0, 0, 1, 1], [], []>} : vector<128x32xbf16>, vector<32x32xbf16>, vector<128x32xf32> -> vector<128x32xf32>
    %66 = arith.addf %61, %65 : vector<128x32xf32>
    %c0_77 = arith.constant 0 : index
    %c0_78 = arith.constant 0 : index
    %c2_79 = arith.constant 2 : index
    %c0_80 = arith.constant 0 : index
    %67 = vector.load %arg8[%c0_77, %c0_78, %c2_79, %c0_80] : memref<2x10x10x32xbf16, #tpu.memory_space<vmem>>, vector<2x8x8x32xbf16>
    %68 = vector.shape_cast %67 : vector<2x8x8x32xbf16> to vector<128x32xbf16>
    %c64_81 = arith.constant 64 : index
    %c0_82 = arith.constant 0 : index
    %69 = vector.load %arg4[%c64_81, %c0_82] : memref<288x32xbf16, #tpu.memory_space<vmem>>, vector<32x32xbf16>
    %cst_83 = arith.constant dense<0.000000e+00> : vector<128x32xf32>
    %70 = tpu.matmul %68, %69, %cst_83 {dimension_numbers = #tpu.dot_dimension_numbers<[1], [0], [0], [1], [0, 0, 1, 1], [], []>} : vector<128x32xbf16>, vector<32x32xbf16>, vector<128x32xf32> -> vector<128x32xf32>
    %71 = arith.addf %66, %70 : vector<128x32xf32>
    %c0_84 = arith.constant 0 : index
    %c1_85 = arith.constant 1 : index
    %c0_86 = arith.constant 0 : index
    %c0_87 = arith.constant 0 : index
    %72 = vector.load %arg8[%c0_84, %c1_85, %c0_86, %c0_87] : memref<2x10x10x32xbf16, #tpu.memory_space<vmem>>, vector<2x8x8x32xbf16>
    %73 = vector.shape_cast %72 : vector<2x8x8x32xbf16> to vector<128x32xbf16>
    %c96_88 = arith.constant 96 : index
    %c0_89 = arith.constant 0 : index
    %74 = vector.load %arg4[%c96_88, %c0_89] : memref<288x32xbf16, #tpu.memory_space<vmem>>, vector<32x32xbf16>
    %cst_90 = arith.constant dense<0.000000e+00> : vector<128x32xf32>
    %75 = tpu.matmul %73, %74, %cst_90 {dimension_numbers = #tpu.dot_dimension_numbers<[1], [0], [0], [1], [0, 0, 1, 1], [], []>} : vector<128x32xbf16>, vector<32x32xbf16>, vector<128x32xf32> -> vector<128x32xf32>
    %76 = arith.addf %71, %75 : vector<128x32xf32>
    %c0_91 = arith.constant 0 : index
    %c1_92 = arith.constant 1 : index
    %c1_93 = arith.constant 1 : index
    %c0_94 = arith.constant 0 : index
    %77 = vector.load %arg8[%c0_91, %c1_92, %c1_93, %c0_94] : memref<2x10x10x32xbf16, #tpu.memory_space<vmem>>, vector<2x8x8x32xbf16>
    %78 = vector.shape_cast %77 : vector<2x8x8x32xbf16> to vector<128x32xbf16>
    %c128_95 = arith.constant 128 : index
    %c0_96 = arith.constant 0 : index
    %79 = vector.load %arg4[%c128_95, %c0_96] : memref<288x32xbf16, #tpu.memory_space<vmem>>, vector<32x32xbf16>
    %cst_97 = arith.constant dense<0.000000e+00> : vector<128x32xf32>
    %80 = tpu.matmul %78, %79, %cst_97 {dimension_numbers = #tpu.dot_dimension_numbers<[1], [0], [0], [1], [0, 0, 1, 1], [], []>} : vector<128x32xbf16>, vector<32x32xbf16>, vector<128x32xf32> -> vector<128x32xf32>
    %81 = arith.addf %76, %80 : vector<128x32xf32>
    %c0_98 = arith.constant 0 : index
    %c1_99 = arith.constant 1 : index
    %c2_100 = arith.constant 2 : index
    %c0_101 = arith.constant 0 : index
    %82 = vector.load %arg8[%c0_98, %c1_99, %c2_100, %c0_101] : memref<2x10x10x32xbf16, #tpu.memory_space<vmem>>, vector<2x8x8x32xbf16>
    %83 = vector.shape_cast %82 : vector<2x8x8x32xbf16> to vector<128x32xbf16>
    %c160 = arith.constant 160 : index
    %c0_102 = arith.constant 0 : index
    %84 = vector.load %arg4[%c160, %c0_102] : memref<288x32xbf16, #tpu.memory_space<vmem>>, vector<32x32xbf16>
    %cst_103 = arith.constant dense<0.000000e+00> : vector<128x32xf32>
    %85 = tpu.matmul %83, %84, %cst_103 {dimension_numbers = #tpu.dot_dimension_numbers<[1], [0], [0], [1], [0, 0, 1, 1], [], []>} : vector<128x32xbf16>, vector<32x32xbf16>, vector<128x32xf32> -> vector<128x32xf32>
    %86 = arith.addf %81, %85 : vector<128x32xf32>
    %c0_104 = arith.constant 0 : index
    %c2_105 = arith.constant 2 : index
    %c0_106 = arith.constant 0 : index
    %c0_107 = arith.constant 0 : index
    %87 = vector.load %arg8[%c0_104, %c2_105, %c0_106, %c0_107] : memref<2x10x10x32xbf16, #tpu.memory_space<vmem>>, vector<2x8x8x32xbf16>
    %88 = vector.shape_cast %87 : vector<2x8x8x32xbf16> to vector<128x32xbf16>
    %c192 = arith.constant 192 : index
    %c0_108 = arith.constant 0 : index
    %89 = vector.load %arg4[%c192, %c0_108] : memref<288x32xbf16, #tpu.memory_space<vmem>>, vector<32x32xbf16>
    %cst_109 = arith.constant dense<0.000000e+00> : vector<128x32xf32>
    %90 = tpu.matmul %88, %89, %cst_109 {dimension_numbers = #tpu.dot_dimension_numbers<[1], [0], [0], [1], [0, 0, 1, 1], [], []>} : vector<128x32xbf16>, vector<32x32xbf16>, vector<128x32xf32> -> vector<128x32xf32>
    %91 = arith.addf %86, %90 : vector<128x32xf32>
    %c0_110 = arith.constant 0 : index
    %c2_111 = arith.constant 2 : index
    %c1_112 = arith.constant 1 : index
    %c0_113 = arith.constant 0 : index
    %92 = vector.load %arg8[%c0_110, %c2_111, %c1_112, %c0_113] : memref<2x10x10x32xbf16, #tpu.memory_space<vmem>>, vector<2x8x8x32xbf16>
    %93 = vector.shape_cast %92 : vector<2x8x8x32xbf16> to vector<128x32xbf16>
    %c224 = arith.constant 224 : index
    %c0_114 = arith.constant 0 : index
    %94 = vector.load %arg4[%c224, %c0_114] : memref<288x32xbf16, #tpu.memory_space<vmem>>, vector<32x32xbf16>
    %cst_115 = arith.constant dense<0.000000e+00> : vector<128x32xf32>
    %95 = tpu.matmul %93, %94, %cst_115 {dimension_numbers = #tpu.dot_dimension_numbers<[1], [0], [0], [1], [0, 0, 1, 1], [], []>} : vector<128x32xbf16>, vector<32x32xbf16>, vector<128x32xf32> -> vector<128x32xf32>
    %96 = arith.addf %91, %95 : vector<128x32xf32>
    %c0_116 = arith.constant 0 : index
    %c2_117 = arith.constant 2 : index
    %c2_118 = arith.constant 2 : index
    %c0_119 = arith.constant 0 : index
    %97 = vector.load %arg8[%c0_116, %c2_117, %c2_118, %c0_119] : memref<2x10x10x32xbf16, #tpu.memory_space<vmem>>, vector<2x8x8x32xbf16>
    %98 = vector.shape_cast %97 : vector<2x8x8x32xbf16> to vector<128x32xbf16>
    %c256 = arith.constant 256 : index
    %c0_120 = arith.constant 0 : index
    %99 = vector.load %arg4[%c256, %c0_120] : memref<288x32xbf16, #tpu.memory_space<vmem>>, vector<32x32xbf16>
    %cst_121 = arith.constant dense<0.000000e+00> : vector<128x32xf32>
    %100 = tpu.matmul %98, %99, %cst_121 {dimension_numbers = #tpu.dot_dimension_numbers<[1], [0], [0], [1], [0, 0, 1, 1], [], []>} : vector<128x32xbf16>, vector<32x32xbf16>, vector<128x32xf32> -> vector<128x32xf32>
    %101 = arith.addf %96, %100 : vector<128x32xf32>
    %c0_122 = arith.constant 0 : index
    %c0_123 = arith.constant 0 : index
    %102 = vector.load %arg5[%c0_122, %c0_123] : memref<1x32xf32, #tpu.memory_space<vmem>>, vector<1x32xf32>
    %103 = vector.broadcast %102 : vector<1x32xf32> to vector<128x32xf32>
    %104 = arith.addf %101, %103 : vector<128x32xf32>
    %c0_124 = arith.constant 0 : index
    %c0_125 = arith.constant 0 : index
    %105 = vector.load %arg6[%c0_124, %c0_125] : memref<128x32xf32, #tpu.memory_space<vmem>>, vector<128x32xf32>
    %106 = arith.addf %104, %105 : vector<128x32xf32>
    %cst_126 = arith.constant 0.000000e+00 : f32
    %107 = vector.broadcast %cst_126 : f32 to vector<128x32xf32>
    %108 = arith.maximumf %106, %107 : vector<128x32xf32>
    %c0_127 = arith.constant 0 : index
    %c0_128 = arith.constant 0 : index
    %109 = vector.load %arg7[%c0_127, %c0_128] : memref<128x32xf32, #tpu.memory_space<vmem>>, vector<128x32xf32>
    tpu.vector_store %arg7[%c0_127, %c0_128], %108 {strides = array<i32>} : memref<128x32xf32, #tpu.memory_space<vmem>>, vector<128x32xf32>,
    return
  }
  func.func @transform_0(%arg0: i32) -> (i32, i32, i32, i32) {
    %c0_i32 = arith.constant 0 : i32
    %c0_i32_0 = arith.constant 0 : i32
    %c0_i32_1 = arith.constant 0 : i32
    %c0_i32_2 = arith.constant 0 : i32
    %c0_i32_3 = arith.constant 0 : i32
    return %c0_i32, %c0_i32_0, %c0_i32_1, %c0_i32_2 : i32, i32, i32, i32
  }
  func.func @transform_1(%arg0: i32) -> (i32, i32) {
    %c0_i32 = arith.constant 0 : i32
    %c0_i32_0 = arith.constant 0 : i32
    %c0_i32_1 = arith.constant 0 : i32
    return %c0_i32, %c0_i32_0 : i32, i32
  }
  func.func @transform_2(%arg0: i32) -> (i32, i32) {
    %c0_i32 = arith.constant 0 : i32
    %c0_i32_0 = arith.constant 0 : i32
    %c0_i32_1 = arith.constant 0 : i32
    return %c0_i32, %c0_i32_0 : i32, i32
  }
  func.func @transform_3(%arg0: i32) -> (i32, i32) {
    %c0_i32 = arith.constant 0 : i32
    %c0_i32_0 = arith.constant 0 : i32
    %c0_i32_1 = arith.constant 0 : i32
    return %c0_i32, %c0_i32_0 : i32, i32
  }
  func.func @transform_4(%arg0: i32) -> (i32, i32) {
    %c0_i32 = arith.constant 0 : i32
    %c0_i32_0 = arith.constant 0 : i32
    %c0_i32_1 = arith.constant 0 : i32
    return %c0_i32, %c0_i32_0 : i32, i32
  }
  func.func @transform_5(%arg0: i32) -> (i32, i32) {
    %c0_i32 = arith.constant 0 : i32
    %c0_i32_0 = arith.constant 0 : i32
    %c0_i32_1 = arith.constant 0 : i32
    return %c0_i32, %c0_i32_0 : i32, i32
  }
  func.func @transform_6(%arg0: i32) -> (i32, i32) {
    %c0_i32 = arith.constant 0 : i32
    %c0_i32_0 = arith.constant 0 : i32
    %c0_i32_1 = arith.constant 0 : i32
    return %c0_i32, %c0_i32_0 : i32, i32
  }
}

</mosaic_0001>

<llo_original>
// kernel: basic_block_forward.1
$region0: #{basic_block_forward.1}
  #allocation0 [shape = 'u32[]', space=smem, size = 0x4, offset = 0x4, fixed_abs, tag = 'smem constant byte address 0x4 - core index']
  #allocation1 [shape = 'u32[144,128]{1,0:T(1,128)}', space=vmem, size = 0x12000, scoped, tag = 'internal scratch']
  #allocation2 [shape = 'bf16[2,10,10,32]{3,2,1,0:T(8,128)(2,1)}', space=vmem, size = 0x14000, scoped, tag = 'scratch operand']
  %s0 = inlined_call_operand.vmem [shape: bf16[8,9,9,16], index: 0, kind: input, shape index: {}]
  %s1 = inlined_call_operand.vmem [shape: bf16[144,32], index: 1, kind: input, shape index: {}]
  %s2 = inlined_call_operand.vmem [shape: f32[1,32], index: 2, kind: input, shape index: {}]
  %s3 = inlined_call_operand.vmem [shape: bf16[288,32], index: 3, kind: input, shape index: {}]
  %s4 = inlined_call_operand.vmem [shape: f32[1,32], index: 4, kind: input, shape index: {}]
  %s5 = inlined_call_operand.vmem [shape: f32[128,32], index: 5, kind: input, shape index: {}]
  %s6 = inlined_call_operand.hbm [shape: f32[128,32], index: 6, kind: output, shape index: {}]
  %s7 = sld [smem:[#allocation0]]
  $region34: #{basic_block_forward.1} parent=0
    _
  %s9 = ssub.s32 1, %s7
  %s10 = scalar_select 0, %s9, %s7
  $region1: #{basic_block_forward.1} parent=0
    #allocation3 [shape = 'u8[65536]{0}', space=vmem, size = 0x10000, scoped, tag = 'output window, operand 0, single buffered']
    #allocation4 [shape = 's32[1]{0}', space=sflag, size = 0x4, scoped, tag = 'scoped memory for basic_block_forward.1']
    %11 = vsyncpa [#allocation4], 0
    // Predicated region
    $region2: #{basic_block_forward.1} parent=1 // pred_check
      _
    $region3: #{basic_block_forward.1} parent=1 // pred_check_branch
      %13 = sbr.rel (0) target = $region5
    $region4: #{basic_block_forward.1} parent=1 // pred_region
      _
    $region5: #{basic_block_forward.1} parent=1 // pred_fallthru
      _
    // Predicated region
    $region6: #{basic_block_forward.1} parent=1 // pred_check
      _
    $region7: #{basic_block_forward.1} parent=1 // pred_check_branch
      %15 = sbr.rel (0) target = $region9
    $region8: #{basic_block_forward.1} parent=1 // pred_region
      _
    $region9: #{basic_block_forward.1} parent=1 // pred_fallthru
      _
    // Predicated region
    $region10: #{basic_block_forward.1} parent=1 // pred_check
      _
    $region11: #{basic_block_forward.1} parent=1 // pred_check_branch
      %17 = sbr.rel (0) target = $region13
    $region12: #{basic_block_forward.1} parent=1 // pred_region
      _
    $region13: #{basic_block_forward.1} parent=1 // pred_fallthru
      _
    // Predicated region
    $region14: #{basic_block_forward.1} parent=1 // pred_check
      _
    $region15: #{basic_block_forward.1} parent=1 // pred_check_branch
      %19 = sbr.rel (0) target = $region17
    $region16: #{basic_block_forward.1} parent=1 // pred_region
      _
    $region17: #{basic_block_forward.1} parent=1 // pred_fallthru
      _
    // Predicated region
    $region18: #{basic_block_forward.1} parent=1 // pred_check
      _
    $region19: #{basic_block_forward.1} parent=1 // pred_check_branch
      %21 = sbr.rel (0) target = $region21
    $region20: #{basic_block_forward.1} parent=1 // pred_region
      _
    $region21: #{basic_block_forward.1} parent=1 // pred_fallthru
      _
    // Predicated region
    $region22: #{basic_block_forward.1} parent=1 // pred_check
      _
    $region23: #{basic_block_forward.1} parent=1 // pred_check_branch
      %23 = sbr.rel (0) target = $region25
    $region24: #{basic_block_forward.1} parent=1 // pred_region
      _
    $region25: #{basic_block_forward.1} parent=1 // pred_fallthru
      _
    %v25 = vld [vmem:[%s0] sm:$0xf]
    %v26 = vld [vmem:[%s0 + $0x8] sm:$0xf]
    %v27 = vld [vmem:[%s0 + $0x10] sm:$0xf]
    %v28 = vld [vmem:[%s0 + $0x18] sm:$0xf]
    %v29 = vld [vmem:[%s0 + $0x20] sm:$0xf]
    %v30 = vld [vmem:[%s0 + $0x28] sm:$0xf]
    %v31 = vld [vmem:[%s0 + $0x30] sm:$0xf]
    %v32 = vld [vmem:[%s0 + $0x38] sm:$0xf]
    %v33 = vld [vmem:[%s0 + $0x48] sm:$0xf]
    %v34 = vld [vmem:[%s0 + $0x50] sm:$0xf]
    %v35 = vld [vmem:[%s0 + $0x58] sm:$0xf]
    %v36 = vld [vmem:[%s0 + $0x60] sm:$0xf]
    %v37 = vld [vmem:[%s0 + $0x68] sm:$0xf]
    %v38 = vld [vmem:[%s0 + $0x70] sm:$0xf]
    %v39 = vld [vmem:[%s0 + $0x78] sm:$0xf]
    %v40 = vld [vmem:[%s0 + $0x80] sm:$0xf]
    %v41 = vld [vmem:[%s1] sm:$0xf]
    %v42 = vld [vmem:[%s1 + $0x4] sm:$0xf]
    %s43 = scalar_lea.vmem %s0, 144
    %v44 = vld [vmem:[%s43] sm:$0xf]
    %v45 = vld [vmem:[%s43 + $0x8] sm:$0xf]
    %v46 = vld [vmem:[%s43 + $0x10] sm:$0xf]
    %v47 = vld [vmem:[%s43 + $0x18] sm:$0xf]
    %v48 = vld [vmem:[%s43 + $0x20] sm:$0xf]
    %v49 = vld [vmem:[%s43 + $0x28] sm:$0xf]
    %v50 = vld [vmem:[%s43 + $0x30] sm:$0xf]
    %v51 = vld [vmem:[%s43 + $0x38] sm:$0xf]
    %v52 = vld [vmem:[%s43 + $0x48] sm:$0xf]
    %v53 = vld [vmem:[%s43 + $0x50] sm:$0xf]
    %v54 = vld [vmem:[%s43 + $0x58] sm:$0xf]
    %v55 = vld [vmem:[%s43 + $0x60] sm:$0xf]
    %v56 = vld [vmem:[%s43 + $0x68] sm:$0xf]
    %v57 = vld [vmem:[%s43 + $0x70] sm:$0xf]
    %v58 = vld [vmem:[%s43 + $0x78] sm:$0xf]
    %v59 = vld [vmem:[%s43 + $0x80] sm:$0xf]
    %v60 = vld [vmem:[%s1 + $0x8] sm:$0xf]
    %v61 = vld [vmem:[%s1 + $0xc] sm:$0xf]
    %v78 = vunpack.c.l.b16 %v44
    %v79 = vunpack.c.l.b16 %v45
    %v80 = vunpack.c.l.b16 %v46
    %v81 = vunpack.c.l.b16 %v47
    %v82 = vunpack.c.l.b16 %v48
    %v83 = vunpack.c.l.b16 %v49
    %v84 = vunpack.c.l.b16 %v50
    %v85 = vunpack.c.l.b16 %v51
    %v86 = vunpack.c.l.b16 %v52
    %v87 = vunpack.c.l.b16 %v53
    %v88 = vunpack.c.l.b16 %v54
    %v89 = vunpack.c.l.b16 %v55
    %v90 = vunpack.c.l.b16 %v56
    %v91 = vunpack.c.l.b16 %v57
    %v92 = vunpack.c.l.b16 %v58
    %v93 = vunpack.c.l.b16 %v59
    %v94 = vpack.c.b16 %v79, %v78
    %v95 = vpack.c.b16 %v81, %v80
    %v96 = vpack.c.b16 %v83, %v82
    %v97 = vpack.c.b16 %v85, %v84
    %v98 = vpack.c.b16 %v87, %v86
    %v99 = vpack.c.b16 %v89, %v88
    %v100 = vpack.c.b16 %v91, %v90
    %v101 = vpack.c.b16 %v93, %v92
    %v104 = vunpack.c.l.b16 %v60
    %v105 = vunpack.c.l.b16 %v61
    %v106 = vpack.c.b16 %v105, %v104
    %vm108 = vcmask 130048
    %v110 = vsel %vm108, %v94, 0
    %v113 = vsel %vm108, %v95, 0
    %v116 = vsel %vm108, %v96, 0
    %v119 = vsel %vm108, %v97, 0
    %v122 = vsel %vm108, %v98, 0
    %v125 = vsel %vm108, %v99, 0
    %v128 = vsel %vm108, %v100, 0
    %v131 = vsel %vm108, %v101, 0
    %133 = vmatprep.subr.bf16.mxu0 0
    %134 = vmatpush1.bf16.msra.mxu0 %v106
    %135 = vmatprep.subr.bf16.mxu0 0
    %136 = vmatpush1.bf16.msra.mxu0 0
    %137 = vmatprep.subr.bf16.mxu0 0
    %138 = vmatpush1.bf16.msra.mxu0 0
    %139 = vmatprep.subr.bf16.mxu0 0
    %140 = vmatpush1.bf16.msra.mxu0 0
    %141 = vmatprep.subr.bf16.mxu0 0
    %142 = vmatpush1.bf16.msra.mxu0 0
    %143 = vmatprep.subr.bf16.mxu0 0
    %144 = vmatpush1.bf16.msra.mxu0 0
    %145 = vmatprep.subr.bf16.mxu0 0
    %146 = vmatpush1.bf16.msra.mxu0 0
    %147 = vmatprep.subr.bf16.mxu0 0
    %148 = vmatpush1.bf16.msra.mxu0 0
    %149 = vmatprep.subr.bf16.mxu0 0
    %150 = vmatpush1.bf16.msra.mxu0 0
    %151 = vmatprep.subr.bf16.mxu0 0
    %152 = vmatpush1.bf16.msra.mxu0 0
    %153 = vmatprep.subr.bf16.mxu0 0
    %154 = vmatpush1.bf16.msra.mxu0 0
    %155 = vmatprep.subr.bf16.mxu0 0
    %156 = vmatpush1.bf16.msra.mxu0 0
    %157 = vmatprep.subr.bf16.mxu0 0
    %158 = vmatpush1.bf16.msra.mxu0 0
    %159 = vmatprep.subr.bf16.mxu0 0
    %160 = vmatpush1.bf16.msra.mxu0 0
    %161 = vmatprep.subr.bf16.mxu0 0
    %162 = vmatpush1.bf16.msra.mxu0 0
    %163 = vmatprep.subr.bf16.mxu0 0
    %164 = vmatpush1.bf16.msra.mxu0 0
    %165 = vmatprep.mubr.bf16.mxu0 0
    %166 = vmatmul.mubr.bf16.gmra.mrb[0].mxu0 %v110
    %v167 = vpop.f32.mrb[0].mxu0
    %v168 = vadd.f32 0.0, %v167
    %v169 = vpop.f32.mrb[0].mxu0
    %v170 = vpop.f32.mrb[0].mxu0
    %v171 = vadd.f32 0.0, %v170
    %v172 = vpop.f32.mrb[0].mxu0
    %173 = vmatprep.mubr.bf16.mxu0 0
    %174 = vmatmul.mubr.bf16.gmra.mrb[0].mxu0 %v113
    %v175 = vpop.f32.mrb[0].mxu0
    %v176 = vadd.f32 0.0, %v175
    %v177 = vpop.f32.mrb[0].mxu0
    %v178 = vpop.f32.mrb[0].mxu0
    %v179 = vadd.f32 0.0, %v178
    %v180 = vpop.f32.mrb[0].mxu0
    %181 = vmatprep.mubr.bf16.mxu0 0
    %182 = vmatmul.mubr.bf16.gmra.mrb[0].mxu0 %v116
    %v183 = vpop.f32.mrb[0].mxu0
    %v184 = vadd.f32 0.0, %v183
    %v185 = vpop.f32.mrb[0].mxu0
    %v186 = vpop.f32.mrb[0].mxu0
    %v187 = vadd.f32 0.0, %v186
    %v188 = vpop.f32.mrb[0].mxu0
    %189 = vmatprep.mubr.bf16.mxu0 0
    %190 = vmatmul.mubr.bf16.gmra.mrb[0].mxu0 %v119
    %v191 = vpop.f32.mrb[0].mxu0
    %v192 = vadd.f32 0.0, %v191
    %v193 = vpop.f32.mrb[0].mxu0
    %v194 = vpop.f32.mrb[0].mxu0
    %v195 = vadd.f32 0.0, %v194
    %v196 = vpop.f32.mrb[0].mxu0
    %197 = vmatprep.mubr.bf16.mxu0 0
    %198 = vmatmul.mubr.bf16.gmra.mrb[0].mxu0 %v122
    %v199 = vpop.f32.mrb[0].mxu0
    %v200 = vadd.f32 0.0, %v199
    %v201 = vpop.f32.mrb[0].mxu0
    %v202 = vpop.f32.mrb[0].mxu0
    %v203 = vadd.f32 0.0, %v202
    %v204 = vpop.f32.mrb[0].mxu0
    %205 = vmatprep.mubr.bf16.mxu0 0
    %206 = vmatmul.mubr.bf16.gmra.mrb[0].mxu0 %v125
    %v207 = vpop.f32.mrb[0].mxu0
    %v208 = vadd.f32 0.0, %v207
    %v209 = vpop.f32.mrb[0].mxu0
    %v210 = vpop.f32.mrb[0].mxu0
    %v211 = vadd.f32 0.0, %v210
    %v212 = vpop.f32.mrb[0].mxu0
    %213 = vmatprep.mubr.bf16.mxu0 0
    %214 = vmatmul.mubr.bf16.gmra.mrb[0].mxu0 %v128
    %v215 = vpop.f32.mrb[0].mxu0
    %v216 = vadd.f32 0.0, %v215
    %v217 = vpop.f32.mrb[0].mxu0
    %v218 = vpop.f32.mrb[0].mxu0
    %v219 = vadd.f32 0.0, %v218
    %v220 = vpop.f32.mrb[0].mxu0
    %221 = vmatprep.mubr.bf16.mxu0 0
    %222 = vmatmul.mubr.bf16.gmra.mrb[0].mxu0 %v131
    %v223 = vpop.f32.mrb[0].mxu0
    %v224 = vadd.f32 0.0, %v223
    %v225 = vpop.f32.mrb[0].mxu0
    %v226 = vpop.f32.mrb[0].mxu0
    %v227 = vadd.f32 0.0, %v226
    %v228 = vpop.f32.mrb[0].mxu0
    %229 = vdwg.mxu0
    %v246 = vunpack.c.l.b16 %v25
    %v247 = vunpack.c.l.b16 %v26
    %v248 = vunpack.c.l.b16 %v27
    %v249 = vunpack.c.l.b16 %v28
    %v250 = vunpack.c.l.b16 %v29
    %v251 = vunpack.c.l.b16 %v30
    %v252 = vunpack.c.l.b16 %v31
    %v253 = vunpack.c.l.b16 %v32
    %v254 = vunpack.c.l.b16 %v33
    %v255 = vunpack.c.l.b16 %v34
    %v256 = vunpack.c.l.b16 %v35
    %v257 = vunpack.c.l.b16 %v36
    %v258 = vunpack.c.l.b16 %v37
    %v259 = vunpack.c.l.b16 %v38
    %v260 = vunpack.c.l.b16 %v39
    %v261 = vunpack.c.l.b16 %v40
    %v262 = vpack.c.b16 %v247, %v246
    %v263 = vpack.c.b16 %v249, %v248
    %v264 = vpack.c.b16 %v251, %v250
    %v265 = vpack.c.b16 %v253, %v252
    %v266 = vpack.c.b16 %v255, %v254
    %v267 = vpack.c.b16 %v257, %v256
    %v268 = vpack.c.b16 %v259, %v258
    %v269 = vpack.c.b16 %v261, %v260
    %v272 = vunpack.c.l.b16 %v41
    %v273 = vunpack.c.l.b16 %v42
    %v274 = vpack.c.b16 %v273, %v272
    %v277 = vsel %vm108, %v262, 0
    %v280 = vsel %vm108, %v263, 0
    %v283 = vsel %vm108, %v264, 0
    %v286 = vsel %vm108, %v265, 0
    %v289 = vsel %vm108, %v266, 0
    %v292 = vsel %vm108, %v267, 0
    %v295 = vsel %vm108, %v268, 0
    %v298 = vsel %vm108, %v269, 0
    %300 = vmatprep.subr.bf16.mxu0 0
    %301 = vmatpush1.bf16.msra.mxu0 %v274
    %302 = vmatprep.subr.bf16.mxu0 0
    %303 = vmatpush1.bf16.msra.mxu0 0
    %304 = vmatprep.subr.bf16.mxu0 0
    %305 = vmatpush1.bf16.msra.mxu0 0
    %306 = vmatprep.subr.bf16.mxu0 0
    %307 = vmatpush1.bf16.msra.mxu0 0
    %308 = vmatprep.subr.bf16.mxu0 0
    %309 = vmatpush1.bf16.msra.mxu0 0
    %310 = vmatprep.subr.bf16.mxu0 0
    %311 = vmatpush1.bf16.msra.mxu0 0
    %312 = vmatprep.subr.bf16.mxu0 0
    %313 = vmatpush1.bf16.msra.mxu0 0
    %314 = vmatprep.subr.bf16.mxu0 0
    %315 = vmatpush1.bf16.msra.mxu0 0
    %316 = vmatprep.subr.bf16.mxu0 0
    %317 = vmatpush1.bf16.msra.mxu0 0
    %318 = vmatprep.subr.bf16.mxu0 0
    %319 = vmatpush1.bf16.msra.mxu0 0
    %320 = vmatprep.subr.bf16.mxu0 0
    %321 = vmatpush1.bf16.msra.mxu0 0
    %322 = vmatprep.subr.bf16.mxu0 0
    %323 = vmatpush1.bf16.msra.mxu0 0
    %324 = vmatprep.subr.bf16.mxu0 0
    %325 = vmatpush1.bf16.msra.mxu0 0
    %326 = vmatprep.subr.bf16.mxu0 0
    %327 = vmatpush1.bf16.msra.mxu0 0
    %328 = vmatprep.subr.bf16.mxu0 0
    %329 = vmatpush1.bf16.msra.mxu0 0
    %330 = vmatprep.subr.bf16.mxu0 0
    %331 = vmatpush1.bf16.msra.mxu0 0
    %332 = vmatprep.mubr.bf16.mxu0 0
    %333 = vmatmul.mubr.bf16.gmra.mrb[0].mxu0 %v277
    %v334 = vpop.f32.mrb[0].mxu0
    %v335 = vadd.f32 %v168, %v334
    %v336 = vpop.f32.mrb[0].mxu0
    %v337 = vpop.f32.mrb[0].mxu0
    %v338 = vadd.f32 %v171, %v337
    %v339 = vpop.f32.mrb[0].mxu0
    %340 = vmatprep.mubr.bf16.mxu0 0
    %341 = vmatmul.mubr.bf16.gmra.mrb[0].mxu0 %v280
    %v342 = vpop.f32.mrb[0].mxu0
    %v343 = vadd.f32 %v176, %v342
    %v344 = vpop.f32.mrb[0].mxu0
    %v345 = vpop.f32.mrb[0].mxu0
    %v346 = vadd.f32 %v179, %v345
    %v347 = vpop.f32.mrb[0].mxu0
    %348 = vmatprep.mubr.bf16.mxu0 0
    %349 = vmatmul.mubr.bf16.gmra.mrb[0].mxu0 %v283
    %v350 = vpop.f32.mrb[0].mxu0
    %v351 = vadd.f32 %v184, %v350
    %v352 = vpop.f32.mrb[0].mxu0
    %v353 = vpop.f32.mrb[0].mxu0
    %v354 = vadd.f32 %v187, %v353
    %v355 = vpop.f32.mrb[0].mxu0
    %356 = vmatprep.mubr.bf16.mxu0 0
    %357 = vmatmul.mubr.bf16.gmra.mrb[0].mxu0 %v286
    %v358 = vpop.f32.mrb[0].mxu0
    %v359 = vadd.f32 %v192, %v358
    %v360 = vpop.f32.mrb[0].mxu0
    %v361 = vpop.f32.mrb[0].mxu0
    %v362 = vadd.f32 %v195, %v361
    %v363 = vpop.f32.mrb[0].mxu0
    %364 = vmatprep.mubr.bf16.mxu0 0
    %365 = vmatmul.mubr.bf16.gmra.mrb[0].mxu0 %v289
    %v366 = vpop.f32.mrb[0].mxu0
    %v367 = vadd.f32 %v200, %v366
    %v368 = vpop.f32.mrb[0].mxu0
    %v369 = vpop.f32.mrb[0].mxu0
    %v370 = vadd.f32 %v203, %v369
    %v371 = vpop.f32.mrb[0].mxu0
    %372 = vmatprep.mubr.bf16.mxu0 0
    %373 = vmatmul.mubr.bf16.gmra.mrb[0].mxu0 %v292
    %v374 = vpop.f32.mrb[0].mxu0
    %v375 = vadd.f32 %v208, %v374
    %v376 = vpop.f32.mrb[0].mxu0
    %v377 = vpop.f32.mrb[0].mxu0
    %v378 = vadd.f32 %v211, %v377
    %v379 = vpop.f32.mrb[0].mxu0
    %380 = vmatprep.mubr.bf16.mxu0 0
    %381 = vmatmul.mubr.bf16.gmra.mrb[0].mxu0 %v295
    %v382 = vpop.f32.mrb[0].mxu0
    %v383 = vadd.f32 %v216, %v382
    %v384 = vpop.f32.mrb[0].mxu0
    %v385 = vpop.f32.mrb[0].mxu0
    %v386 = vadd.f32 %v219, %v385
    %v387 = vpop.f32.mrb[0].mxu0
    %388 = vmatprep.mubr.bf16.mxu0 0
    %389 = vmatmul.mubr.bf16.gmra.mrb[0].mxu0 %v298
    %v390 = vpop.f32.mrb[0].mxu0
    %v391 = vadd.f32 %v224, %v390
    %v392 = vpop.f32.mrb[0].mxu0
    %v393 = vpop.f32.mrb[0].mxu0
    %v394 = vadd.f32 %v227, %v393
    %v395 = vpop.f32.mrb[0].mxu0
    %396 = vdwg.mxu0
    %v397 = vld [vmem:[%s0] sm:$0xf]
    %v398 = vld [vmem:[%s0 + $0x4] sm:$0x1]
    %v399 = vld [vmem:[%s0 + $0x8] sm:$0xf]
    %v400 = vld [vmem:[%s0 + $0xc] sm:$0x1]
    %v401 = vld [vmem:[%s0 + $0x10] sm:$0xf]
    %v402 = vld [vmem:[%s0 + $0x14] sm:$0x1]
    %v403 = vld [vmem:[%s0 + $0x18] sm:$0xf]
    %v404 = vld [vmem:[%s0 + $0x1c] sm:$0x1]
    %v405 = vld [vmem:[%s0 + $0x20] sm:$0xf]
    %v406 = vld [vmem:[%s0 + $0x24] sm:$0x1]
    %v407 = vld [vmem:[%s0 + $0x28] sm:$0xf]
    %v408 = vld [vmem:[%s0 + $0x2c] sm:$0x1]
    %v409 = vld [vmem:[%s0 + $0x30] sm:$0xf]
    %v410 = vld [vmem:[%s0 + $0x34] sm:$0x1]
    %v411 = vld [vmem:[%s0 + $0x38] sm:$0xf]
    %v412 = vld [vmem:[%s0 + $0x3c] sm:$0x1]
    %v413 = vld [vmem:[%s0 + $0x48] sm:$0xf]
    %v414 = vld [vmem:[%s0 + $0x4c] sm:$0x1]
    %v415 = vld [vmem:[%s0 + $0x50] sm:$0xf]
    %v416 = vld [vmem:[%s0 + $0x54] sm:$0x1]
    %v417 = vld [vmem:[%s0 + $0x58] sm:$0xf]
    %v418 = vld [vmem:[%s0 + $0x5c] sm:$0x1]
    %v419 = vld [vmem:[%s0 + $0x60] sm:$0xf]
    %v420 = vld [vmem:[%s0 + $0x64] sm:$0x1]
    %v421 = vld [vmem:[%s0 + $0x68] sm:$0xf]
    %v422 = vld [vmem:[%s0 + $0x6c] sm:$0x1]
    %v423 = vld [vmem:[%s0 + $0x70] sm:$0xf]
    %v424 = vld [vmem:[%s0 + $0x74] sm:$0x1]
    %v425 = vld [vmem:[%s0 + $0x78] sm:$0xf]
    %v426 = vld [vmem:[%s0 + $0x7c] sm:$0x1]
    %v427 = vld [vmem:[%s0 + $0x80] sm:$0xf]
    %v428 = vld [vmem:[%s0 + $0x84] sm:$0x1]
    %vm429 = vsmask.f32 3328
    %vm430 = vsmask.f32 7440
    %vm431 = vmor %vm429, %vm430
    %v433 = vshrl.u32 %v397, 16
    %v435 = vrot.slane %v433, 4
    %v436 = vshll.u32 %v397, 16
    %v438 = vrot.slane %v436, 5
    %v439 = vor.u32 %v435, %v438
    %v440 = vrot.slane %v439, 4
    %v442 = vshll.u32 %v398, 16
    %v444 = vrot.slane %v442, 5
    %v445 = vsel %vm431, %v440, %v444
    %v447 = vshrl.u32 %v399, 16
    %v449 = vrot.slane %v447, 4
    %v450 = vshll.u32 %v399, 16
    %v452 = vrot.slane %v450, 5
    %v453 = vor.u32 %v449, %v452
    %v454 = vrot.slane %v453, 4
    %v456 = vshll.u32 %v400, 16
    %v458 = vrot.slane %v456, 5
    %v459 = vsel %vm431, %v454, %v458
    %v461 = vshrl.u32 %v401, 16
    %v463 = vrot.slane %v461, 4
    %v464 = vshll.u32 %v401, 16
    %v466 = vrot.slane %v464, 5
    %v467 = vor.u32 %v463, %v466
    %v468 = vrot.slane %v467, 4
    %v470 = vshll.u32 %v402, 16
    %v472 = vrot.slane %v470, 5
    %v473 = vsel %vm431, %v468, %v472
    %v475 = vshrl.u32 %v403, 16
    %v477 = vrot.slane %v475, 4
    %v478 = vshll.u32 %v403, 16
    %v480 = vrot.slane %v478, 5
    %v481 = vor.u32 %v477, %v480
    %v482 = vrot.slane %v481, 4
    %v484 = vshll.u32 %v404, 16
    %v486 = vrot.slane %v484, 5
    %v487 = vsel %vm431, %v482, %v486
    %v489 = vshrl.u32 %v405, 16
    %v491 = vrot.slane %v489, 4
    %v492 = vshll.u32 %v405, 16
    %v494 = vrot.slane %v492, 5
    %v495 = vor.u32 %v491, %v494
    %v496 = vrot.slane %v495, 4
    %v498 = vshll.u32 %v406, 16
    %v500 = vrot.slane %v498, 5
    %v501 = vsel %vm431, %v496, %v500
    %v503 = vshrl.u32 %v407, 16
    %v505 = vrot.slane %v503, 4
    %v506 = vshll.u32 %v407, 16
    %v508 = vrot.slane %v506, 5
    %v509 = vor.u32 %v505, %v508
    %v510 = vrot.slane %v509, 4
    %v512 = vshll.u32 %v408, 16
    %v514 = vrot.slane %v512, 5
    %v515 = vsel %vm431, %v510, %v514
    %v517 = vshrl.u32 %v409, 16
    %v519 = vrot.slane %v517, 4
    %v520 = vshll.u32 %v409, 16
    %v522 = vrot.slane %v520, 5
    %v523 = vor.u32 %v519, %v522
    %v524 = vrot.slane %v523, 4
    %v526 = vshll.u32 %v410, 16
    %v528 = vrot.slane %v526, 5
    %v529 = vsel %vm431, %v524, %v528
    %v531 = vshrl.u32 %v411, 16
    %v533 = vrot.slane %v531, 4
    %v534 = vshll.u32 %v411, 16
    %v536 = vrot.slane %v534, 5
    %v537 = vor.u32 %v533, %v536
    %v538 = vrot.slane %v537, 4
    %v540 = vshll.u32 %v412, 16
    %v542 = vrot.slane %v540, 5
    %v543 = vsel %vm431, %v538, %v542
    %v545 = vshrl.u32 %v413, 16
    %v547 = vrot.slane %v545, 4
    %v548 = vshll.u32 %v413, 16
    %v550 = vrot.slane %v548, 5
    %v551 = vor.u32 %v547, %v550
    %v552 = vrot.slane %v551, 4
    %v554 = vshll.u32 %v414, 16
    %v556 = vrot.slane %v554, 5
    %v557 = vsel %vm431, %v552, %v556
    %v559 = vshrl.u32 %v415, 16
    %v561 = vrot.slane %v559, 4
    %v562 = vshll.u32 %v415, 16
    %v564 = vrot.slane %v562, 5
    %v565 = vor.u32 %v561, %v564
    %v566 = vrot.slane %v565, 4
    %v568 = vshll.u32 %v416, 16
    %v570 = vrot.slane %v568, 5
    %v571 = vsel %vm431, %v566, %v570
    %v573 = vshrl.u32 %v417, 16
    %v575 = vrot.slane %v573, 4
    %v576 = vshll.u32 %v417, 16
    %v578 = vrot.slane %v576, 5
    %v579 = vor.u32 %v575, %v578
    %v580 = vrot.slane %v579, 4
    %v582 = vshll.u32 %v418, 16
    %v584 = vrot.slane %v582, 5
    %v585 = vsel %vm431, %v580, %v584
    %v587 = vshrl.u32 %v419, 16
    %v589 = vrot.slane %v587, 4
    %v590 = vshll.u32 %v419, 16
    %v592 = vrot.slane %v590, 5
    %v593 = vor.u32 %v589, %v592
    %v594 = vrot.slane %v593, 4
    %v596 = vshll.u32 %v420, 16
    %v598 = vrot.slane %v596, 5
    %v599 = vsel %vm431, %v594, %v598
    %v601 = vshrl.u32 %v421, 16
    %v603 = vrot.slane %v601, 4
    %v604 = vshll.u32 %v421, 16
    %v606 = vrot.slane %v604, 5
    %v607 = vor.u32 %v603, %v606
    %v608 = vrot.slane %v607, 4
    %v610 = vshll.u32 %v422, 16
    %v612 = vrot.slane %v610, 5
    %v613 = vsel %vm431, %v608, %v612
    %v615 = vshrl.u32 %v423, 16
    %v617 = vrot.slane %v615, 4
    %v618 = vshll.u32 %v423, 16
    %v620 = vrot.slane %v618, 5
    %v621 = vor.u32 %v617, %v620
    %v622 = vrot.slane %v621, 4
    %v624 = vshll.u32 %v424, 16
    %v626 = vrot.slane %v624, 5
    %v627 = vsel %vm431, %v622, %v626
    %v629 = vshrl.u32 %v425, 16
    %v631 = vrot.slane %v629, 4
    %v632 = vshll.u32 %v425, 16
    %v634 = vrot.slane %v632, 5
    %v635 = vor.u32 %v631, %v634
    %v636 = vrot.slane %v635, 4
    %v638 = vshll.u32 %v426, 16
    %v640 = vrot.slane %v638, 5
    %v641 = vsel %vm431, %v636, %v640
    %v643 = vshrl.u32 %v427, 16
    %v645 = vrot.slane %v643, 4
    %v646 = vshll.u32 %v427, 16
    %v648 = vrot.slane %v646, 5
    %v649 = vor.u32 %v645, %v648
    %v650 = vrot.slane %v649, 4
    %v652 = vshll.u32 %v428, 16
    %v654 = vrot.slane %v652, 5
    %v655 = vsel %vm431, %v650, %v654
    %v656 = vld [vmem:[%s1 + $0x10] sm:$0xf]
    %v657 = vld [vmem:[%s1 + $0x14] sm:$0xf]
    %v658 = vunpack.c.l.b16 %v445
    %v659 = vunpack.c.l.b16 %v459
    %v660 = vunpack.c.l.b16 %v473
    %v661 = vunpack.c.l.b16 %v487
    %v662 = vunpack.c.l.b16 %v501
    %v663 = vunpack.c.l.b16 %v515
    %v664 = vunpack.c.l.b16 %v529
    %v665 = vunpack.c.l.b16 %v543
    %v666 = vunpack.c.l.b16 %v557
    %v667 = vunpack.c.l.b16 %v571
    %v668 = vunpack.c.l.b16 %v585
    %v669 = vunpack.c.l.b16 %v599
    %v670 = vunpack.c.l.b16 %v613
    %v671 = vunpack.c.l.b16 %v627
    %v672 = vunpack.c.l.b16 %v641
    %v673 = vunpack.c.l.b16 %v655
    %v674 = vpack.c.b16 %v659, %v658
    %v675 = vpack.c.b16 %v661, %v660
    %v676 = vpack.c.b16 %v663, %v662
    %v677 = vpack.c.b16 %v665, %v664
    %v678 = vpack.c.b16 %v667, %v666
    %v679 = vpack.c.b16 %v669, %v668
    %v680 = vpack.c.b16 %v671, %v670
    %v681 = vpack.c.b16 %v673, %v672
    %v684 = vunpack.c.l.b16 %v656
    %v685 = vunpack.c.l.b16 %v657
    %v686 = vpack.c.b16 %v685, %v684
    %v689 = vsel %vm108, %v674, 0
    %v692 = vsel %vm108, %v675, 0
    %v695 = vsel %vm108, %v676, 0
    %v698 = vsel %vm108, %v677, 0
    %v701 = vsel %vm108, %v678, 0
    %v704 = vsel %vm108, %v679, 0
    %v707 = vsel %vm108, %v680, 0
    %v710 = vsel %vm108, %v681, 0
    %712 = vmatprep.subr.bf16.mxu0 0
    %713 = vmatpush1.bf16.msra.mxu0 %v686
    %714 = vmatprep.subr.bf16.mxu0 0
    %715 = vmatpush1.bf16.msra.mxu0 0
    %716 = vmatprep.subr.bf16.mxu0 0
    %717 = vmatpush1.bf16.msra.mxu0 0
    %718 = vmatprep.subr.bf16.mxu0 0
    %719 = vmatpush1.bf16.msra.mxu0 0
    %720 = vmatprep.subr.bf16.mxu0 0
    %721 = vmatpush1.bf16.msra.mxu0 0
    %722 = vmatprep.subr.bf16.mxu0 0
    %723 = vmatpush1.bf16.msra.mxu0 0
    %724 = vmatprep.subr.bf16.mxu0 0
    %725 = vmatpush1.bf16.msra.mxu0 0
    %726 = vmatprep.subr.bf16.mxu0 0
    %727 = vmatpush1.bf16.msra.mxu0 0
    %728 = vmatprep.subr.bf16.mxu0 0
    %729 = vmatpush1.bf16.msra.mxu0 0
    %730 = vmatprep.subr.bf16.mxu0 0
    %731 = vmatpush1.bf16.msra.mxu0 0
    %732 = vmatprep.subr.bf16.mxu0 0
    %733 = vmatpush1.bf16.msra.mxu0 0
    %734 = vmatprep.subr.bf16.mxu0 0
    %735 = vmatpush1.bf16.msra.mxu0 0
    %736 = vmatprep.subr.bf16.mxu0 0
    %737 = vmatpush1.bf16.msra.mxu0 0
    %738 = vmatprep.subr.bf16.mxu0 0
    %739 = vmatpush1.bf16.msra.mxu0 0
    %740 = vmatprep.subr.bf16.mxu0 0
    %741 = vmatpush1.bf16.msra.mxu0 0
    %742 = vmatprep.subr.bf16.mxu0 0
    %743 = vmatpush1.bf16.msra.mxu0 0
    %744 = vmatprep.mubr.bf16.mxu0 0
    %745 = vmatmul.mubr.bf16.gmra.mrb[0].mxu0 %v689
    %v746 = vpop.f32.mrb[0].mxu0
    %v747 = vadd.f32 0.0, %v746
    %v748 = vpop.f32.mrb[0].mxu0
    %v749 = vpop.f32.mrb[0].mxu0
    %v750 = vadd.f32 0.0, %v749
    %v751 = vpop.f32.mrb[0].mxu0
    %752 = vmatprep.mubr.bf16.mxu0 0
    %753 = vmatmul.mubr.bf16.gmra.mrb[0].mxu0 %v692
    %v754 = vpop.f32.mrb[0].mxu0
    %v755 = vadd.f32 0.0, %v754
    %v756 = vpop.f32.mrb[0].mxu0
    %v757 = vpop.f32.mrb[0].mxu0
    %v758 = vadd.f32 0.0, %v757
    %v759 = vpop.f32.mrb[0].mxu0
    %760 = vmatprep.mubr.bf16.mxu0 0
    %761 = vmatmul.mubr.bf16.gmra.mrb[0].mxu0 %v695
    %v762 = vpop.f32.mrb[0].mxu0
    %v763 = vadd.f32 0.0, %v762
    %v764 = vpop.f32.mrb[0].mxu0
    %v765 = vpop.f32.mrb[0].mxu0
    %v766 = vadd.f32 0.0, %v765
    %v767 = vpop.f32.mrb[0].mxu0
    %768 = vmatprep.mubr.bf16.mxu0 0
    %769 = vmatmul.mubr.bf16.gmra.mrb[0].mxu0 %v698
    %v770 = vpop.f32.mrb[0].mxu0
    %v771 = vadd.f32 0.0, %v770
    %v772 = vpop.f32.mrb[0].mxu0
    %v773 = vpop.f32.mrb[0].mxu0
    %v774 = vadd.f32 0.0, %v773
    %v775 = vpop.f32.mrb[0].mxu0
    %776 = vmatprep.mubr.bf16.mxu0 0
    %777 = vmatmul.mubr.bf16.gmra.mrb[0].mxu0 %v701
    %v778 = vpop.f32.mrb[0].mxu0
    %v779 = vadd.f32 0.0, %v778
    %v780 = vpop.f32.mrb[0].mxu0
    %v781 = vpop.f32.mrb[0].mxu0
    %v782 = vadd.f32 0.0, %v781
    %v783 = vpop.f32.mrb[0].mxu0
    %784 = vmatprep.mubr.bf16.mxu0 0
    %785 = vmatmul.mubr.bf16.gmra.mrb[0].mxu0 %v704
    %v786 = vpop.f32.mrb[0].mxu0
    %v787 = vadd.f32 0.0, %v786
    %v788 = vpop.f32.mrb[0].mxu0
    %v789 = vpop.f32.mrb[0].mxu0
    %v790 = vadd.f32 0.0, %v789
    %v791 = vpop.f32.mrb[0].mxu0
    %792 = vmatprep.mubr.bf16.mxu0 0
    %793 = vmatmul.mubr.bf16.gmra.mrb[0].mxu0 %v707
    %v794 = vpop.f32.mrb[0].mxu0
    %v795 = vadd.f32 0.0, %v794
    %v796 = vpop.f32.mrb[0].mxu0
    %v797 = vpop.f32.mrb[0].mxu0
    %v798 = vadd.f32 0.0, %v797
    %v799 = vpop.f32.mrb[0].mxu0
    %800 = vmatprep.mubr.bf16.mxu0 0
    %801 = vmatmul.mubr.bf16.gmra.mrb[0].mxu0 %v710
    %v802 = vpop.f32.mrb[0].mxu0
    %v803 = vadd.f32 0.0, %v802
    %v804 = vpop.f32.mrb[0].mxu0
    %v805 = vpop.f32.mrb[0].mxu0
    %v806 = vadd.f32 0.0, %v805
    %v807 = vpop.f32.mrb[0].mxu0
    %808 = vdwg.mxu0
    %v809 = vadd.f32 %v335, %v747
    %v810 = vadd.f32 %v338, %v750
    %v811 = vadd.f32 %v343, %v755
    %v812 = vadd.f32 %v346, %v758
    %v813 = vadd.f32 %v351, %v763
    %v814 = vadd.f32 %v354, %v766
    %v815 = vadd.f32 %v359, %v771
    %v816 = vadd.f32 %v362, %v774
    %v817 = vadd.f32 %v367, %v779
    %v818 = vadd.f32 %v370, %v782
    %v819 = vadd.f32 %v375, %v787
    %v820 = vadd.f32 %v378, %v790
    %v821 = vadd.f32 %v383, %v795
    %v822 = vadd.f32 %v386, %v798
    %v823 = vadd.f32 %v391, %v803
    %v824 = vadd.f32 %v394, %v806
    %s825 = scalar_lea.vmem %s0, 288
    %v826 = vld [vmem:[%s825] sm:$0xf]
    %v827 = vld [vmem:[%s825 + $0x8] sm:$0xf]
    %v828 = vld [vmem:[%s825 + $0x10] sm:$0xf]
    %v829 = vld [vmem:[%s825 + $0x18] sm:$0xf]
    %v830 = vld [vmem:[%s825 + $0x20] sm:$0xf]
    %v831 = vld [vmem:[%s825 + $0x28] sm:$0xf]
    %v832 = vld [vmem:[%s825 + $0x30] sm:$0xf]
    %v833 = vld [vmem:[%s825 + $0x38] sm:$0xf]
    %v834 = vld [vmem:[%s825 + $0x48] sm:$0xf]
    %v835 = vld [vmem:[%s825 + $0x50] sm:$0xf]
    %v836 = vld [vmem:[%s825 + $0x58] sm:$0xf]
    %v837 = vld [vmem:[%s825 + $0x60] sm:$0xf]
    %v838 = vld [vmem:[%s825 + $0x68] sm:$0xf]
    %v839 = vld [vmem:[%s825 + $0x70] sm:$0xf]
    %v840 = vld [vmem:[%s825 + $0x78] sm:$0xf]
    %v841 = vld [vmem:[%s825 + $0x80] sm:$0xf]
    %v842 = vld [vmem:[%s1 + $0x18] sm:$0xf]
    %v843 = vld [vmem:[%s1 + $0x1c] sm:$0xf]
    %v860 = vunpack.c.l.b16 %v826
    %v861 = vunpack.c.l.b16 %v827
    %v862 = vunpack.c.l.b16 %v828
    %v863 = vunpack.c.l.b16 %v829
    %v864 = vunpack.c.l.b16 %v830
    %v865 = vunpack.c.l.b16 %v831
    %v866 = vunpack.c.l.b16 %v832
    %v867 = vunpack.c.l.b16 %v833
    %v868 = vunpack.c.l.b16 %v834
    %v869 = vunpack.c.l.b16 %v835
    %v870 = vunpack.c.l.b16 %v836
    %v871 = vunpack.c.l.b16 %v837
    %v872 = vunpack.c.l.b16 %v838
    %v873 = vunpack.c.l.b16 %v839
    %v874 = vunpack.c.l.b16 %v840
    %v875 = vunpack.c.l.b16 %v841
    %v876 = vpack.c.b16 %v861, %v860
    %v877 = vpack.c.b16 %v863, %v862
    %v878 = vpack.c.b16 %v865, %v864
    %v879 = vpack.c.b16 %v867, %v866
    %v880 = vpack.c.b16 %v869, %v868
    %v881 = vpack.c.b16 %v871, %v870
    %v882 = vpack.c.b16 %v873, %v872
    %v883 = vpack.c.b16 %v875, %v874
    %v886 = vunpack.c.l.b16 %v842
    %v887 = vunpack.c.l.b16 %v843
    %v888 = vpack.c.b16 %v887, %v886
    %v891 = vsel %vm108, %v876, 0
    %v894 = vsel %vm108, %v877, 0
    %v897 = vsel %vm108, %v878, 0
    %v900 = vsel %vm108, %v879, 0
    %v903 = vsel %vm108, %v880, 0
    %v906 = vsel %vm108, %v881, 0
    %v909 = vsel %vm108, %v882, 0
    %v912 = vsel %vm108, %v883, 0
    %914 = vmatprep.subr.bf16.mxu0 0
    %915 = vmatpush1.bf16.msra.mxu0 %v888
    %916 = vmatprep.subr.bf16.mxu0 0
    %917 = vmatpush1.bf16.msra.mxu0 0
    %918 = vmatprep.subr.bf16.mxu0 0
    %919 = vmatpush1.bf16.msra.mxu0 0
    %920 = vmatprep.subr.bf16.mxu0 0
    %921 = vmatpush1.bf16.msra.mxu0 0
    %922 = vmatprep.subr.bf16.mxu0 0
    %923 = vmatpush1.bf16.msra.mxu0 0
    %924 = vmatprep.subr.bf16.mxu0 0
    %925 = vmatpush1.bf16.msra.mxu0 0
    %926 = vmatprep.subr.bf16.mxu0 0
    %927 = vmatpush1.bf16.msra.mxu0 0
    %928 = vmatprep.subr.bf16.mxu0 0
    %929 = vmatpush1.bf16.msra.mxu0 0
    %930 = vmatprep.subr.bf16.mxu0 0
    %931 = vmatpush1.bf16.msra.mxu0 0
    %932 = vmatprep.subr.bf16.mxu0 0
    %933 = vmatpush1.bf16.msra.mxu0 0
    %934 = vmatprep.subr.bf16.mxu0 0
    %935 = vmatpush1.bf16.msra.mxu0 0
    %936 = vmatprep.subr.bf16.mxu0 0
    %937 = vmatpush1.bf16.msra.mxu0 0
    %938 = vmatprep.subr.bf16.mxu0 0
    %939 = vmatpush1.bf16.msra.mxu0 0
    %940 = vmatprep.subr.bf16.mxu0 0
    %941 = vmatpush1.bf16.msra.mxu0 0
    %942 = vmatprep.subr.bf16.mxu0 0
    %943 = vmatpush1.bf16.msra.mxu0 0
    %944 = vmatprep.subr.bf16.mxu0 0
    %945 = vmatpush1.bf16.msra.mxu0 0
    %946 = vmatprep.mubr.bf16.mxu0 0
    %947 = vmatmul.mubr.bf16.gmra.mrb[0].mxu0 %v891
    %v948 = vpop.f32.mrb[0].mxu0
    %v949 = vadd.f32 0.0, %v948
    %v950 = vpop.f32.mrb[0].mxu0
    %v951 = vpop.f32.mrb[0].mxu0
    %v952 = vadd.f32 0.0, %v951
    %v953 = vpop.f32.mrb[0].mxu0
    %954 = vmatprep.mubr.bf16.mxu0 0
    %955 = vmatmul.mubr.bf16.gmra.mrb[0].mxu0 %v894
    %v956 = vpop.f32.mrb[0].mxu0
    %v957 = vadd.f32 0.0, %v956
    %v958 = vpop.f32.mrb[0].mxu0
    %v959 = vpop.f32.mrb[0].mxu0
    %v960 = vadd.f32 0.0, %v959
    %v961 = vpop.f32.mrb[0].mxu0
    %962 = vmatprep.mubr.bf16.mxu0 0
    %963 = vmatmul.mubr.bf16.gmra.mrb[0].mxu0 %v897
    %v964 = vpop.f32.mrb[0].mxu0
    %v965 = vadd.f32 0.0, %v964
    %v966 = vpop.f32.mrb[0].mxu0
    %v967 = vpop.f32.mrb[0].mxu0
    %v968 = vadd.f32 0.0, %v967
    %v969 = vpop.f32.mrb[0].mxu0
    %970 = vmatprep.mubr.bf16.mxu0 0
    %971 = vmatmul.mubr.bf16.gmra.mrb[0].mxu0 %v900
    %v972 = vpop.f32.mrb[0].mxu0
    %v973 = vadd.f32 0.0, %v972
    %v974 = vpop.f32.mrb[0].mxu0
    %v975 = vpop.f32.mrb[0].mxu0
    %v976 = vadd.f32 0.0, %v975
    %v977 = vpop.f32.mrb[0].mxu0
    %978 = vmatprep.mubr.bf16.mxu0 0
    %979 = vmatmul.mubr.bf16.gmra.mrb[0].mxu0 %v903
    %v980 = vpop.f32.mrb[0].mxu0
    %v981 = vadd.f32 0.0, %v980
    %v982 = vpop.f32.mrb[0].mxu0
    %v983 = vpop.f32.mrb[0].mxu0
    %v984 = vadd.f32 0.0, %v983
    %v985 = vpop.f32.mrb[0].mxu0
    %986 = vmatprep.mubr.bf16.mxu0 0
    %987 = vmatmul.mubr.bf16.gmra.mrb[0].mxu0 %v906
    %v988 = vpop.f32.mrb[0].mxu0
    %v989 = vadd.f32 0.0, %v988
    %v990 = vpop.f32.mrb[0].mxu0
    %v991 = vpop.f32.mrb[0].mxu0
    %v992 = vadd.f32 0.0, %v991
    %v993 = vpop.f32.mrb[0].mxu0
    %994 = vmatprep.mubr.bf16.mxu0 0
    %995 = vmatmul.mubr.bf16.gmra.mrb[0].mxu0 %v909
    %v996 = vpop.f32.mrb[0].mxu0
    %v997 = vadd.f32 0.0, %v996
    %v998 = vpop.f32.mrb[0].mxu0
    %v999 = vpop.f32.mrb[0].mxu0
    %v1000 = vadd.f32 0.0, %v999
    %v1001 = vpop.f32.mrb[0].mxu0
    %1002 = vmatprep.mubr.bf16.mxu0 0
    %1003 = vmatmul.mubr.bf16.gmra.mrb[0].mxu0 %v912
    %v1004 = vpop.f32.mrb[0].mxu0
    %v1005 = vadd.f32 0.0, %v1004
    %v1006 = vpop.f32.mrb[0].mxu0
    %v1007 = vpop.f32.mrb[0].mxu0
    %v1008 = vadd.f32 0.0, %v1007
    %v1009 = vpop.f32.mrb[0].mxu0
    %1010 = vdwg.mxu0
    %v1011 = vadd.f32 %v809, %v949
    %v1012 = vadd.f32 %v810, %v952
    %v1013 = vadd.f32 %v811, %v957
    %v1014 = vadd.f32 %v812, %v960
    %v1015 = vadd.f32 %v813, %v965
    %v1016 = vadd.f32 %v814, %v968
    %v1017 = vadd.f32 %v815, %v973
    %v1018 = vadd.f32 %v816, %v976
    %v1019 = vadd.f32 %v817, %v981
    %v1020 = vadd.f32 %v818, %v984
    %v1021 = vadd.f32 %v819, %v989
    %v1022 = vadd.f32 %v820, %v992
    %v1023 = vadd.f32 %v821, %v997
    %v1024 = vadd.f32 %v822, %v1000
    %v1025 = vadd.f32 %v823, %v1005
    %v1026 = vadd.f32 %v824, %v1008
    %s1027 = scalar_lea.vmem %s0, 432
    %v1028 = vld [vmem:[%s1027] sm:$0xf]
    %v1029 = vld [vmem:[%s1027 + $0x8] sm:$0xf]
    %v1030 = vld [vmem:[%s1027 + $0x10] sm:$0xf]
    %v1031 = vld [vmem:[%s1027 + $0x18] sm:$0xf]
    %v1032 = vld [vmem:[%s1027 + $0x20] sm:$0xf]
    %v1033 = vld [vmem:[%s1027 + $0x28] sm:$0xf]
    %v1034 = vld [vmem:[%s1027 + $0x30] sm:$0xf]
    %v1035 = vld [vmem:[%s1027 + $0x38] sm:$0xf]
    %v1036 = vld [vmem:[%s1027 + $0x48] sm:$0xf]
    %v1037 = vld [vmem:[%s1027 + $0x50] sm:$0xf]
    %v1038 = vld [vmem:[%s1027 + $0x58] sm:$0xf]
    %v1039 = vld [vmem:[%s1027 + $0x60] sm:$0xf]
    %v1040 = vld [vmem:[%s1027 + $0x68] sm:$0xf]
    %v1041 = vld [vmem:[%s1027 + $0x70] sm:$0xf]
    %v1042 = vld [vmem:[%s1027 + $0x78] sm:$0xf]
    %v1043 = vld [vmem:[%s1027 + $0x80] sm:$0xf]
    %v1044 = vld [vmem:[%s1 + $0x20] sm:$0xf]
    %v1045 = vld [vmem:[%s1 + $0x24] sm:$0xf]
    %v1062 = vunpack.c.l.b16 %v1028
    %v1063 = vunpack.c.l.b16 %v1029
    %v1064 = vunpack.c.l.b16 %v1030
    %v1065 = vunpack.c.l.b16 %v1031
    %v1066 = vunpack.c.l.b16 %v1032
    %v1067 = vunpack.c.l.b16 %v1033
    %v1068 = vunpack.c.l.b16 %v1034
    %v1069 = vunpack.c.l.b16 %v1035
    %v1070 = vunpack.c.l.b16 %v1036
    %v1071 = vunpack.c.l.b16 %v1037
    %v1072 = vunpack.c.l.b16 %v1038
    %v1073 = vunpack.c.l.b16 %v1039
    %v1074 = vunpack.c.l.b16 %v1040
    %v1075 = vunpack.c.l.b16 %v1041
    %v1076 = vunpack.c.l.b16 %v1042
    %v1077 = vunpack.c.l.b16 %v1043
    %v1078 = vpack.c.b16 %v1063, %v1062
    %v1079 = vpack.c.b16 %v1065, %v1064
    %v1080 = vpack.c.b16 %v1067, %v1066
    %v1081 = vpack.c.b16 %v1069, %v1068
    %v1082 = vpack.c.b16 %v1071, %v1070
    %v1083 = vpack.c.b16 %v1073, %v1072
    %v1084 = vpack.c.b16 %v1075, %v1074
    %v1085 = vpack.c.b16 %v1077, %v1076
    %v1088 = vunpack.c.l.b16 %v1044
    %v1089 = vunpack.c.l.b16 %v1045
    %v1090 = vpack.c.b16 %v1089, %v1088
    %v1093 = vsel %vm108, %v1078, 0
    %v1096 = vsel %vm108, %v1079, 0
    %v1099 = vsel %vm108, %v1080, 0
    %v1102 = vsel %vm108, %v1081, 0
    %v1105 = vsel %vm108, %v1082, 0
    %v1108 = vsel %vm108, %v1083, 0
    %v1111 = vsel %vm108, %v1084, 0
    %v1114 = vsel %vm108, %v1085, 0
    %1116 = vmatprep.subr.bf16.mxu0 0
    %1117 = vmatpush1.bf16.msra.mxu0 %v1090
    %1118 = vmatprep.subr.bf16.mxu0 0
    %1119 = vmatpush1.bf16.msra.mxu0 0
    %1120 = vmatprep.subr.bf16.mxu0 0
    %1121 = vmatpush1.bf16.msra.mxu0 0
    %1122 = vmatprep.subr.bf16.mxu0 0
    %1123 = vmatpush1.bf16.msra.mxu0 0
    %1124 = vmatprep.subr.bf16.mxu0 0
    %1125 = vmatpush1.bf16.msra.mxu0 0
    %1126 = vmatprep.subr.bf16.mxu0 0
    %1127 = vmatpush1.bf16.msra.mxu0 0
    %1128 = vmatprep.subr.bf16.mxu0 0
    %1129 = vmatpush1.bf16.msra.mxu0 0
    %1130 = vmatprep.subr.bf16.mxu0 0
    %1131 = vmatpush1.bf16.msra.mxu0 0
    %1132 = vmatprep.subr.bf16.mxu0 0
    %1133 = vmatpush1.bf16.msra.mxu0 0
    %1134 = vmatprep.subr.bf16.mxu0 0
    %1135 = vmatpush1.bf16.msra.mxu0 0
    %1136 = vmatprep.subr.bf16.mxu0 0
    %1137 = vmatpush1.bf16.msra.mxu0 0
    %1138 = vmatprep.subr.bf16.mxu0 0
    %1139 = vmatpush1.bf16.msra.mxu0 0
    %1140 = vmatprep.subr.bf16.mxu0 0
    %1141 = vmatpush1.bf16.msra.mxu0 0
    %1142 = vmatprep.subr.bf16.mxu0 0
    %1143 = vmatpush1.bf16.msra.mxu0 0
    %1144 = vmatprep.subr.bf16.mxu0 0
    %1145 = vmatpush1.bf16.msra.mxu0 0
    %1146 = vmatprep.subr.bf16.mxu0 0
    %1147 = vmatpush1.bf16.msra.mxu0 0
    %1148 = vmatprep.mubr.bf16.mxu0 0
    %1149 = vmatmul.mubr.bf16.gmra.mrb[0].mxu0 %v1093
    %v1150 = vpop.f32.mrb[0].mxu0
    %v1151 = vadd.f32 0.0, %v1150
    %v1152 = vpop.f32.mrb[0].mxu0
    %v1153 = vpop.f32.mrb[0].mxu0
    %v1154 = vadd.f32 0.0, %v1153
    %v1155 = vpop.f32.mrb[0].mxu0
    %1156 = vmatprep.mubr.bf16.mxu0 0
    %1157 = vmatmul.mubr.bf16.gmra.mrb[0].mxu0 %v1096
    %v1158 = vpop.f32.mrb[0].mxu0
    %v1159 = vadd.f32 0.0, %v1158
    %v1160 = vpop.f32.mrb[0].mxu0
    %v1161 = vpop.f32.mrb[0].mxu0
    %v1162 = vadd.f32 0.0, %v1161
    %v1163 = vpop.f32.mrb[0].mxu0
    %1164 = vmatprep.mubr.bf16.mxu0 0
    %1165 = vmatmul.mubr.bf16.gmra.mrb[0].mxu0 %v1099
    %v1166 = vpop.f32.mrb[0].mxu0
    %v1167 = vadd.f32 0.0, %v1166
    %v1168 = vpop.f32.mrb[0].mxu0
    %v1169 = vpop.f32.mrb[0].mxu0
    %v1170 = vadd.f32 0.0, %v1169
    %v1171 = vpop.f32.mrb[0].mxu0
    %1172 = vmatprep.mubr.bf16.mxu0 0
    %1173 = vmatmul.mubr.bf16.gmra.mrb[0].mxu0 %v1102
    %v1174 = vpop.f32.mrb[0].mxu0
    %v1175 = vadd.f32 0.0, %v1174
    %v1176 = vpop.f32.mrb[0].mxu0
    %v1177 = vpop.f32.mrb[0].mxu0
    %v1178 = vadd.f32 0.0, %v1177
    %v1179 = vpop.f32.mrb[0].mxu0
    %1180 = vmatprep.mubr.bf16.mxu0 0
    %1181 = vmatmul.mubr.bf16.gmra.mrb[0].mxu0 %v1105
    %v1182 = vpop.f32.mrb[0].mxu0
    %v1183 = vadd.f32 0.0, %v1182
    %v1184 = vpop.f32.mrb[0].mxu0
    %v1185 = vpop.f32.mrb[0].mxu0
    %v1186 = vadd.f32 0.0, %v1185
    %v1187 = vpop.f32.mrb[0].mxu0
    %1188 = vmatprep.mubr.bf16.mxu0 0
    %1189 = vmatmul.mubr.bf16.gmra.mrb[0].mxu0 %v1108
    %v1190 = vpop.f32.mrb[0].mxu0
    %v1191 = vadd.f32 0.0, %v1190
    %v1192 = vpop.f32.mrb[0].mxu0
    %v1193 = vpop.f32.mrb[0].mxu0
    %v1194 = vadd.f32 0.0, %v1193
    %v1195 = vpop.f32.mrb[0].mxu0
    %1196 = vmatprep.mubr.bf16.mxu0 0
    %1197 = vmatmul.mubr.bf16.gmra.mrb[0].mxu0 %v1111
    %v1198 = vpop.f32.mrb[0].mxu0
    %v1199 = vadd.f32 0.0, %v1198
    %v1200 = vpop.f32.mrb[0].mxu0
    %v1201 = vpop.f32.mrb[0].mxu0
    %v1202 = vadd.f32 0.0, %v1201
    %v1203 = vpop.f32.mrb[0].mxu0
    %1204 = vmatprep.mubr.bf16.mxu0 0
    %1205 = vmatmul.mubr.bf16.gmra.mrb[0].mxu0 %v1114
    %v1206 = vpop.f32.mrb[0].mxu0
    %v1207 = vadd.f32 0.0, %v1206
    %v1208 = vpop.f32.mrb[0].mxu0
    %v1209 = vpop.f32.mrb[0].mxu0
    %v1210 = vadd.f32 0.0, %v1209
    %v1211 = vpop.f32.mrb[0].mxu0
    %1212 = vdwg.mxu0
    %v1213 = vadd.f32 %v1011, %v1151
    %v1214 = vadd.f32 %v1012, %v1154
    %v1215 = vadd.f32 %v1013, %v1159
    %v1216 = vadd.f32 %v1014, %v1162
    %v1217 = vadd.f32 %v1015, %v1167
    %v1218 = vadd.f32 %v1016, %v1170
    %v1219 = vadd.f32 %v1017, %v1175
    %v1220 = vadd.f32 %v1018, %v1178
    %v1221 = vadd.f32 %v1019, %v1183
    %v1222 = vadd.f32 %v1020, %v1186
    %v1223 = vadd.f32 %v1021, %v1191
    %v1224 = vadd.f32 %v1022, %v1194
    %v1225 = vadd.f32 %v1023, %v1199
    %v1226 = vadd.f32 %v1024, %v1202
    %v1227 = vadd.f32 %v1025, %v1207
    %v1228 = vadd.f32 %v1026, %v1210
    %v1229 = vld [vmem:[%s825] sm:$0xf]
    %v1230 = vld [vmem:[%s825 + $0x4] sm:$0x1]
    %v1231 = vld [vmem:[%s825 + $0x8] sm:$0xf]
    %v1232 = vld [vmem:[%s825 + $0xc] sm:$0x1]
    %v1233 = vld [vmem:[%s825 + $0x10] sm:$0xf]
    %v1234 = vld [vmem:[%s825 + $0x14] sm:$0x1]
    %v1235 = vld [vmem:[%s825 + $0x18] sm:$0xf]
    %v1236 = vld [vmem:[%s825 + $0x1c] sm:$0x1]
    %v1237 = vld [vmem:[%s825 + $0x20] sm:$0xf]
    %v1238 = vld [vmem:[%s825 + $0x24] sm:$0x1]
    %v1239 = vld [vmem:[%s825 + $0x28] sm:$0xf]
    %v1240 = vld [vmem:[%s825 + $0x2c] sm:$0x1]
    %v1241 = vld [vmem:[%s825 + $0x30] sm:$0xf]
    %v1242 = vld [vmem:[%s825 + $0x34] sm:$0x1]
    %v1243 = vld [vmem:[%s825 + $0x38] sm:$0xf]
    %v1244 = vld [vmem:[%s825 + $0x3c] sm:$0x1]
    %v1245 = vld [vmem:[%s825 + $0x48] sm:$0xf]
    %v1246 = vld [vmem:[%s825 + $0x4c] sm:$0x1]
    %v1247 = vld [vmem:[%s825 + $0x50] sm:$0xf]
    %v1248 = vld [vmem:[%s825 + $0x54] sm:$0x1]
    %v1249 = vld [vmem:[%s825 + $0x58] sm:$0xf]
    %v1250 = vld [vmem:[%s825 + $0x5c] sm:$0x1]
    %v1251 = vld [vmem:[%s825 + $0x60] sm:$0xf]
    %v1252 = vld [vmem:[%s825 + $0x64] sm:$0x1]
    %v1253 = vld [vmem:[%s825 + $0x68] sm:$0xf]
    %v1254 = vld [vmem:[%s825 + $0x6c] sm:$0x1]
    %v1255 = vld [vmem:[%s825 + $0x70] sm:$0xf]
    %v1256 = vld [vmem:[%s825 + $0x74] sm:$0x1]
    %v1257 = vld [vmem:[%s825 + $0x78] sm:$0xf]
    %v1258 = vld [vmem:[%s825 + $0x7c] sm:$0x1]
    %v1259 = vld [vmem:[%s825 + $0x80] sm:$0xf]
    %v1260 = vld [vmem:[%s825 + $0x84] sm:$0x1]
    %v1262 = vshrl.u32 %v1229, 16
    %v1264 = vrot.slane %v1262, 4
    %v1265 = vshll.u32 %v1229, 16
    %v1267 = vrot.slane %v1265, 5
    %v1268 = vor.u32 %v1264, %v1267
    %v1269 = vrot.slane %v1268, 4
    %v1271 = vshll.u32 %v1230, 16
    %v1273 = vrot.slane %v1271, 5
    %v1274 = vsel %vm431, %v1269, %v1273
    %v1276 = vshrl.u32 %v1231, 16
    %v1278 = vrot.slane %v1276, 4
    %v1279 = vshll.u32 %v1231, 16
    %v1281 = vrot.slane %v1279, 5
    %v1282 = vor.u32 %v1278, %v1281
    %v1283 = vrot.slane %v1282, 4
    %v1285 = vshll.u32 %v1232, 16
    %v1287 = vrot.slane %v1285, 5
    %v1288 = vsel %vm431, %v1283, %v1287
    %v1290 = vshrl.u32 %v1233, 16
    %v1292 = vrot.slane %v1290, 4
    %v1293 = vshll.u32 %v1233, 16
    %v1295 = vrot.slane %v1293, 5
    %v1296 = vor.u32 %v1292, %v1295
    %v1297 = vrot.slane %v1296, 4
    %v1299 = vshll.u32 %v1234, 16
    %v1301 = vrot.slane %v1299, 5
    %v1302 = vsel %vm431, %v1297, %v1301
    %v1304 = vshrl.u32 %v1235, 16
    %v1306 = vrot.slane %v1304, 4
    %v1307 = vshll.u32 %v1235, 16
    %v1309 = vrot.slane %v1307, 5
    %v1310 = vor.u32 %v1306, %v1309
    %v1311 = vrot.slane %v1310, 4
    %v1313 = vshll.u32 %v1236, 16
    %v1315 = vrot.slane %v1313, 5
    %v1316 = vsel %vm431, %v1311, %v1315
    %v1318 = vshrl.u32 %v1237, 16
    %v1320 = vrot.slane %v1318, 4
    %v1321 = vshll.u32 %v1237, 16
    %v1323 = vrot.slane %v1321, 5
    %v1324 = vor.u32 %v1320, %v1323
    %v1325 = vrot.slane %v1324, 4
    %v1327 = vshll.u32 %v1238, 16
    %v1329 = vrot.slane %v1327, 5
    %v1330 = vsel %vm431, %v1325, %v1329
    %v1332 = vshrl.u32 %v1239, 16
    %v1334 = vrot.slane %v1332, 4
    %v1335 = vshll.u32 %v1239, 16
    %v1337 = vrot.slane %v1335, 5
    %v1338 = vor.u32 %v1334, %v1337
    %v1339 = vrot.slane %v1338, 4
    %v1341 = vshll.u32 %v1240, 16
    %v1343 = vrot.slane %v1341, 5
    %v1344 = vsel %vm431, %v1339, %v1343
    %v1346 = vshrl.u32 %v1241, 16
    %v1348 = vrot.slane %v1346, 4
    %v1349 = vshll.u32 %v1241, 16
    %v1351 = vrot.slane %v1349, 5
    %v1352 = vor.u32 %v1348, %v1351
    %v1353 = vrot.slane %v1352, 4
    %v1355 = vshll.u32 %v1242, 16
    %v1357 = vrot.slane %v1355, 5
    %v1358 = vsel %vm431, %v1353, %v1357
    %v1360 = vshrl.u32 %v1243, 16
    %v1362 = vrot.slane %v1360, 4
    %v1363 = vshll.u32 %v1243, 16
    %v1365 = vrot.slane %v1363, 5
    %v1366 = vor.u32 %v1362, %v1365
    %v1367 = vrot.slane %v1366, 4
    %v1369 = vshll.u32 %v1244, 16
    %v1371 = vrot.slane %v1369, 5
    %v1372 = vsel %vm431, %v1367, %v1371
    %v1374 = vshrl.u32 %v1245, 16
    %v1376 = vrot.slane %v1374, 4
    %v1377 = vshll.u32 %v1245, 16
    %v1379 = vrot.slane %v1377, 5
    %v1380 = vor.u32 %v1376, %v1379
    %v1381 = vrot.slane %v1380, 4
    %v1383 = vshll.u32 %v1246, 16
    %v1385 = vrot.slane %v1383, 5
    %v1386 = vsel %vm431, %v1381, %v1385
    %v1388 = vshrl.u32 %v1247, 16
    %v1390 = vrot.slane %v1388, 4
    %v1391 = vshll.u32 %v1247, 16
    %v1393 = vrot.slane %v1391, 5
    %v1394 = vor.u32 %v1390, %v1393
    %v1395 = vrot.slane %v1394, 4
    %v1397 = vshll.u32 %v1248, 16
    %v1399 = vrot.slane %v1397, 5
    %v1400 = vsel %vm431, %v1395, %v1399
    %v1402 = vshrl.u32 %v1249, 16
    %v1404 = vrot.slane %v1402, 4
    %v1405 = vshll.u32 %v1249, 16
    %v1407 = vrot.slane %v1405, 5
    %v1408 = vor.u32 %v1404, %v1407
    %v1409 = vrot.slane %v1408, 4
    %v1411 = vshll.u32 %v1250, 16
    %v1413 = vrot.slane %v1411, 5
    %v1414 = vsel %vm431, %v1409, %v1413
    %v1416 = vshrl.u32 %v1251, 16
    %v1418 = vrot.slane %v1416, 4
    %v1419 = vshll.u32 %v1251, 16
    %v1421 = vrot.slane %v1419, 5
    %v1422 = vor.u32 %v1418, %v1421
    %v1423 = vrot.slane %v1422, 4
    %v1425 = vshll.u32 %v1252, 16
    %v1427 = vrot.slane %v1425, 5
    %v1428 = vsel %vm431, %v1423, %v1427
    %v1430 = vshrl.u32 %v1253, 16
    %v1432 = vrot.slane %v1430, 4
    %v1433 = vshll.u32 %v1253, 16
    %v1435 = vrot.slane %v1433, 5
    %v1436 = vor.u32 %v1432, %v1435
    %v1437 = vrot.slane %v1436, 4
    %v1439 = vshll.u32 %v1254, 16
    %v1441 = vrot.slane %v1439, 5
    %v1442 = vsel %vm431, %v1437, %v1441
    %v1444 = vshrl.u32 %v1255, 16
    %v1446 = vrot.slane %v1444, 4
    %v1447 = vshll.u32 %v1255, 16
    %v1449 = vrot.slane %v1447, 5
    %v1450 = vor.u32 %v1446, %v1449
    %v1451 = vrot.slane %v1450, 4
    %v1453 = vshll.u32 %v1256, 16
    %v1455 = vrot.slane %v1453, 5
    %v1456 = vsel %vm431, %v1451, %v1455
    %v1458 = vshrl.u32 %v1257, 16
    %v1460 = vrot.slane %v1458, 4
    %v1461 = vshll.u32 %v1257, 16
    %v1463 = vrot.slane %v1461, 5
    %v1464 = vor.u32 %v1460, %v1463
    %v1465 = vrot.slane %v1464, 4
    %v1467 = vshll.u32 %v1258, 16
    %v1469 = vrot.slane %v1467, 5
    %v1470 = vsel %vm431, %v1465, %v1469
    %v1472 = vshrl.u32 %v1259, 16
    %v1474 = vrot.slane %v1472, 4
    %v1475 = vshll.u32 %v1259, 16
    %v1477 = vrot.slane %v1475, 5
    %v1478 = vor.u32 %v1474, %v1477
    %v1479 = vrot.slane %v1478, 4
    %v1481 = vshll.u32 %v1260, 16
    %v1483 = vrot.slane %v1481, 5
    %v1484 = vsel %vm431, %v1479, %v1483
    %v1485 = vld [vmem:[%s1 + $0x28] sm:$0xf]
    %v1486 = vld [vmem:[%s1 + $0x2c] sm:$0xf]
    %v1487 = vunpack.c.l.b16 %v1274
    %v1488 = vunpack.c.l.b16 %v1288
    %v1489 = vunpack.c.l.b16 %v1302
    %v1490 = vunpack.c.l.b16 %v1316
    %v1491 = vunpack.c.l.b16 %v1330
    %v1492 = vunpack.c.l.b16 %v1344
    %v1493 = vunpack.c.l.b16 %v1358
    %v1494 = vunpack.c.l.b16 %v1372
    %v1495 = vunpack.c.l.b16 %v1386
    %v1496 = vunpack.c.l.b16 %v1400
    %v1497 = vunpack.c.l.b16 %v1414
    %v1498 = vunpack.c.l.b16 %v1428
    %v1499 = vunpack.c.l.b16 %v1442
    %v1500 = vunpack.c.l.b16 %v1456
    %v1501 = vunpack.c.l.b16 %v1470
    %v1502 = vunpack.c.l.b16 %v1484
    %v1503 = vpack.c.b16 %v1488, %v1487
    %v1504 = vpack.c.b16 %v1490, %v1489
    %v1505 = vpack.c.b16 %v1492, %v1491
    %v1506 = vpack.c.b16 %v1494, %v1493
    %v1507 = vpack.c.b16 %v1496, %v1495
    %v1508 = vpack.c.b16 %v1498, %v1497
    %v1509 = vpack.c.b16 %v1500, %v1499
    %v1510 = vpack.c.b16 %v1502, %v1501
    %v1513 = vunpack.c.l.b16 %v1485
    %v1514 = vunpack.c.l.b16 %v1486
    %v1515 = vpack.c.b16 %v1514, %v1513
    %v1518 = vsel %vm108, %v1503, 0
    %v1521 = vsel %vm108, %v1504, 0
    %v1524 = vsel %vm108, %v1505, 0
    %v1527 = vsel %vm108, %v1506, 0
    %v1530 = vsel %vm108, %v1507, 0
    %v1533 = vsel %vm108, %v1508, 0
    %v1536 = vsel %vm108, %v1509, 0
    %v1539 = vsel %vm108, %v1510, 0
    %1541 = vmatprep.subr.bf16.mxu0 0
    %1542 = vmatpush1.bf16.msra.mxu0 %v1515
    %1543 = vmatprep.subr.bf16.mxu0 0
    %1544 = vmatpush1.bf16.msra.mxu0 0
    %1545 = vmatprep.subr.bf16.mxu0 0
    %1546 = vmatpush1.bf16.msra.mxu0 0
    %1547 = vmatprep.subr.bf16.mxu0 0
    %1548 = vmatpush1.bf16.msra.mxu0 0
    %1549 = vmatprep.subr.bf16.mxu0 0
    %1550 = vmatpush1.bf16.msra.mxu0 0
    %1551 = vmatprep.subr.bf16.mxu0 0
    %1552 = vmatpush1.bf16.msra.mxu0 0
    %1553 = vmatprep.subr.bf16.mxu0 0
    %1554 = vmatpush1.bf16.msra.mxu0 0
    %1555 = vmatprep.subr.bf16.mxu0 0
    %1556 = vmatpush1.bf16.msra.mxu0 0
    %1557 = vmatprep.subr.bf16.mxu0 0
    %1558 = vmatpush1.bf16.msra.mxu0 0
    %1559 = vmatprep.subr.bf16.mxu0 0
    %1560 = vmatpush1.bf16.msra.mxu0 0
    %1561 = vmatprep.subr.bf16.mxu0 0
    %1562 = vmatpush1.bf16.msra.mxu0 0
    %1563 = vmatprep.subr.bf16.mxu0 0
    %1564 = vmatpush1.bf16.msra.mxu0 0
    %1565 = vmatprep.subr.bf16.mxu0 0
    %1566 = vmatpush1.bf16.msra.mxu0 0
    %1567 = vmatprep.subr.bf16.mxu0 0
    %1568 = vmatpush1.bf16.msra.mxu0 0
    %1569 = vmatprep.subr.bf16.mxu0 0
    %1570 = vmatpush1.bf16.msra.mxu0 0
    %1571 = vmatprep.subr.bf16.mxu0 0
    %1572 = vmatpush1.bf16.msra.mxu0 0
    %1573 = vmatprep.mubr.bf16.mxu0 0
    %1574 = vmatmul.mubr.bf16.gmra.mrb[0].mxu0 %v1518
    %v1575 = vpop.f32.mrb[0].mxu0
    %v1576 = vadd.f32 0.0, %v1575
    %v1577 = vpop.f32.mrb[0].mxu0
    %v1578 = vpop.f32.mrb[0].mxu0
    %v1579 = vadd.f32 0.0, %v1578
    %v1580 = vpop.f32.mrb[0].mxu0
    %1581 = vmatprep.mubr.bf16.mxu0 0
    %1582 = vmatmul.mubr.bf16.gmra.mrb[0].mxu0 %v1521
    %v1583 = vpop.f32.mrb[0].mxu0
    %v1584 = vadd.f32 0.0, %v1583
    %v1585 = vpop.f32.mrb[0].mxu0
    %v1586 = vpop.f32.mrb[0].mxu0
    %v1587 = vadd.f32 0.0, %v1586
    %v1588 = vpop.f32.mrb[0].mxu0
    %1589 = vmatprep.mubr.bf16.mxu0 0
    %1590 = vmatmul.mubr.bf16.gmra.mrb[0].mxu0 %v1524
    %v1591 = vpop.f32.mrb[0].mxu0
    %v1592 = vadd.f32 0.0, %v1591
    %v1593 = vpop.f32.mrb[0].mxu0
    %v1594 = vpop.f32.mrb[0].mxu0
    %v1595 = vadd.f32 0.0, %v1594
    %v1596 = vpop.f32.mrb[0].mxu0
    %1597 = vmatprep.mubr.bf16.mxu0 0
    %1598 = vmatmul.mubr.bf16.gmra.mrb[0].mxu0 %v1527
    %v1599 = vpop.f32.mrb[0].mxu0
    %v1600 = vadd.f32 0.0, %v1599
    %v1601 = vpop.f32.mrb[0].mxu0
    %v1602 = vpop.f32.mrb[0].mxu0
    %v1603 = vadd.f32 0.0, %v1602
    %v1604 = vpop.f32.mrb[0].mxu0
    %1605 = vmatprep.mubr.bf16.mxu0 0
    %1606 = vmatmul.mubr.bf16.gmra.mrb[0].mxu0 %v1530
    %v1607 = vpop.f32.mrb[0].mxu0
    %v1608 = vadd.f32 0.0, %v1607
    %v1609 = vpop.f32.mrb[0].mxu0
    %v1610 = vpop.f32.mrb[0].mxu0
    %v1611 = vadd.f32 0.0, %v1610
    %v1612 = vpop.f32.mrb[0].mxu0
    %1613 = vmatprep.mubr.bf16.mxu0 0
    %1614 = vmatmul.mubr.bf16.gmra.mrb[0].mxu0 %v1533
    %v1615 = vpop.f32.mrb[0].mxu0
    %v1616 = vadd.f32 0.0, %v1615
    %v1617 = vpop.f32.mrb[0].mxu0
    %v1618 = vpop.f32.mrb[0].mxu0
    %v1619 = vadd.f32 0.0, %v1618
    %v1620 = vpop.f32.mrb[0].mxu0
    %1621 = vmatprep.mubr.bf16.mxu0 0
    %1622 = vmatmul.mubr.bf16.gmra.mrb[0].mxu0 %v1536
    %v1623 = vpop.f32.mrb[0].mxu0
    %v1624 = vadd.f32 0.0, %v1623
    %v1625 = vpop.f32.mrb[0].mxu0
    %v1626 = vpop.f32.mrb[0].mxu0
    %v1627 = vadd.f32 0.0, %v1626
    %v1628 = vpop.f32.mrb[0].mxu0
    %1629 = vmatprep.mubr.bf16.mxu0 0
    %1630 = vmatmul.mubr.bf16.gmra.mrb[0].mxu0 %v1539
    %v1631 = vpop.f32.mrb[0].mxu0
    %v1632 = vadd.f32 0.0, %v1631
    %v1633 = vpop.f32.mrb[0].mxu0
    %v1634 = vpop.f32.mrb[0].mxu0
    %v1635 = vadd.f32 0.0, %v1634
    %v1636 = vpop.f32.mrb[0].mxu0
    %1637 = vdwg.mxu0
    %v1638 = vadd.f32 %v1213, %v1576
    %v1639 = vadd.f32 %v1214, %v1579
    %v1640 = vadd.f32 %v1215, %v1584
    %v1641 = vadd.f32 %v1216, %v1587
    %v1642 = vadd.f32 %v1217, %v1592
    %v1643 = vadd.f32 %v1218, %v1595
    %v1644 = vadd.f32 %v1219, %v1600
    %v1645 = vadd.f32 %v1220, %v1603
    %v1646 = vadd.f32 %v1221, %v1608
    %v1647 = vadd.f32 %v1222, %v1611
    %v1648 = vadd.f32 %v1223, %v1616
    %v1649 = vadd.f32 %v1224, %v1619
    %v1650 = vadd.f32 %v1225, %v1624
    %v1651 = vadd.f32 %v1226, %v1627
    %v1652 = vadd.f32 %v1227, %v1632
    %v1653 = vadd.f32 %v1228, %v1635
    %s1654 = scalar_lea.vmem %s0, 8
    %v1655 = vld [vmem:[%s1654] sm:$0xf]
    %v1656 = vld [vmem:[%s1654 + $0x8] sm:$0xf]
    %v1657 = vld [vmem:[%s1654 + $0x10] sm:$0xf]
    %v1658 = vld [vmem:[%s1654 + $0x18] sm:$0xf]
    %v1659 = vld [vmem:[%s1654 + $0x20] sm:$0xf]
    %v1660 = vld [vmem:[%s1654 + $0x28] sm:$0xf]
    %v1661 = vld [vmem:[%s1654 + $0x30] sm:$0xf]
    %v1662 = vld [vmem:[%s1654 + $0x38] sm:$0xf]
    %v1663 = vld [vmem:[%s1654 + $0x48] sm:$0xf]
    %v1664 = vld [vmem:[%s1654 + $0x50] sm:$0xf]
    %v1665 = vld [vmem:[%s1654 + $0x58] sm:$0xf]
    %v1666 = vld [vmem:[%s1654 + $0x60] sm:$0xf]
    %v1667 = vld [vmem:[%s1654 + $0x68] sm:$0xf]
    %v1668 = vld [vmem:[%s1654 + $0x70] sm:$0xf]
    %v1669 = vld [vmem:[%s1654 + $0x78] sm:$0xf]
    %v1670 = vld [vmem:[%s1654 + $0x80] sm:$0xf]
    %v1671 = vld [vmem:[%s1 + $0x30] sm:$0xf]
    %v1672 = vld [vmem:[%s1 + $0x34] sm:$0xf]
    %v1689 = vunpack.c.l.b16 %v1655
    %v1690 = vunpack.c.l.b16 %v1656
    %v1691 = vunpack.c.l.b16 %v1657
    %v1692 = vunpack.c.l.b16 %v1658
    %v1693 = vunpack.c.l.b16 %v1659
    %v1694 = vunpack.c.l.b16 %v1660
    %v1695 = vunpack.c.l.b16 %v1661
    %v1696 = vunpack.c.l.b16 %v1662
    %v1697 = vunpack.c.l.b16 %v1663
    %v1698 = vunpack.c.l.b16 %v1664
    %v1699 = vunpack.c.l.b16 %v1665
    %v1700 = vunpack.c.l.b16 %v1666
    %v1701 = vunpack.c.l.b16 %v1667
    %v1702 = vunpack.c.l.b16 %v1668
    %v1703 = vunpack.c.l.b16 %v1669
    %v1704 = vunpack.c.l.b16 %v1670
    %v1705 = vpack.c.b16 %v1690, %v1689
    %v1706 = vpack.c.b16 %v1692, %v1691
    %v1707 = vpack.c.b16 %v1694, %v1693
    %v1708 = vpack.c.b16 %v1696, %v1695
    %v1709 = vpack.c.b16 %v1698, %v1697
    %v1710 = vpack.c.b16 %v1700, %v1699
    %v1711 = vpack.c.b16 %v1702, %v1701
    %v1712 = vpack.c.b16 %v1704, %v1703
    %v1715 = vunpack.c.l.b16 %v1671
    %v1716 = vunpack.c.l.b16 %v1672
    %v1717 = vpack.c.b16 %v1716, %v1715
    %v1720 = vsel %vm108, %v1705, 0
    %v1723 = vsel %vm108, %v1706, 0
    %v1726 = vsel %vm108, %v1707, 0
    %v1729 = vsel %vm108, %v1708, 0
    %v1732 = vsel %vm108, %v1709, 0
    %v1735 = vsel %vm108, %v1710, 0
    %v1738 = vsel %vm108, %v1711, 0
    %v1741 = vsel %vm108, %v1712, 0
    %1743 = vmatprep.subr.bf16.mxu0 0
    %1744 = vmatpush1.bf16.msra.mxu0 %v1717
    %1745 = vmatprep.subr.bf16.mxu0 0
    %1746 = vmatpush1.bf16.msra.mxu0 0
    %1747 = vmatprep.subr.bf16.mxu0 0
    %1748 = vmatpush1.bf16.msra.mxu0 0
    %1749 = vmatprep.subr.bf16.mxu0 0
    %1750 = vmatpush1.bf16.msra.mxu0 0
    %1751 = vmatprep.subr.bf16.mxu0 0
    %1752 = vmatpush1.bf16.msra.mxu0 0
    %1753 = vmatprep.subr.bf16.mxu0 0
    %1754 = vmatpush1.bf16.msra.mxu0 0
    %1755 = vmatprep.subr.bf16.mxu0 0
    %1756 = vmatpush1.bf16.msra.mxu0 0
    %1757 = vmatprep.subr.bf16.mxu0 0
    %1758 = vmatpush1.bf16.msra.mxu0 0
    %1759 = vmatprep.subr.bf16.mxu0 0
    %1760 = vmatpush1.bf16.msra.mxu0 0
    %1761 = vmatprep.subr.bf16.mxu0 0
    %1762 = vmatpush1.bf16.msra.mxu0 0
    %1763 = vmatprep.subr.bf16.mxu0 0
    %1764 = vmatpush1.bf16.msra.mxu0 0
    %1765 = vmatprep.subr.bf16.mxu0 0
    %1766 = vmatpush1.bf16.msra.mxu0 0
    %1767 = vmatprep.subr.bf16.mxu0 0
    %1768 = vmatpush1.bf16.msra.mxu0 0
    %1769 = vmatprep.subr.bf16.mxu0 0
    %1770 = vmatpush1.bf16.msra.mxu0 0
    %1771 = vmatprep.subr.bf16.mxu0 0
    %1772 = vmatpush1.bf16.msra.mxu0 0
    %1773 = vmatprep.subr.bf16.mxu0 0
    %1774 = vmatpush1.bf16.msra.mxu0 0
    %1775 = vmatprep.mubr.bf16.mxu0 0
    %1776 = vmatmul.mubr.bf16.gmra.mrb[0].mxu0 %v1720
    %v1777 = vpop.f32.mrb[0].mxu0
    %v1778 = vadd.f32 0.0, %v1777
    %v1779 = vpop.f32.mrb[0].mxu0
    %v1780 = vpop.f32.mrb[0].mxu0
    %v1781 = vadd.f32 0.0, %v1780
    %v1782 = vpop.f32.mrb[0].mxu0
    %1783 = vmatprep.mubr.bf16.mxu0 0
    %1784 = vmatmul.mubr.bf16.gmra.mrb[0].mxu0 %v1723
    %v1785 = vpop.f32.mrb[0].mxu0
    %v1786 = vadd.f32 0.0, %v1785
    %v1787 = vpop.f32.mrb[0].mxu0
    %v1788 = vpop.f32.mrb[0].mxu0
    %v1789 = vadd.f32 0.0, %v1788
    %v1790 = vpop.f32.mrb[0].mxu0
    %1791 = vmatprep.mubr.bf16.mxu0 0
    %1792 = vmatmul.mubr.bf16.gmra.mrb[0].mxu0 %v1726
    %v1793 = vpop.f32.mrb[0].mxu0
    %v1794 = vadd.f32 0.0, %v1793
    %v1795 = vpop.f32.mrb[0].mxu0
    %v1796 = vpop.f32.mrb[0].mxu0
    %v1797 = vadd.f32 0.0, %v1796
    %v1798 = vpop.f32.mrb[0].mxu0
    %1799 = vmatprep.mubr.bf16.mxu0 0
    %1800 = vmatmul.mubr.bf16.gmra.mrb[0].mxu0 %v1729
    %v1801 = vpop.f32.mrb[0].mxu0
    %v1802 = vadd.f32 0.0, %v1801
    %v1803 = vpop.f32.mrb[0].mxu0
    %v1804 = vpop.f32.mrb[0].mxu0
    %v1805 = vadd.f32 0.0, %v1804
    %v1806 = vpop.f32.mrb[0].mxu0
    %1807 = vmatprep.mubr.bf16.mxu0 0
    %1808 = vmatmul.mubr.bf16.gmra.mrb[0].mxu0 %v1732
    %v1809 = vpop.f32.mrb[0].mxu0
    %v1810 = vadd.f32 0.0, %v1809
    %v1811 = vpop.f32.mrb[0].mxu0
    %v1812 = vpop.f32.mrb[0].mxu0
    %v1813 = vadd.f32 0.0, %v1812
    %v1814 = vpop.f32.mrb[0].mxu0
    %1815 = vmatprep.mubr.bf16.mxu0 0
    %1816 = vmatmul.mubr.bf16.gmra.mrb[0].mxu0 %v1735
    %v1817 = vpop.f32.mrb[0].mxu0
    %v1818 = vadd.f32 0.0, %v1817
    %v1819 = vpop.f32.mrb[0].mxu0
    %v1820 = vpop.f32.mrb[0].mxu0
    %v1821 = vadd.f32 0.0, %v1820
    %v1822 = vpop.f32.mrb[0].mxu0
    %1823 = vmatprep.mubr.bf16.mxu0 0
    %1824 = vmatmul.mubr.bf16.gmra.mrb[0].mxu0 %v1738
    %v1825 = vpop.f32.mrb[0].mxu0
    %v1826 = vadd.f32 0.0, %v1825
    %v1827 = vpop.f32.mrb[0].mxu0
    %v1828 = vpop.f32.mrb[0].mxu0
    %v1829 = vadd.f32 0.0, %v1828
    %v1830 = vpop.f32.mrb[0].mxu0
    %1831 = vmatprep.mubr.bf16.mxu0 0
    %1832 = vmatmul.mubr.bf16.gmra.mrb[0].mxu0 %v1741
    %v1833 = vpop.f32.mrb[0].mxu0
    %v1834 = vadd.f32 0.0, %v1833
    %v1835 = vpop.f32.mrb[0].mxu0
    %v1836 = vpop.f32.mrb[0].mxu0
    %v1837 = vadd.f32 0.0, %v1836
    %v1838 = vpop.f32.mrb[0].mxu0
    %1839 = vdwg.mxu0
    %v1840 = vadd.f32 %v1638, %v1778
    %v1841 = vadd.f32 %v1639, %v1781
    %v1842 = vadd.f32 %v1640, %v1786
    %v1843 = vadd.f32 %v1641, %v1789
    %v1844 = vadd.f32 %v1642, %v1794
    %v1845 = vadd.f32 %v1643, %v1797
    %v1846 = vadd.f32 %v1644, %v1802
    %v1847 = vadd.f32 %v1645, %v1805
    %v1848 = vadd.f32 %v1646, %v1810
    %v1849 = vadd.f32 %v1647, %v1813
    %v1850 = vadd.f32 %v1648, %v1818
    %v1851 = vadd.f32 %v1649, %v1821
    %v1852 = vadd.f32 %v1650, %v1826
    %v1853 = vadd.f32 %v1651, %v1829
    %v1854 = vadd.f32 %v1652, %v1834
    %v1855 = vadd.f32 %v1653, %v1837
    %s1856 = scalar_lea.vmem %s0, 152
    %v1857 = vld [vmem:[%s1856] sm:$0xf]
    %v1858 = vld [vmem:[%s1856 + $0x8] sm:$0xf]
    %v1859 = vld [vmem:[%s1856 + $0x10] sm:$0xf]
    %v1860 = vld [vmem:[%s1856 + $0x18] sm:$0xf]
    %v1861 = vld [vmem:[%s1856 + $0x20] sm:$0xf]
    %v1862 = vld [vmem:[%s1856 + $0x28] sm:$0xf]
    %v1863 = vld [vmem:[%s1856 + $0x30] sm:$0xf]
    %v1864 = vld [vmem:[%s1856 + $0x38] sm:$0xf]
    %v1865 = vld [vmem:[%s1856 + $0x48] sm:$0xf]
    %v1866 = vld [vmem:[%s1856 + $0x50] sm:$0xf]
    %v1867 = vld [vmem:[%s1856 + $0x58] sm:$0xf]
    %v1868 = vld [vmem:[%s1856 + $0x60] sm:$0xf]
    %v1869 = vld [vmem:[%s1856 + $0x68] sm:$0xf]
    %v1870 = vld [vmem:[%s1856 + $0x70] sm:$0xf]
    %v1871 = vld [vmem:[%s1856 + $0x78] sm:$0xf]
    %v1872 = vld [vmem:[%s1856 + $0x80] sm:$0xf]
    %v1873 = vld [vmem:[%s1 + $0x38] sm:$0xf]
    %v1874 = vld [vmem:[%s1 + $0x3c] sm:$0xf]
    %v1891 = vunpack.c.l.b16 %v1857
    %v1892 = vunpack.c.l.b16 %v1858
    %v1893 = vunpack.c.l.b16 %v1859
    %v1894 = vunpack.c.l.b16 %v1860
    %v1895 = vunpack.c.l.b16 %v1861
    %v1896 = vunpack.c.l.b16 %v1862
    %v1897 = vunpack.c.l.b16 %v1863
    %v1898 = vunpack.c.l.b16 %v1864
    %v1899 = vunpack.c.l.b16 %v1865
    %v1900 = vunpack.c.l.b16 %v1866
    %v1901 = vunpack.c.l.b16 %v1867
    %v1902 = vunpack.c.l.b16 %v1868
    %v1903 = vunpack.c.l.b16 %v1869
    %v1904 = vunpack.c.l.b16 %v1870
    %v1905 = vunpack.c.l.b16 %v1871
    %v1906 = vunpack.c.l.b16 %v1872
    %v1907 = vpack.c.b16 %v1892, %v1891
    %v1908 = vpack.c.b16 %v1894, %v1893
    %v1909 = vpack.c.b16 %v1896, %v1895
    %v1910 = vpack.c.b16 %v1898, %v1897
    %v1911 = vpack.c.b16 %v1900, %v1899
    %v1912 = vpack.c.b16 %v1902, %v1901
    %v1913 = vpack.c.b16 %v1904, %v1903
    %v1914 = vpack.c.b16 %v1906, %v1905
    %v1917 = vunpack.c.l.b16 %v1873
    %v1918 = vunpack.c.l.b16 %v1874
    %v1919 = vpack.c.b16 %v1918, %v1917
    %v1922 = vsel %vm108, %v1907, 0
    %v1925 = vsel %vm108, %v1908, 0
    %v1928 = vsel %vm108, %v1909, 0
    %v1931 = vsel %vm108, %v1910, 0
    %v1934 = vsel %vm108, %v1911, 0
    %v1937 = vsel %vm108, %v1912, 0
    %v1940 = vsel %vm108, %v1913, 0
    %v1943 = vsel %vm108, %v1914, 0
    %1945 = vmatprep.subr.bf16.mxu0 0
    %1946 = vmatpush1.bf16.msra.mxu0 %v1919
    %1947 = vmatprep.subr.bf16.mxu0 0
    %1948 = vmatpush1.bf16.msra.mxu0 0
    %1949 = vmatprep.subr.bf16.mxu0 0
    %1950 = vmatpush1.bf16.msra.mxu0 0
    %1951 = vmatprep.subr.bf16.mxu0 0
    %1952 = vmatpush1.bf16.msra.mxu0 0
    %1953 = vmatprep.subr.bf16.mxu0 0
    %1954 = vmatpush1.bf16.msra.mxu0 0
    %1955 = vmatprep.subr.bf16.mxu0 0
    %1956 = vmatpush1.bf16.msra.mxu0 0
    %1957 = vmatprep.subr.bf16.mxu0 0
    %1958 = vmatpush1.bf16.msra.mxu0 0
    %1959 = vmatprep.subr.bf16.mxu0 0
    %1960 = vmatpush1.bf16.msra.mxu0 0
    %1961 = vmatprep.subr.bf16.mxu0 0
    %1962 = vmatpush1.bf16.msra.mxu0 0
    %1963 = vmatprep.subr.bf16.mxu0 0
    %1964 = vmatpush1.bf16.msra.mxu0 0
    %1965 = vmatprep.subr.bf16.mxu0 0
    %1966 = vmatpush1.bf16.msra.mxu0 0
    %1967 = vmatprep.subr.bf16.mxu0 0
    %1968 = vmatpush1.bf16.msra.mxu0 0
    %1969 = vmatprep.subr.bf16.mxu0 0
    %1970 = vmatpush1.bf16.msra.mxu0 0
    %1971 = vmatprep.subr.bf16.mxu0 0
    %1972 = vmatpush1.bf16.msra.mxu0 0
    %1973 = vmatprep.subr.bf16.mxu0 0
    %1974 = vmatpush1.bf16.msra.mxu0 0
    %1975 = vmatprep.subr.bf16.mxu0 0
    %1976 = vmatpush1.bf16.msra.mxu0 0
    %1977 = vmatprep.mubr.bf16.mxu0 0
    %1978 = vmatmul.mubr.bf16.gmra.mrb[0].mxu0 %v1922
    %v1979 = vpop.f32.mrb[0].mxu0
    %v1980 = vadd.f32 0.0, %v1979
    %v1981 = vpop.f32.mrb[0].mxu0
    %v1982 = vpop.f32.mrb[0].mxu0
    %v1983 = vadd.f32 0.0, %v1982
    %v1984 = vpop.f32.mrb[0].mxu0
    %1985 = vmatprep.mubr.bf16.mxu0 0
    %1986 = vmatmul.mubr.bf16.gmra.mrb[0].mxu0 %v1925
    %v1987 = vpop.f32.mrb[0].mxu0
    %v1988 = vadd.f32 0.0, %v1987
    %v1989 = vpop.f32.mrb[0].mxu0
    %v1990 = vpop.f32.mrb[0].mxu0
    %v1991 = vadd.f32 0.0, %v1990
    %v1992 = vpop.f32.mrb[0].mxu0
    %1993 = vmatprep.mubr.bf16.mxu0 0
    %1994 = vmatmul.mubr.bf16.gmra.mrb[0].mxu0 %v1928
    %v1995 = vpop.f32.mrb[0].mxu0
    %v1996 = vadd.f32 0.0, %v1995
    %v1997 = vpop.f32.mrb[0].mxu0
    %v1998 = vpop.f32.mrb[0].mxu0
    %v1999 = vadd.f32 0.0, %v1998
    %v2000 = vpop.f32.mrb[0].mxu0
    %2001 = vmatprep.mubr.bf16.mxu0 0
    %2002 = vmatmul.mubr.bf16.gmra.mrb[0].mxu0 %v1931
    %v2003 = vpop.f32.mrb[0].mxu0
    %v2004 = vadd.f32 0.0, %v2003
    %v2005 = vpop.f32.mrb[0].mxu0
    %v2006 = vpop.f32.mrb[0].mxu0
    %v2007 = vadd.f32 0.0, %v2006
    %v2008 = vpop.f32.mrb[0].mxu0
    %2009 = vmatprep.mubr.bf16.mxu0 0
    %2010 = vmatmul.mubr.bf16.gmra.mrb[0].mxu0 %v1934
    %v2011 = vpop.f32.mrb[0].mxu0
    %v2012 = vadd.f32 0.0, %v2011
    %v2013 = vpop.f32.mrb[0].mxu0
    %v2014 = vpop.f32.mrb[0].mxu0
    %v2015 = vadd.f32 0.0, %v2014
    %v2016 = vpop.f32.mrb[0].mxu0
    %2017 = vmatprep.mubr.bf16.mxu0 0
    %2018 = vmatmul.mubr.bf16.gmra.mrb[0].mxu0 %v1937
    %v2019 = vpop.f32.mrb[0].mxu0
    %v2020 = vadd.f32 0.0, %v2019
    %v2021 = vpop.f32.mrb[0].mxu0
    %v2022 = vpop.f32.mrb[0].mxu0
    %v2023 = vadd.f32 0.0, %v2022
    %v2024 = vpop.f32.mrb[0].mxu0
    %2025 = vmatprep.mubr.bf16.mxu0 0
    %2026 = vmatmul.mubr.bf16.gmra.mrb[0].mxu0 %v1940
    %v2027 = vpop.f32.mrb[0].mxu0
    %v2028 = vadd.f32 0.0, %v2027
    %v2029 = vpop.f32.mrb[0].mxu0
    %v2030 = vpop.f32.mrb[0].mxu0
    %v2031 = vadd.f32 0.0, %v2030
    %v2032 = vpop.f32.mrb[0].mxu0
    %2033 = vmatprep.mubr.bf16.mxu0 0
    %2034 = vmatmul.mubr.bf16.gmra.mrb[0].mxu0 %v1943
    %v2035 = vpop.f32.mrb[0].mxu0
    %v2036 = vadd.f32 0.0, %v2035
    %v2037 = vpop.f32.mrb[0].mxu0
    %v2038 = vpop.f32.mrb[0].mxu0
    %v2039 = vadd.f32 0.0, %v2038
    %v2040 = vpop.f32.mrb[0].mxu0
    %2041 = vdwg.mxu0
    %v2042 = vadd.f32 %v1840, %v1980
    %v2043 = vadd.f32 %v1841, %v1983
    %v2044 = vadd.f32 %v1842, %v1988
    %v2045 = vadd.f32 %v1843, %v1991
    %v2046 = vadd.f32 %v1844, %v1996
    %v2047 = vadd.f32 %v1845, %v1999
    %v2048 = vadd.f32 %v1846, %v2004
    %v2049 = vadd.f32 %v1847, %v2007
    %v2050 = vadd.f32 %v1848, %v2012
    %v2051 = vadd.f32 %v1849, %v2015
    %v2052 = vadd.f32 %v1850, %v2020
    %v2053 = vadd.f32 %v1851, %v2023
    %v2054 = vadd.f32 %v1852, %v2028
    %v2055 = vadd.f32 %v1853, %v2031
    %v2056 = vadd.f32 %v1854, %v2036
    %v2057 = vadd.f32 %v1855, %v2039
    %v2058 = vld [vmem:[%s1654] sm:$0xf]
    %v2059 = vld [vmem:[%s1654 + $0x4] sm:$0x1]
    %v2060 = vld [vmem:[%s1654 + $0x8] sm:$0xf]
    %v2061 = vld [vmem:[%s1654 + $0xc] sm:$0x1]
    %v2062 = vld [vmem:[%s1654 + $0x10] sm:$0xf]
    %v2063 = vld [vmem:[%s1654 + $0x14] sm:$0x1]
    %v2064 = vld [vmem:[%s1654 + $0x18] sm:$0xf]
    %v2065 = vld [vmem:[%s1654 + $0x1c] sm:$0x1]
    %v2066 = vld [vmem:[%s1654 + $0x20] sm:$0xf]
    %v2067 = vld [vmem:[%s1654 + $0x24] sm:$0x1]
    %v2068 = vld [vmem:[%s1654 + $0x28] sm:$0xf]
    %v2069 = vld [vmem:[%s1654 + $0x2c] sm:$0x1]
    %v2070 = vld [vmem:[%s1654 + $0x30] sm:$0xf]
    %v2071 = vld [vmem:[%s1654 + $0x34] sm:$0x1]
    %v2072 = vld [vmem:[%s1654 + $0x38] sm:$0xf]
    %v2073 = vld [vmem:[%s1654 + $0x3c] sm:$0x1]
    %v2074 = vld [vmem:[%s1654 + $0x48] sm:$0xf]
    %v2075 = vld [vmem:[%s1654 + $0x4c] sm:$0x1]
    %v2076 = vld [vmem:[%s1654 + $0x50] sm:$0xf]
    %v2077 = vld [vmem:[%s1654 + $0x54] sm:$0x1]
    %v2078 = vld [vmem:[%s1654 + $0x58] sm:$0xf]
    %v2079 = vld [vmem:[%s1654 + $0x5c] sm:$0x1]
    %v2080 = vld [vmem:[%s1654 + $0x60] sm:$0xf]
    %v2081 = vld [vmem:[%s1654 + $0x64] sm:$0x1]
    %v2082 = vld [vmem:[%s1654 + $0x68] sm:$0xf]
    %v2083 = vld [vmem:[%s1654 + $0x6c] sm:$0x1]
    %v2084 = vld [vmem:[%s1654 + $0x70] sm:$0xf]
    %v2085 = vld [vmem:[%s1654 + $0x74] sm:$0x1]
    %v2086 = vld [vmem:[%s1654 + $0x78] sm:$0xf]
    %v2087 = vld [vmem:[%s1654 + $0x7c] sm:$0x1]
    %v2088 = vld [vmem:[%s1654 + $0x80] sm:$0xf]
    %v2089 = vld [vmem:[%s1654 + $0x84] sm:$0x1]
    %v2091 = vshrl.u32 %v2058, 16
    %v2093 = vrot.slane %v2091, 4
    %v2094 = vshll.u32 %v2058, 16
    %v2096 = vrot.slane %v2094, 5
    %v2097 = vor.u32 %v2093, %v2096
    %v2098 = vrot.slane %v2097, 4
    %v2100 = vshll.u32 %v2059, 16
    %v2102 = vrot.slane %v2100, 5
    %v2103 = vsel %vm431, %v2098, %v2102
    %v2105 = vshrl.u32 %v2060, 16
    %v2107 = vrot.slane %v2105, 4
    %v2108 = vshll.u32 %v2060, 16
    %v2110 = vrot.slane %v2108, 5
    %v2111 = vor.u32 %v2107, %v2110
    %v2112 = vrot.slane %v2111, 4
    %v2114 = vshll.u32 %v2061, 16
    %v2116 = vrot.slane %v2114, 5
    %v2117 = vsel %vm431, %v2112, %v2116
    %v2119 = vshrl.u32 %v2062, 16
    %v2121 = vrot.slane %v2119, 4
    %v2122 = vshll.u32 %v2062, 16
    %v2124 = vrot.slane %v2122, 5
    %v2125 = vor.u32 %v2121, %v2124
    %v2126 = vrot.slane %v2125, 4
    %v2128 = vshll.u32 %v2063, 16
    %v2130 = vrot.slane %v2128, 5
    %v2131 = vsel %vm431, %v2126, %v2130
    %v2133 = vshrl.u32 %v2064, 16
    %v2135 = vrot.slane %v2133, 4
    %v2136 = vshll.u32 %v2064, 16
    %v2138 = vrot.slane %v2136, 5
    %v2139 = vor.u32 %v2135, %v2138
    %v2140 = vrot.slane %v2139, 4
    %v2142 = vshll.u32 %v2065, 16
    %v2144 = vrot.slane %v2142, 5
    %v2145 = vsel %vm431, %v2140, %v2144
    %v2147 = vshrl.u32 %v2066, 16
    %v2149 = vrot.slane %v2147, 4
    %v2150 = vshll.u32 %v2066, 16
    %v2152 = vrot.slane %v2150, 5
    %v2153 = vor.u32 %v2149, %v2152
    %v2154 = vrot.slane %v2153, 4
    %v2156 = vshll.u32 %v2067, 16
    %v2158 = vrot.slane %v2156, 5
    %v2159 = vsel %vm431, %v2154, %v2158
    %v2161 = vshrl.u32 %v2068, 16
    %v2163 = vrot.slane %v2161, 4
    %v2164 = vshll.u32 %v2068, 16
    %v2166 = vrot.slane %v2164, 5
    %v2167 = vor.u32 %v2163, %v2166
    %v2168 = vrot.slane %v2167, 4
    %v2170 = vshll.u32 %v2069, 16
    %v2172 = vrot.slane %v2170, 5
    %v2173 = vsel %vm431, %v2168, %v2172
    %v2175 = vshrl.u32 %v2070, 16
    %v2177 = vrot.slane %v2175, 4
    %v2178 = vshll.u32 %v2070, 16
    %v2180 = vrot.slane %v2178, 5
    %v2181 = vor.u32 %v2177, %v2180
    %v2182 = vrot.slane %v2181, 4
    %v2184 = vshll.u32 %v2071, 16
    %v2186 = vrot.slane %v2184, 5
    %v2187 = vsel %vm431, %v2182, %v2186
    %v2189 = vshrl.u32 %v2072, 16
    %v2191 = vrot.slane %v2189, 4
    %v2192 = vshll.u32 %v2072, 16
    %v2194 = vrot.slane %v2192, 5
    %v2195 = vor.u32 %v2191, %v2194
    %v2196 = vrot.slane %v2195, 4
    %v2198 = vshll.u32 %v2073, 16
    %v2200 = vrot.slane %v2198, 5
    %v2201 = vsel %vm431, %v2196, %v2200
    %v2203 = vshrl.u32 %v2074, 16
    %v2205 = vrot.slane %v2203, 4
    %v2206 = vshll.u32 %v2074, 16
    %v2208 = vrot.slane %v2206, 5
    %v2209 = vor.u32 %v2205, %v2208
    %v2210 = vrot.slane %v2209, 4
    %v2212 = vshll.u32 %v2075, 16
    %v2214 = vrot.slane %v2212, 5
    %v2215 = vsel %vm431, %v2210, %v2214
    %v2217 = vshrl.u32 %v2076, 16
    %v2219 = vrot.slane %v2217, 4
    %v2220 = vshll.u32 %v2076, 16
    %v2222 = vrot.slane %v2220, 5
    %v2223 = vor.u32 %v2219, %v2222
    %v2224 = vrot.slane %v2223, 4
    %v2226 = vshll.u32 %v2077, 16
    %v2228 = vrot.slane %v2226, 5
    %v2229 = vsel %vm431, %v2224, %v2228
    %v2231 = vshrl.u32 %v2078, 16
    %v2233 = vrot.slane %v2231, 4
    %v2234 = vshll.u32 %v2078, 16
    %v2236 = vrot.slane %v2234, 5
    %v2237 = vor.u32 %v2233, %v2236
    %v2238 = vrot.slane %v2237, 4
    %v2240 = vshll.u32 %v2079, 16
    %v2242 = vrot.slane %v2240, 5
    %v2243 = vsel %vm431, %v2238, %v2242
    %v2245 = vshrl.u32 %v2080, 16
    %v2247 = vrot.slane %v2245, 4
    %v2248 = vshll.u32 %v2080, 16
    %v2250 = vrot.slane %v2248, 5
    %v2251 = vor.u32 %v2247, %v2250
    %v2252 = vrot.slane %v2251, 4
    %v2254 = vshll.u32 %v2081, 16
    %v2256 = vrot.slane %v2254, 5
    %v2257 = vsel %vm431, %v2252, %v2256
    %v2259 = vshrl.u32 %v2082, 16
    %v2261 = vrot.slane %v2259, 4
    %v2262 = vshll.u32 %v2082, 16
    %v2264 = vrot.slane %v2262, 5
    %v2265 = vor.u32 %v2261, %v2264
    %v2266 = vrot.slane %v2265, 4
    %v2268 = vshll.u32 %v2083, 16
    %v2270 = vrot.slane %v2268, 5
    %v2271 = vsel %vm431, %v2266, %v2270
    %v2273 = vshrl.u32 %v2084, 16
    %v2275 = vrot.slane %v2273, 4
    %v2276 = vshll.u32 %v2084, 16
    %v2278 = vrot.slane %v2276, 5
    %v2279 = vor.u32 %v2275, %v2278
    %v2280 = vrot.slane %v2279, 4
    %v2282 = vshll.u32 %v2085, 16
    %v2284 = vrot.slane %v2282, 5
    %v2285 = vsel %vm431, %v2280, %v2284
    %v2287 = vshrl.u32 %v2086, 16
    %v2289 = vrot.slane %v2287, 4
    %v2290 = vshll.u32 %v2086, 16
    %v2292 = vrot.slane %v2290, 5
    %v2293 = vor.u32 %v2289, %v2292
    %v2294 = vrot.slane %v2293, 4
    %v2296 = vshll.u32 %v2087, 16
    %v2298 = vrot.slane %v2296, 5
    %v2299 = vsel %vm431, %v2294, %v2298
    %v2301 = vshrl.u32 %v2088, 16
    %v2303 = vrot.slane %v2301, 4
    %v2304 = vshll.u32 %v2088, 16
    %v2306 = vrot.slane %v2304, 5
    %v2307 = vor.u32 %v2303, %v2306
    %v2308 = vrot.slane %v2307, 4
    %v2310 = vshll.u32 %v2089, 16
    %v2312 = vrot.slane %v2310, 5
    %v2313 = vsel %vm431, %v2308, %v2312
    %v2314 = vld [vmem:[%s1 + $0x40] sm:$0xf]
    %v2315 = vld [vmem:[%s1 + $0x44] sm:$0xf]
    %v2316 = vunpack.c.l.b16 %v2103
    %v2317 = vunpack.c.l.b16 %v2117
    %v2318 = vunpack.c.l.b16 %v2131
    %v2319 = vunpack.c.l.b16 %v2145
    %v2320 = vunpack.c.l.b16 %v2159
    %v2321 = vunpack.c.l.b16 %v2173
    %v2322 = vunpack.c.l.b16 %v2187
    %v2323 = vunpack.c.l.b16 %v2201
    %v2324 = vunpack.c.l.b16 %v2215
    %v2325 = vunpack.c.l.b16 %v2229
    %v2326 = vunpack.c.l.b16 %v2243
    %v2327 = vunpack.c.l.b16 %v2257
    %v2328 = vunpack.c.l.b16 %v2271
    %v2329 = vunpack.c.l.b16 %v2285
    %v2330 = vunpack.c.l.b16 %v2299
    %v2331 = vunpack.c.l.b16 %v2313
    %v2332 = vpack.c.b16 %v2317, %v2316
    %v2333 = vpack.c.b16 %v2319, %v2318
    %v2334 = vpack.c.b16 %v2321, %v2320
    %v2335 = vpack.c.b16 %v2323, %v2322
    %v2336 = vpack.c.b16 %v2325, %v2324
    %v2337 = vpack.c.b16 %v2327, %v2326
    %v2338 = vpack.c.b16 %v2329, %v2328
    %v2339 = vpack.c.b16 %v2331, %v2330
    %v2342 = vunpack.c.l.b16 %v2314
    %v2343 = vunpack.c.l.b16 %v2315
    %v2344 = vpack.c.b16 %v2343, %v2342
    %v2347 = vsel %vm108, %v2332, 0
    %v2350 = vsel %vm108, %v2333, 0
    %v2353 = vsel %vm108, %v2334, 0
    %v2356 = vsel %vm108, %v2335, 0
    %v2359 = vsel %vm108, %v2336, 0
    %v2362 = vsel %vm108, %v2337, 0
    %v2365 = vsel %vm108, %v2338, 0
    %v2368 = vsel %vm108, %v2339, 0
    %2370 = vmatprep.subr.bf16.mxu0 0
    %2371 = vmatpush1.bf16.msra.mxu0 %v2344
    %2372 = vmatprep.subr.bf16.mxu0 0
    %2373 = vmatpush1.bf16.msra.mxu0 0
    %2374 = vmatprep.subr.bf16.mxu0 0
    %2375 = vmatpush1.bf16.msra.mxu0 0
    %2376 = vmatprep.subr.bf16.mxu0 0
    %2377 = vmatpush1.bf16.msra.mxu0 0
    %2378 = vmatprep.subr.bf16.mxu0 0
    %2379 = vmatpush1.bf16.msra.mxu0 0
    %2380 = vmatprep.subr.bf16.mxu0 0
    %2381 = vmatpush1.bf16.msra.mxu0 0
    %2382 = vmatprep.subr.bf16.mxu0 0
    %2383 = vmatpush1.bf16.msra.mxu0 0
    %2384 = vmatprep.subr.bf16.mxu0 0
    %2385 = vmatpush1.bf16.msra.mxu0 0
    %2386 = vmatprep.subr.bf16.mxu0 0
    %2387 = vmatpush1.bf16.msra.mxu0 0
    %2388 = vmatprep.subr.bf16.mxu0 0
    %2389 = vmatpush1.bf16.msra.mxu0 0
    %2390 = vmatprep.subr.bf16.mxu0 0
    %2391 = vmatpush1.bf16.msra.mxu0 0
    %2392 = vmatprep.subr.bf16.mxu0 0
    %2393 = vmatpush1.bf16.msra.mxu0 0
    %2394 = vmatprep.subr.bf16.mxu0 0
    %2395 = vmatpush1.bf16.msra.mxu0 0
    %2396 = vmatprep.subr.bf16.mxu0 0
    %2397 = vmatpush1.bf16.msra.mxu0 0
    %2398 = vmatprep.subr.bf16.mxu0 0
    %2399 = vmatpush1.bf16.msra.mxu0 0
    %2400 = vmatprep.subr.bf16.mxu0 0
    %2401 = vmatpush1.bf16.msra.mxu0 0
    %2402 = vmatprep.mubr.bf16.mxu0 0
    %2403 = vmatmul.mubr.bf16.gmra.mrb[0].mxu0 %v2347
    %v2404 = vpop.f32.mrb[0].mxu0
    %v2405 = vadd.f32 0.0, %v2404
    %v2406 = vpop.f32.mrb[0].mxu0
    %v2407 = vpop.f32.mrb[0].mxu0
    %v2408 = vadd.f32 0.0, %v2407
    %v2409 = vpop.f32.mrb[0].mxu0
    %2410 = vmatprep.mubr.bf16.mxu0 0
    %2411 = vmatmul.mubr.bf16.gmra.mrb[0].mxu0 %v2350
    %v2412 = vpop.f32.mrb[0].mxu0
    %v2413 = vadd.f32 0.0, %v2412
    %v2414 = vpop.f32.mrb[0].mxu0
    %v2415 = vpop.f32.mrb[0].mxu0
    %v2416 = vadd.f32 0.0, %v2415
    %v2417 = vpop.f32.mrb[0].mxu0
    %2418 = vmatprep.mubr.bf16.mxu0 0
    %2419 = vmatmul.mubr.bf16.gmra.mrb[0].mxu0 %v2353
    %v2420 = vpop.f32.mrb[0].mxu0
    %v2421 = vadd.f32 0.0, %v2420
    %v2422 = vpop.f32.mrb[0].mxu0
    %v2423 = vpop.f32.mrb[0].mxu0
    %v2424 = vadd.f32 0.0, %v2423
    %v2425 = vpop.f32.mrb[0].mxu0
    %2426 = vmatprep.mubr.bf16.mxu0 0
    %2427 = vmatmul.mubr.bf16.gmra.mrb[0].mxu0 %v2356
    %v2428 = vpop.f32.mrb[0].mxu0
    %v2429 = vadd.f32 0.0, %v2428
    %v2430 = vpop.f32.mrb[0].mxu0
    %v2431 = vpop.f32.mrb[0].mxu0
    %v2432 = vadd.f32 0.0, %v2431
    %v2433 = vpop.f32.mrb[0].mxu0
    %2434 = vmatprep.mubr.bf16.mxu0 0
    %2435 = vmatmul.mubr.bf16.gmra.mrb[0].mxu0 %v2359
    %v2436 = vpop.f32.mrb[0].mxu0
    %v2437 = vadd.f32 0.0, %v2436
    %v2438 = vpop.f32.mrb[0].mxu0
    %v2439 = vpop.f32.mrb[0].mxu0
    %v2440 = vadd.f32 0.0, %v2439
    %v2441 = vpop.f32.mrb[0].mxu0
    %2442 = vmatprep.mubr.bf16.mxu0 0
    %2443 = vmatmul.mubr.bf16.gmra.mrb[0].mxu0 %v2362
    %v2444 = vpop.f32.mrb[0].mxu0
    %v2445 = vadd.f32 0.0, %v2444
    %v2446 = vpop.f32.mrb[0].mxu0
    %v2447 = vpop.f32.mrb[0].mxu0
    %v2448 = vadd.f32 0.0, %v2447
    %v2449 = vpop.f32.mrb[0].mxu0
    %2450 = vmatprep.mubr.bf16.mxu0 0
    %2451 = vmatmul.mubr.bf16.gmra.mrb[0].mxu0 %v2365
    %v2452 = vpop.f32.mrb[0].mxu0
    %v2453 = vadd.f32 0.0, %v2452
    %v2454 = vpop.f32.mrb[0].mxu0
    %v2455 = vpop.f32.mrb[0].mxu0
    %v2456 = vadd.f32 0.0, %v2455
    %v2457 = vpop.f32.mrb[0].mxu0
    %2458 = vmatprep.mubr.bf16.mxu0 0
    %2459 = vmatmul.mubr.bf16.gmra.mrb[0].mxu0 %v2368
    %v2460 = vpop.f32.mrb[0].mxu0
    %v2461 = vadd.f32 0.0, %v2460
    %v2462 = vpop.f32.mrb[0].mxu0
    %v2463 = vpop.f32.mrb[0].mxu0
    %v2464 = vadd.f32 0.0, %v2463
    %v2465 = vpop.f32.mrb[0].mxu0
    %2466 = vdwg.mxu0
    %v2467 = vadd.f32 %v2042, %v2405
    %v2468 = vadd.f32 %v2043, %v2408
    %v2469 = vadd.f32 %v2044, %v2413
    %v2470 = vadd.f32 %v2045, %v2416
    %v2471 = vadd.f32 %v2046, %v2421
    %v2472 = vadd.f32 %v2047, %v2424
    %v2473 = vadd.f32 %v2048, %v2429
    %v2474 = vadd.f32 %v2049, %v2432
    %v2475 = vadd.f32 %v2050, %v2437
    %v2476 = vadd.f32 %v2051, %v2440
    %v2477 = vadd.f32 %v2052, %v2445
    %v2478 = vadd.f32 %v2053, %v2448
    %v2479 = vadd.f32 %v2054, %v2453
    %v2480 = vadd.f32 %v2055, %v2456
    %v2481 = vadd.f32 %v2056, %v2461
    %v2482 = vadd.f32 %v2057, %v2464
    %v2483 = vld [vmem:[%s2] sm:$0x1]
    %v2485 = vlaneseq
    %v2486 = vshrl.u32 %v2485, 7
    %v2487 = vsub.s32 0, %v2486
    %v2488 = vrot.slane %v2483, %v2487
    %v2490 = vadd.f32 %v2467, %v2488
    %v2491 = vadd.f32 %v2468, %v2488
    %v2492 = vadd.f32 %v2469, %v2488
    %v2493 = vadd.f32 %v2470, %v2488
    %v2494 = vadd.f32 %v2471, %v2488
    %v2495 = vadd.f32 %v2472, %v2488
    %v2496 = vadd.f32 %v2473, %v2488
    %v2497 = vadd.f32 %v2474, %v2488
    %v2498 = vadd.f32 %v2475, %v2488
    %v2499 = vadd.f32 %v2476, %v2488
    %v2500 = vadd.f32 %v2477, %v2488
    %v2501 = vadd.f32 %v2478, %v2488
    %v2502 = vadd.f32 %v2479, %v2488
    %v2503 = vadd.f32 %v2480, %v2488
    %v2504 = vadd.f32 %v2481, %v2488
    %v2505 = vadd.f32 %v2482, %v2488
    %v2506 = vmax.f32 %v2490, 0.0
    %v2507 = vmax.f32 %v2491, 0.0
    %v2508 = vmax.f32 %v2492, 0.0
    %v2509 = vmax.f32 %v2493, 0.0
    %v2510 = vmax.f32 %v2494, 0.0
    %v2511 = vmax.f32 %v2495, 0.0
    %v2512 = vmax.f32 %v2496, 0.0
    %v2513 = vmax.f32 %v2497, 0.0
    %v2514 = vmax.f32 %v2498, 0.0
    %v2515 = vmax.f32 %v2499, 0.0
    %v2516 = vmax.f32 %v2500, 0.0
    %v2517 = vmax.f32 %v2501, 0.0
    %v2518 = vmax.f32 %v2502, 0.0
    %v2519 = vmax.f32 %v2503, 0.0
    %v2520 = vmax.f32 %v2504, 0.0
    %v2521 = vmax.f32 %v2505, 0.0
    %v2522 = vpack.c.bf16 %v2507, %v2506
    %v2523 = vpack.c.bf16 %v2509, %v2508
    %v2524 = vpack.c.bf16 %v2511, %v2510
    %v2525 = vpack.c.bf16 %v2513, %v2512
    %v2526 = vpack.c.bf16 %v2515, %v2514
    %v2527 = vpack.c.bf16 %v2517, %v2516
    %v2528 = vpack.c.bf16 %v2519, %v2518
    %v2529 = vpack.c.bf16 %v2521, %v2520
    %vm2530 = vcmask 257024
    %2531 = vst.msk [vmem:[#allocation2] sm:$0xf] %vm2530, 0
    %vm2532 = vcmask 253952
    %2533 = vst.msk [vmem:[#allocation2 + $0x4] sm:$0x1] %vm2532, 0
    %2534 = vst.msk [vmem:[#allocation2 + $0x8] sm:$0xf] %vm2530, 0
    %2535 = vst.msk [vmem:[#allocation2 + $0xc] sm:$0x1] %vm2532, 0
    %2536 = vst.msk [vmem:[#allocation2 + $0x10] sm:$0xf] %vm2530, 0
    %2537 = vst.msk [vmem:[#allocation2 + $0x14] sm:$0x1] %vm2532, 0
    %2538 = vst.msk [vmem:[#allocation2 + $0x18] sm:$0xf] %vm2530, 0
    %2539 = vst.msk [vmem:[#allocation2 + $0x1c] sm:$0x1] %vm2532, 0
    %2540 = vst.msk [vmem:[#allocation2 + $0x20] sm:$0xf] %vm2530, 0
    %2541 = vst.msk [vmem:[#allocation2 + $0x24] sm:$0x1] %vm2532, 0
    %2542 = vst.msk [vmem:[#allocation2 + $0x28] sm:$0xf] %vm2530, 0
    %2543 = vst.msk [vmem:[#allocation2 + $0x2c] sm:$0x1] %vm2532, 0
    %2544 = vst.msk [vmem:[#allocation2 + $0x30] sm:$0xf] %vm2530, 0
    %2545 = vst.msk [vmem:[#allocation2 + $0x34] sm:$0x1] %vm2532, 0
    %2546 = vst.msk [vmem:[#allocation2 + $0x38] sm:$0xf] %vm2530, 0
    %2547 = vst.msk [vmem:[#allocation2 + $0x3c] sm:$0x1] %vm2532, 0
    %2548 = vst.msk [vmem:[#allocation2 + $0x40] sm:$0xf] %vm2530, 0
    %2549 = vst.msk [vmem:[#allocation2 + $0x44] sm:$0x1] %vm2532, 0
    %2550 = vst.msk [vmem:[#allocation2 + $0x48] sm:$0xf] %vm2530, 0
    %2551 = vst.msk [vmem:[#allocation2 + $0x4c] sm:$0x1] %vm2532, 0
    %2552 = vst.msk [vmem:[#allocation2 + $0x50] sm:$0xf] %vm2530, 0
    %2553 = vst.msk [vmem:[#allocation2 + $0x54] sm:$0x1] %vm2532, 0
    %2554 = vst.msk [vmem:[#allocation2 + $0x58] sm:$0xf] %vm2530, 0
    %2555 = vst.msk [vmem:[#allocation2 + $0x5c] sm:$0x1] %vm2532, 0
    %2556 = vst.msk [vmem:[#allocation2 + $0x60] sm:$0xf] %vm2530, 0
    %2557 = vst.msk [vmem:[#allocation2 + $0x64] sm:$0x1] %vm2532, 0
    %2558 = vst.msk [vmem:[#allocation2 + $0x68] sm:$0xf] %vm2530, 0
    %2559 = vst.msk [vmem:[#allocation2 + $0x6c] sm:$0x1] %vm2532, 0
    %2560 = vst.msk [vmem:[#allocation2 + $0x70] sm:$0xf] %vm2530, 0
    %2561 = vst.msk [vmem:[#allocation2 + $0x74] sm:$0x1] %vm2532, 0
    %2562 = vst.msk [vmem:[#allocation2 + $0x78] sm:$0xf] %vm2530, 0
    %2563 = vst.msk [vmem:[#allocation2 + $0x7c] sm:$0x1] %vm2532, 0
    %2564 = vst.msk [vmem:[#allocation2 + $0x80] sm:$0xf] %vm2530, 0
    %2565 = vst.msk [vmem:[#allocation2 + $0x84] sm:$0x1] %vm2532, 0
    %2566 = vst.msk [vmem:[#allocation2 + $0x88] sm:$0xf] %vm2530, 0
    %2567 = vst.msk [vmem:[#allocation2 + $0x8c] sm:$0x1] %vm2532, 0
    %2568 = vst.msk [vmem:[#allocation2 + $0x90] sm:$0xf] %vm2530, 0
    %2569 = vst.msk [vmem:[#allocation2 + $0x94] sm:$0x1] %vm2532, 0
    %2570 = vst.msk [vmem:[#allocation2 + $0x98] sm:$0xf] %vm2530, 0
    %2571 = vst.msk [vmem:[#allocation2 + $0x9c] sm:$0x1] %vm2532, 0
    %v2580 = vunpack.c.l.b16 %v2522
    %v2581 = vunpack.c.h.b16 %v2522
    %v2582 = vunpack.c.l.b16 %v2523
    %v2583 = vunpack.c.h.b16 %v2523
    %v2584 = vunpack.c.l.b16 %v2524
    %v2585 = vunpack.c.h.b16 %v2524
    %v2586 = vunpack.c.l.b16 %v2525
    %v2587 = vunpack.c.h.b16 %v2525
    %v2588 = vunpack.c.l.b16 %v2526
    %v2589 = vunpack.c.h.b16 %v2526
    %v2590 = vunpack.c.l.b16 %v2527
    %v2591 = vunpack.c.h.b16 %v2527
    %v2592 = vunpack.c.l.b16 %v2528
    %v2593 = vunpack.c.h.b16 %v2528
    %v2594 = vunpack.c.l.b16 %v2529
    %v2595 = vunpack.c.h.b16 %v2529
    %v2596 = vpack.c.b16 %v2580, %v2580
    %v2597 = vpack.c.b16 %v2581, %v2581
    %v2598 = vpack.c.b16 %v2582, %v2582
    %v2599 = vpack.c.b16 %v2583, %v2583
    %v2600 = vpack.c.b16 %v2584, %v2584
    %v2601 = vpack.c.b16 %v2585, %v2585
    %v2602 = vpack.c.b16 %v2586, %v2586
    %v2603 = vpack.c.b16 %v2587, %v2587
    %v2604 = vpack.c.b16 %v2588, %v2588
    %v2605 = vpack.c.b16 %v2589, %v2589
    %v2606 = vpack.c.b16 %v2590, %v2590
    %v2607 = vpack.c.b16 %v2591, %v2591
    %v2608 = vpack.c.b16 %v2592, %v2592
    %v2609 = vpack.c.b16 %v2593, %v2593
    %v2610 = vpack.c.b16 %v2594, %v2594
    %v2611 = vpack.c.b16 %v2595, %v2595
    %v2613 = vshrl.u32 %v2596, 16
    %v2615 = vrot.slane %v2613, 7
    %v2616 = vshll.u32 %v2596, 16
    %v2618 = vor.u32 %v2615, %v2616
    %v2619 = vrot.slane %v2615, 4
    %v2621 = vshrl.u32 %v2597, 16
    %v2623 = vrot.slane %v2621, 7
    %v2624 = vshll.u32 %v2597, 16
    %v2626 = vor.u32 %v2623, %v2624
    %v2627 = vrot.slane %v2623, 4
    %v2629 = vshrl.u32 %v2598, 16
    %v2631 = vrot.slane %v2629, 7
    %v2632 = vshll.u32 %v2598, 16
    %v2634 = vor.u32 %v2631, %v2632
    %v2635 = vrot.slane %v2631, 4
    %v2637 = vshrl.u32 %v2599, 16
    %v2639 = vrot.slane %v2637, 7
    %v2640 = vshll.u32 %v2599, 16
    %v2642 = vor.u32 %v2639, %v2640
    %v2643 = vrot.slane %v2639, 4
    %v2645 = vshrl.u32 %v2600, 16
    %v2647 = vrot.slane %v2645, 7
    %v2648 = vshll.u32 %v2600, 16
    %v2650 = vor.u32 %v2647, %v2648
    %v2651 = vrot.slane %v2647, 4
    %v2653 = vshrl.u32 %v2601, 16
    %v2655 = vrot.slane %v2653, 7
    %v2656 = vshll.u32 %v2601, 16
    %v2658 = vor.u32 %v2655, %v2656
    %v2659 = vrot.slane %v2655, 4
    %v2661 = vshrl.u32 %v2602, 16
    %v2663 = vrot.slane %v2661, 7
    %v2664 = vshll.u32 %v2602, 16
    %v2666 = vor.u32 %v2663, %v2664
    %v2667 = vrot.slane %v2663, 4
    %v2669 = vshrl.u32 %v2603, 16
    %v2671 = vrot.slane %v2669, 7
    %v2672 = vshll.u32 %v2603, 16
    %v2674 = vor.u32 %v2671, %v2672
    %v2675 = vrot.slane %v2671, 4
    %v2677 = vshrl.u32 %v2604, 16
    %v2679 = vrot.slane %v2677, 7
    %v2680 = vshll.u32 %v2604, 16
    %v2682 = vor.u32 %v2679, %v2680
    %v2683 = vrot.slane %v2679, 4
    %v2685 = vshrl.u32 %v2605, 16
    %v2687 = vrot.slane %v2685, 7
    %v2688 = vshll.u32 %v2605, 16
    %v2690 = vor.u32 %v2687, %v2688
    %v2691 = vrot.slane %v2687, 4
    %v2693 = vshrl.u32 %v2606, 16
    %v2695 = vrot.slane %v2693, 7
    %v2696 = vshll.u32 %v2606, 16
    %v2698 = vor.u32 %v2695, %v2696
    %v2699 = vrot.slane %v2695, 4
    %v2701 = vshrl.u32 %v2607, 16
    %v2703 = vrot.slane %v2701, 7
    %v2704 = vshll.u32 %v2607, 16
    %v2706 = vor.u32 %v2703, %v2704
    %v2707 = vrot.slane %v2703, 4
    %v2709 = vshrl.u32 %v2608, 16
    %v2711 = vrot.slane %v2709, 7
    %v2712 = vshll.u32 %v2608, 16
    %v2714 = vor.u32 %v2711, %v2712
    %v2715 = vrot.slane %v2711, 4
    %v2717 = vshrl.u32 %v2609, 16
    %v2719 = vrot.slane %v2717, 7
    %v2720 = vshll.u32 %v2609, 16
    %v2722 = vor.u32 %v2719, %v2720
    %v2723 = vrot.slane %v2719, 4
    %v2725 = vshrl.u32 %v2610, 16
    %v2727 = vrot.slane %v2725, 7
    %v2728 = vshll.u32 %v2610, 16
    %v2730 = vor.u32 %v2727, %v2728
    %v2731 = vrot.slane %v2727, 4
    %v2733 = vshrl.u32 %v2611, 16
    %v2735 = vrot.slane %v2733, 7
    %v2736 = vshll.u32 %v2611, 16
    %v2738 = vor.u32 %v2735, %v2736
    %v2739 = vrot.slane %v2735, 4
    %s2772 = scalar_lea.vmem [#allocation2], 8
    %vm2773 = vcmask 257024
    %vm2774 = vsmask.f32 7938
    %vm2775 = vmand %vm2773, %vm2774
    %v2776 = vld [vmem:[%s2772] sm:$0xf]
    %v2777 = vsel %vm2775, %v2618, %v2776
    %2778 = vst [vmem:[%s2772] sm:$0xf] %v2777
    %vm2779 = vcmask 253952
    %vm2780 = vsmask.f32 256
    %vm2781 = vmand %vm2779, %vm2780
    %v2782 = vld [vmem:[%s2772 + $0x4] sm:$0x1]
    %v2783 = vsel %vm2781, %v2619, %v2782
    %2784 = vst [vmem:[%s2772 + $0x4] sm:$0x1] %v2783
    %v2785 = vld [vmem:[%s2772 + $0x8] sm:$0xf]
    %v2786 = vsel %vm2775, %v2626, %v2785
    %2787 = vst [vmem:[%s2772 + $0x8] sm:$0xf] %v2786
    %v2788 = vld [vmem:[%s2772 + $0xc] sm:$0x1]
    %v2789 = vsel %vm2781, %v2627, %v2788
    %2790 = vst [vmem:[%s2772 + $0xc] sm:$0x1] %v2789
    %v2791 = vld [vmem:[%s2772 + $0x10] sm:$0xf]
    %v2792 = vsel %vm2775, %v2634, %v2791
    %2793 = vst [vmem:[%s2772 + $0x10] sm:$0xf] %v2792
    %v2794 = vld [vmem:[%s2772 + $0x14] sm:$0x1]
    %v2795 = vsel %vm2781, %v2635, %v2794
    %2796 = vst [vmem:[%s2772 + $0x14] sm:$0x1] %v2795
    %v2797 = vld [vmem:[%s2772 + $0x18] sm:$0xf]
    %v2798 = vsel %vm2775, %v2642, %v2797
    %2799 = vst [vmem:[%s2772 + $0x18] sm:$0xf] %v2798
    %v2800 = vld [vmem:[%s2772 + $0x1c] sm:$0x1]
    %v2801 = vsel %vm2781, %v2643, %v2800
    %2802 = vst [vmem:[%s2772 + $0x1c] sm:$0x1] %v2801
    %v2803 = vld [vmem:[%s2772 + $0x20] sm:$0xf]
    %v2804 = vsel %vm2775, %v2650, %v2803
    %2805 = vst [vmem:[%s2772 + $0x20] sm:$0xf] %v2804
    %v2806 = vld [vmem:[%s2772 + $0x24] sm:$0x1]
    %v2807 = vsel %vm2781, %v2651, %v2806
    %2808 = vst [vmem:[%s2772 + $0x24] sm:$0x1] %v2807
    %v2809 = vld [vmem:[%s2772 + $0x28] sm:$0xf]
    %v2810 = vsel %vm2775, %v2658, %v2809
    %2811 = vst [vmem:[%s2772 + $0x28] sm:$0xf] %v2810
    %v2812 = vld [vmem:[%s2772 + $0x2c] sm:$0x1]
    %v2813 = vsel %vm2781, %v2659, %v2812
    %2814 = vst [vmem:[%s2772 + $0x2c] sm:$0x1] %v2813
    %v2815 = vld [vmem:[%s2772 + $0x30] sm:$0xf]
    %v2816 = vsel %vm2775, %v2666, %v2815
    %2817 = vst [vmem:[%s2772 + $0x30] sm:$0xf] %v2816
    %v2818 = vld [vmem:[%s2772 + $0x34] sm:$0x1]
    %v2819 = vsel %vm2781, %v2667, %v2818
    %2820 = vst [vmem:[%s2772 + $0x34] sm:$0x1] %v2819
    %v2821 = vld [vmem:[%s2772 + $0x38] sm:$0xf]
    %v2822 = vsel %vm2775, %v2674, %v2821
    %2823 = vst [vmem:[%s2772 + $0x38] sm:$0xf] %v2822
    %v2824 = vld [vmem:[%s2772 + $0x3c] sm:$0x1]
    %v2825 = vsel %vm2781, %v2675, %v2824
    %2826 = vst [vmem:[%s2772 + $0x3c] sm:$0x1] %v2825
    %v2827 = vld [vmem:[%s2772 + $0x50] sm:$0xf]
    %v2828 = vsel %vm2775, %v2682, %v2827
    %2829 = vst [vmem:[%s2772 + $0x50] sm:$0xf] %v2828
    %v2830 = vld [vmem:[%s2772 + $0x54] sm:$0x1]
    %v2831 = vsel %vm2781, %v2683, %v2830
    %2832 = vst [vmem:[%s2772 + $0x54] sm:$0x1] %v2831
    %v2833 = vld [vmem:[%s2772 + $0x58] sm:$0xf]
    %v2834 = vsel %vm2775, %v2690, %v2833
    %2835 = vst [vmem:[%s2772 + $0x58] sm:$0xf] %v2834
    %v2836 = vld [vmem:[%s2772 + $0x5c] sm:$0x1]
    %v2837 = vsel %vm2781, %v2691, %v2836
    %2838 = vst [vmem:[%s2772 + $0x5c] sm:$0x1] %v2837
    %v2839 = vld [vmem:[%s2772 + $0x60] sm:$0xf]
    %v2840 = vsel %vm2775, %v2698, %v2839
    %2841 = vst [vmem:[%s2772 + $0x60] sm:$0xf] %v2840
    %v2842 = vld [vmem:[%s2772 + $0x64] sm:$0x1]
    %v2843 = vsel %vm2781, %v2699, %v2842
    %2844 = vst [vmem:[%s2772 + $0x64] sm:$0x1] %v2843
    %v2845 = vld [vmem:[%s2772 + $0x68] sm:$0xf]
    %v2846 = vsel %vm2775, %v2706, %v2845
    %2847 = vst [vmem:[%s2772 + $0x68] sm:$0xf] %v2846
    %v2848 = vld [vmem:[%s2772 + $0x6c] sm:$0x1]
    %v2849 = vsel %vm2781, %v2707, %v2848
    %2850 = vst [vmem:[%s2772 + $0x6c] sm:$0x1] %v2849
    %v2851 = vld [vmem:[%s2772 + $0x70] sm:$0xf]
    %v2852 = vsel %vm2775, %v2714, %v2851
    %2853 = vst [vmem:[%s2772 + $0x70] sm:$0xf] %v2852
    %v2854 = vld [vmem:[%s2772 + $0x74] sm:$0x1]
    %v2855 = vsel %vm2781, %v2715, %v2854
    %2856 = vst [vmem:[%s2772 + $0x74] sm:$0x1] %v2855
    %v2857 = vld [vmem:[%s2772 + $0x78] sm:$0xf]
    %v2858 = vsel %vm2775, %v2722, %v2857
    %2859 = vst [vmem:[%s2772 + $0x78] sm:$0xf] %v2858
    %v2860 = vld [vmem:[%s2772 + $0x7c] sm:$0x1]
    %v2861 = vsel %vm2781, %v2723, %v2860
    %2862 = vst [vmem:[%s2772 + $0x7c] sm:$0x1] %v2861
    %v2863 = vld [vmem:[%s2772 + $0x80] sm:$0xf]
    %v2864 = vsel %vm2775, %v2730, %v2863
    %2865 = vst [vmem:[%s2772 + $0x80] sm:$0xf] %v2864
    %v2866 = vld [vmem:[%s2772 + $0x84] sm:$0x1]
    %v2867 = vsel %vm2781, %v2731, %v2866
    %2868 = vst [vmem:[%s2772 + $0x84] sm:$0x1] %v2867
    %v2869 = vld [vmem:[%s2772 + $0x88] sm:$0xf]
    %v2870 = vsel %vm2775, %v2738, %v2869
    %2871 = vst [vmem:[%s2772 + $0x88] sm:$0xf] %v2870
    %v2872 = vld [vmem:[%s2772 + $0x8c] sm:$0x1]
    %v2873 = vsel %vm2781, %v2739, %v2872
    %2874 = vst [vmem:[%s2772 + $0x8c] sm:$0x1] %v2873
    %v2875 = vld [vmem:[#allocation2] sm:$0xf]
    %v2876 = vld [vmem:[#allocation2 + $0x8] sm:$0xf]
    %v2877 = vld [vmem:[#allocation2 + $0x10] sm:$0xf]
    %v2878 = vld [vmem:[#allocation2 + $0x18] sm:$0xf]
    %v2879 = vld [vmem:[#allocation2 + $0x20] sm:$0xf]
    %v2880 = vld [vmem:[#allocation2 + $0x28] sm:$0xf]
    %v2881 = vld [vmem:[#allocation2 + $0x30] sm:$0xf]
    %v2882 = vld [vmem:[#allocation2 + $0x38] sm:$0xf]
    %v2883 = vld [vmem:[#allocation2 + $0x50] sm:$0xf]
    %v2884 = vld [vmem:[#allocation2 + $0x58] sm:$0xf]
    %v2885 = vld [vmem:[#allocation2 + $0x60] sm:$0xf]
    %v2886 = vld [vmem:[#allocation2 + $0x68] sm:$0xf]
    %v2887 = vld [vmem:[#allocation2 + $0x70] sm:$0xf]
    %v2888 = vld [vmem:[#allocation2 + $0x78] sm:$0xf]
    %v2889 = vld [vmem:[#allocation2 + $0x80] sm:$0xf]
    %v2890 = vld [vmem:[#allocation2 + $0x88] sm:$0xf]
    %v2891 = vld [vmem:[%s3] sm:$0xf]
    %v2892 = vld [vmem:[%s3 + $0x4] sm:$0xf]
    %v2893 = vld [vmem:[%s3 + $0x8] sm:$0xf]
    %v2894 = vld [vmem:[%s3 + $0xc] sm:$0xf]
    %v2895 = vld [vmem:[#allocation2 + $0x4] sm:$0x1]
    %v2896 = vld [vmem:[#allocation2 + $0xc] sm:$0x1]
    %v2897 = vld [vmem:[#allocation2 + $0x14] sm:$0x1]
    %v2898 = vld [vmem:[#allocation2 + $0x1c] sm:$0x1]
    %v2899 = vld [vmem:[#allocation2 + $0x24] sm:$0x1]
    %v2900 = vld [vmem:[#allocation2 + $0x2c] sm:$0x1]
    %v2901 = vld [vmem:[#allocation2 + $0x34] sm:$0x1]
    %v2902 = vld [vmem:[#allocation2 + $0x3c] sm:$0x1]
    %v2903 = vld [vmem:[#allocation2 + $0x54] sm:$0x1]
    %v2904 = vld [vmem:[#allocation2 + $0x5c] sm:$0x1]
    %v2905 = vld [vmem:[#allocation2 + $0x64] sm:$0x1]
    %v2906 = vld [vmem:[#allocation2 + $0x6c] sm:$0x1]
    %v2907 = vld [vmem:[#allocation2 + $0x74] sm:$0x1]
    %v2908 = vld [vmem:[#allocation2 + $0x7c] sm:$0x1]
    %v2909 = vld [vmem:[#allocation2 + $0x84] sm:$0x1]
    %v2910 = vld [vmem:[#allocation2 + $0x8c] sm:$0x1]
    %v2912 = vshrl.u32 %v2875, 16
    %v2914 = vrot.slane %v2912, 4
    %v2915 = vshll.u32 %v2875, 16
    %v2917 = vrot.slane %v2915, 5
    %v2918 = vor.u32 %v2914, %v2917
    %v2919 = vrot.slane %v2918, 4
    %v2921 = vshll.u32 %v2895, 16
    %v2923 = vrot.slane %v2921, 5
    %v2924 = vsel %vm431, %v2919, %v2923
    %v2926 = vshrl.u32 %v2876, 16
    %v2928 = vrot.slane %v2926, 4
    %v2929 = vshll.u32 %v2876, 16
    %v2931 = vrot.slane %v2929, 5
    %v2932 = vor.u32 %v2928, %v2931
    %v2933 = vrot.slane %v2932, 4
    %v2935 = vshll.u32 %v2896, 16
    %v2937 = vrot.slane %v2935, 5
    %v2938 = vsel %vm431, %v2933, %v2937
    %v2940 = vshrl.u32 %v2877, 16
    %v2942 = vrot.slane %v2940, 4
    %v2943 = vshll.u32 %v2877, 16
    %v2945 = vrot.slane %v2943, 5
    %v2946 = vor.u32 %v2942, %v2945
    %v2947 = vrot.slane %v2946, 4
    %v2949 = vshll.u32 %v2897, 16
    %v2951 = vrot.slane %v2949, 5
    %v2952 = vsel %vm431, %v2947, %v2951
    %v2954 = vshrl.u32 %v2878, 16
    %v2956 = vrot.slane %v2954, 4
    %v2957 = vshll.u32 %v2878, 16
    %v2959 = vrot.slane %v2957, 5
    %v2960 = vor.u32 %v2956, %v2959
    %v2961 = vrot.slane %v2960, 4
    %v2963 = vshll.u32 %v2898, 16
    %v2965 = vrot.slane %v2963, 5
    %v2966 = vsel %vm431, %v2961, %v2965
    %v2968 = vshrl.u32 %v2879, 16
    %v2970 = vrot.slane %v2968, 4
    %v2971 = vshll.u32 %v2879, 16
    %v2973 = vrot.slane %v2971, 5
    %v2974 = vor.u32 %v2970, %v2973
    %v2975 = vrot.slane %v2974, 4
    %v2977 = vshll.u32 %v2899, 16
    %v2979 = vrot.slane %v2977, 5
    %v2980 = vsel %vm431, %v2975, %v2979
    %v2982 = vshrl.u32 %v2880, 16
    %v2984 = vrot.slane %v2982, 4
    %v2985 = vshll.u32 %v2880, 16
    %v2987 = vrot.slane %v2985, 5
    %v2988 = vor.u32 %v2984, %v2987
    %v2989 = vrot.slane %v2988, 4
    %v2991 = vshll.u32 %v2900, 16
    %v2993 = vrot.slane %v2991, 5
    %v2994 = vsel %vm431, %v2989, %v2993
    %v2996 = vshrl.u32 %v2881, 16
    %v2998 = vrot.slane %v2996, 4
    %v2999 = vshll.u32 %v2881, 16
    %v3001 = vrot.slane %v2999, 5
    %v3002 = vor.u32 %v2998, %v3001
    %v3003 = vrot.slane %v3002, 4
    %v3005 = vshll.u32 %v2901, 16
    %v3007 = vrot.slane %v3005, 5
    %v3008 = vsel %vm431, %v3003, %v3007
    %v3010 = vshrl.u32 %v2882, 16
    %v3012 = vrot.slane %v3010, 4
    %v3013 = vshll.u32 %v2882, 16
    %v3015 = vrot.slane %v3013, 5
    %v3016 = vor.u32 %v3012, %v3015
    %v3017 = vrot.slane %v3016, 4
    %v3019 = vshll.u32 %v2902, 16
    %v3021 = vrot.slane %v3019, 5
    %v3022 = vsel %vm431, %v3017, %v3021
    %v3024 = vshrl.u32 %v2883, 16
    %v3026 = vrot.slane %v3024, 4
    %v3027 = vshll.u32 %v2883, 16
    %v3029 = vrot.slane %v3027, 5
    %v3030 = vor.u32 %v3026, %v3029
    %v3031 = vrot.slane %v3030, 4
    %v3033 = vshll.u32 %v2903, 16
    %v3035 = vrot.slane %v3033, 5
    %v3036 = vsel %vm431, %v3031, %v3035
    %v3038 = vshrl.u32 %v2884, 16
    %v3040 = vrot.slane %v3038, 4
    %v3041 = vshll.u32 %v2884, 16
    %v3043 = vrot.slane %v3041, 5
    %v3044 = vor.u32 %v3040, %v3043
    %v3045 = vrot.slane %v3044, 4
    %v3047 = vshll.u32 %v2904, 16
    %v3049 = vrot.slane %v3047, 5
    %v3050 = vsel %vm431, %v3045, %v3049
    %v3052 = vshrl.u32 %v2885, 16
    %v3054 = vrot.slane %v3052, 4
    %v3055 = vshll.u32 %v2885, 16
    %v3057 = vrot.slane %v3055, 5
    %v3058 = vor.u32 %v3054, %v3057
    %v3059 = vrot.slane %v3058, 4
    %v3061 = vshll.u32 %v2905, 16
    %v3063 = vrot.slane %v3061, 5
    %v3064 = vsel %vm431, %v3059, %v3063
    %v3066 = vshrl.u32 %v2886, 16
    %v3068 = vrot.slane %v3066, 4
    %v3069 = vshll.u32 %v2886, 16
    %v3071 = vrot.slane %v3069, 5
    %v3072 = vor.u32 %v3068, %v3071
    %v3073 = vrot.slane %v3072, 4
    %v3075 = vshll.u32 %v2906, 16
    %v3077 = vrot.slane %v3075, 5
    %v3078 = vsel %vm431, %v3073, %v3077
    %v3080 = vshrl.u32 %v2887, 16
    %v3082 = vrot.slane %v3080, 4
    %v3083 = vshll.u32 %v2887, 16
    %v3085 = vrot.slane %v3083, 5
    %v3086 = vor.u32 %v3082, %v3085
    %v3087 = vrot.slane %v3086, 4
    %v3089 = vshll.u32 %v2907, 16
    %v3091 = vrot.slane %v3089, 5
    %v3092 = vsel %vm431, %v3087, %v3091
    %v3094 = vshrl.u32 %v2888, 16
    %v3096 = vrot.slane %v3094, 4
    %v3097 = vshll.u32 %v2888, 16
    %v3099 = vrot.slane %v3097, 5
    %v3100 = vor.u32 %v3096, %v3099
    %v3101 = vrot.slane %v3100, 4
    %v3103 = vshll.u32 %v2908, 16
    %v3105 = vrot.slane %v3103, 5
    %v3106 = vsel %vm431, %v3101, %v3105
    %v3108 = vshrl.u32 %v2889, 16
    %v3110 = vrot.slane %v3108, 4
    %v3111 = vshll.u32 %v2889, 16
    %v3113 = vrot.slane %v3111, 5
    %v3114 = vor.u32 %v3110, %v3113
    %v3115 = vrot.slane %v3114, 4
    %v3117 = vshll.u32 %v2909, 16
    %v3119 = vrot.slane %v3117, 5
    %v3120 = vsel %vm431, %v3115, %v3119
    %v3122 = vshrl.u32 %v2890, 16
    %v3124 = vrot.slane %v3122, 4
    %v3125 = vshll.u32 %v2890, 16
    %v3127 = vrot.slane %v3125, 5
    %v3128 = vor.u32 %v3124, %v3127
    %v3129 = vrot.slane %v3128, 4
    %v3131 = vshll.u32 %v2910, 16
    %v3133 = vrot.slane %v3131, 5
    %v3134 = vsel %vm431, %v3129, %v3133
    %v3135 = vld [vmem:[%s3 + $0x10] sm:$0xf]
    %v3136 = vld [vmem:[%s3 + $0x14] sm:$0xf]
    %v3137 = vld [vmem:[%s3 + $0x18] sm:$0xf]
    %v3138 = vld [vmem:[%s3 + $0x1c] sm:$0xf]
    %v3139 = vunpack.c.l.b16 %v2924
    %v3140 = vunpack.c.l.b16 %v2938
    %v3141 = vunpack.c.l.b16 %v2952
    %v3142 = vunpack.c.l.b16 %v2966
    %v3143 = vunpack.c.l.b16 %v2980
    %v3144 = vunpack.c.l.b16 %v2994
    %v3145 = vunpack.c.l.b16 %v3008
    %v3146 = vunpack.c.l.b16 %v3022
    %v3147 = vunpack.c.l.b16 %v3036
    %v3148 = vunpack.c.l.b16 %v3050
    %v3149 = vunpack.c.l.b16 %v3064
    %v3150 = vunpack.c.l.b16 %v3078
    %v3151 = vunpack.c.l.b16 %v3092
    %v3152 = vunpack.c.l.b16 %v3106
    %v3153 = vunpack.c.l.b16 %v3120
    %v3154 = vunpack.c.l.b16 %v3134
    %v3155 = vpack.c.b16 %v3140, %v3139
    %v3156 = vpack.c.b16 %v3142, %v3141
    %v3157 = vpack.c.b16 %v3144, %v3143
    %v3158 = vpack.c.b16 %v3146, %v3145
    %v3159 = vpack.c.b16 %v3148, %v3147
    %v3160 = vpack.c.b16 %v3150, %v3149
    %v3161 = vpack.c.b16 %v3152, %v3151
    %v3162 = vpack.c.b16 %v3154, %v3153
    %v3167 = vunpack.c.l.b16 %v3135
    %v3168 = vunpack.c.l.b16 %v3136
    %v3169 = vunpack.c.l.b16 %v3137
    %v3170 = vunpack.c.l.b16 %v3138
    %v3171 = vpack.c.b16 %v3168, %v3167
    %v3172 = vpack.c.b16 %v3170, %v3169
    %vm3175 = vcmask 261120
    %v3177 = vsel %vm3175, %v3155, 0
    %v3180 = vsel %vm3175, %v3156, 0
    %v3183 = vsel %vm3175, %v3157, 0
    %v3186 = vsel %vm3175, %v3158, 0
    %v3189 = vsel %vm3175, %v3159, 0
    %v3192 = vsel %vm3175, %v3160, 0
    %v3195 = vsel %vm3175, %v3161, 0
    %v3198 = vsel %vm3175, %v3162, 0
    %3200 = vmatprep.subr.bf16.mxu0 0
    %3201 = vmatpush1.bf16.msra.mxu0 %v3171
    %3202 = vmatprep.subr.bf16.mxu0 0
    %3203 = vmatpush1.bf16.msra.mxu0 %v3172
    %3204 = vmatprep.subr.bf16.mxu0 0
    %3205 = vmatpush1.bf16.msra.mxu0 0
    %3206 = vmatprep.subr.bf16.mxu0 0
    %3207 = vmatpush1.bf16.msra.mxu0 0
    %3208 = vmatprep.subr.bf16.mxu0 0
    %3209 = vmatpush1.bf16.msra.mxu0 0
    %3210 = vmatprep.subr.bf16.mxu0 0
    %3211 = vmatpush1.bf16.msra.mxu0 0
    %3212 = vmatprep.subr.bf16.mxu0 0
    %3213 = vmatpush1.bf16.msra.mxu0 0
    %3214 = vmatprep.subr.bf16.mxu0 0
    %3215 = vmatpush1.bf16.msra.mxu0 0
    %3216 = vmatprep.subr.bf16.mxu0 0
    %3217 = vmatpush1.bf16.msra.mxu0 0
    %3218 = vmatprep.subr.bf16.mxu0 0
    %3219 = vmatpush1.bf16.msra.mxu0 0
    %3220 = vmatprep.subr.bf16.mxu0 0
    %3221 = vmatpush1.bf16.msra.mxu0 0
    %3222 = vmatprep.subr.bf16.mxu0 0
    %3223 = vmatpush1.bf16.msra.mxu0 0
    %3224 = vmatprep.subr.bf16.mxu0 0
    %3225 = vmatpush1.bf16.msra.mxu0 0
    %3226 = vmatprep.subr.bf16.mxu0 0
    %3227 = vmatpush1.bf16.msra.mxu0 0
    %3228 = vmatprep.subr.bf16.mxu0 0
    %3229 = vmatpush1.bf16.msra.mxu0 0
    %3230 = vmatprep.subr.bf16.mxu0 0
    %3231 = vmatpush1.bf16.msra.mxu0 0
    %3232 = vmatprep.mubr.bf16.mxu0 0
    %3233 = vmatmul.mubr.bf16.gmra.mrb[0].mxu0 %v3177
    %v3234 = vpop.f32.mrb[0].mxu0
    %v3235 = vadd.f32 0.0, %v3234
    %v3236 = vpop.f32.mrb[0].mxu0
    %v3237 = vpop.f32.mrb[0].mxu0
    %v3238 = vadd.f32 0.0, %v3237
    %v3239 = vpop.f32.mrb[0].mxu0
    %3240 = vmatprep.mubr.bf16.mxu0 0
    %3241 = vmatmul.mubr.bf16.gmra.mrb[0].mxu0 %v3180
    %v3242 = vpop.f32.mrb[0].mxu0
    %v3243 = vadd.f32 0.0, %v3242
    %v3244 = vpop.f32.mrb[0].mxu0
    %v3245 = vpop.f32.mrb[0].mxu0
    %v3246 = vadd.f32 0.0, %v3245
    %v3247 = vpop.f32.mrb[0].mxu0
    %3248 = vmatprep.mubr.bf16.mxu0 0
    %3249 = vmatmul.mubr.bf16.gmra.mrb[0].mxu0 %v3183
    %v3250 = vpop.f32.mrb[0].mxu0
    %v3251 = vadd.f32 0.0, %v3250
    %v3252 = vpop.f32.mrb[0].mxu0
    %v3253 = vpop.f32.mrb[0].mxu0
    %v3254 = vadd.f32 0.0, %v3253
    %v3255 = vpop.f32.mrb[0].mxu0
    %3256 = vmatprep.mubr.bf16.mxu0 0
    %3257 = vmatmul.mubr.bf16.gmra.mrb[0].mxu0 %v3186
    %v3258 = vpop.f32.mrb[0].mxu0
    %v3259 = vadd.f32 0.0, %v3258
    %v3260 = vpop.f32.mrb[0].mxu0
    %v3261 = vpop.f32.mrb[0].mxu0
    %v3262 = vadd.f32 0.0, %v3261
    %v3263 = vpop.f32.mrb[0].mxu0
    %3264 = vmatprep.mubr.bf16.mxu0 0
    %3265 = vmatmul.mubr.bf16.gmra.mrb[0].mxu0 %v3189
    %v3266 = vpop.f32.mrb[0].mxu0
    %v3267 = vadd.f32 0.0, %v3266
    %v3268 = vpop.f32.mrb[0].mxu0
    %v3269 = vpop.f32.mrb[0].mxu0
    %v3270 = vadd.f32 0.0, %v3269
    %v3271 = vpop.f32.mrb[0].mxu0
    %3272 = vmatprep.mubr.bf16.mxu0 0
    %3273 = vmatmul.mubr.bf16.gmra.mrb[0].mxu0 %v3192
    %v3274 = vpop.f32.mrb[0].mxu0
    %v3275 = vadd.f32 0.0, %v3274
    %v3276 = vpop.f32.mrb[0].mxu0
    %v3277 = vpop.f32.mrb[0].mxu0
    %v3278 = vadd.f32 0.0, %v3277
    %v3279 = vpop.f32.mrb[0].mxu0
    %3280 = vmatprep.mubr.bf16.mxu0 0
    %3281 = vmatmul.mubr.bf16.gmra.mrb[0].mxu0 %v3195
    %v3282 = vpop.f32.mrb[0].mxu0
    %v3283 = vadd.f32 0.0, %v3282
    %v3284 = vpop.f32.mrb[0].mxu0
    %v3285 = vpop.f32.mrb[0].mxu0
    %v3286 = vadd.f32 0.0, %v3285
    %v3287 = vpop.f32.mrb[0].mxu0
    %3288 = vmatprep.mubr.bf16.mxu0 0
    %3289 = vmatmul.mubr.bf16.gmra.mrb[0].mxu0 %v3198
    %v3290 = vpop.f32.mrb[0].mxu0
    %v3291 = vadd.f32 0.0, %v3290
    %v3292 = vpop.f32.mrb[0].mxu0
    %v3293 = vpop.f32.mrb[0].mxu0
    %v3294 = vadd.f32 0.0, %v3293
    %v3295 = vpop.f32.mrb[0].mxu0
    %3296 = vdwg.mxu0
    %v3313 = vunpack.c.l.b16 %v2875
    %v3314 = vunpack.c.l.b16 %v2876
    %v3315 = vunpack.c.l.b16 %v2877
    %v3316 = vunpack.c.l.b16 %v2878
    %v3317 = vunpack.c.l.b16 %v2879
    %v3318 = vunpack.c.l.b16 %v2880
    %v3319 = vunpack.c.l.b16 %v2881
    %v3320 = vunpack.c.l.b16 %v2882
    %v3321 = vunpack.c.l.b16 %v2883
    %v3322 = vunpack.c.l.b16 %v2884
    %v3323 = vunpack.c.l.b16 %v2885
    %v3324 = vunpack.c.l.b16 %v2886
    %v3325 = vunpack.c.l.b16 %v2887
    %v3326 = vunpack.c.l.b16 %v2888
    %v3327 = vunpack.c.l.b16 %v2889
    %v3328 = vunpack.c.l.b16 %v2890
    %v3329 = vpack.c.b16 %v3314, %v3313
    %v3330 = vpack.c.b16 %v3316, %v3315
    %v3331 = vpack.c.b16 %v3318, %v3317
    %v3332 = vpack.c.b16 %v3320, %v3319
    %v3333 = vpack.c.b16 %v3322, %v3321
    %v3334 = vpack.c.b16 %v3324, %v3323
    %v3335 = vpack.c.b16 %v3326, %v3325
    %v3336 = vpack.c.b16 %v3328, %v3327
    %v3341 = vunpack.c.l.b16 %v2891
    %v3342 = vunpack.c.l.b16 %v2892
    %v3343 = vunpack.c.l.b16 %v2893
    %v3344 = vunpack.c.l.b16 %v2894
    %v3345 = vpack.c.b16 %v3342, %v3341
    %v3346 = vpack.c.b16 %v3344, %v3343
    %v3350 = vsel %vm3175, %v3329, 0
    %v3353 = vsel %vm3175, %v3330, 0
    %v3356 = vsel %vm3175, %v3331, 0
    %v3359 = vsel %vm3175, %v3332, 0
    %v3362 = vsel %vm3175, %v3333, 0
    %v3365 = vsel %vm3175, %v3334, 0
    %v3368 = vsel %vm3175, %v3335, 0
    %v3371 = vsel %vm3175, %v3336, 0
    %3373 = vmatprep.subr.bf16.mxu0 0
    %3374 = vmatpush1.bf16.msra.mxu0 %v3345
    %3375 = vmatprep.subr.bf16.mxu0 0
    %3376 = vmatpush1.bf16.msra.mxu0 %v3346
    %3377 = vmatprep.subr.bf16.mxu0 0
    %3378 = vmatpush1.bf16.msra.mxu0 0
    %3379 = vmatprep.subr.bf16.mxu0 0
    %3380 = vmatpush1.bf16.msra.mxu0 0
    %3381 = vmatprep.subr.bf16.mxu0 0
    %3382 = vmatpush1.bf16.msra.mxu0 0
    %3383 = vmatprep.subr.bf16.mxu0 0
    %3384 = vmatpush1.bf16.msra.mxu0 0
    %3385 = vmatprep.subr.bf16.mxu0 0
    %3386 = vmatpush1.bf16.msra.mxu0 0
    %3387 = vmatprep.subr.bf16.mxu0 0
    %3388 = vmatpush1.bf16.msra.mxu0 0
    %3389 = vmatprep.subr.bf16.mxu0 0
    %3390 = vmatpush1.bf16.msra.mxu0 0
    %3391 = vmatprep.subr.bf16.mxu0 0
    %3392 = vmatpush1.bf16.msra.mxu0 0
    %3393 = vmatprep.subr.bf16.mxu0 0
    %3394 = vmatpush1.bf16.msra.mxu0 0
    %3395 = vmatprep.subr.bf16.mxu0 0
    %3396 = vmatpush1.bf16.msra.mxu0 0
    %3397 = vmatprep.subr.bf16.mxu0 0
    %3398 = vmatpush1.bf16.msra.mxu0 0
    %3399 = vmatprep.subr.bf16.mxu0 0
    %3400 = vmatpush1.bf16.msra.mxu0 0
    %3401 = vmatprep.subr.bf16.mxu0 0
    %3402 = vmatpush1.bf16.msra.mxu0 0
    %3403 = vmatprep.subr.bf16.mxu0 0
    %3404 = vmatpush1.bf16.msra.mxu0 0
    %3405 = vmatprep.mubr.bf16.mxu0 0
    %3406 = vmatmul.mubr.bf16.gmra.mrb[0].mxu0 %v3350
    %v3407 = vpop.f32.mrb[0].mxu0
    %v3408 = vadd.f32 %v3235, %v3407
    %v3409 = vpop.f32.mrb[0].mxu0
    %v3410 = vpop.f32.mrb[0].mxu0
    %v3411 = vadd.f32 %v3238, %v3410
    %v3412 = vpop.f32.mrb[0].mxu0
    %3413 = vmatprep.mubr.bf16.mxu0 0
    %3414 = vmatmul.mubr.bf16.gmra.mrb[0].mxu0 %v3353
    %v3415 = vpop.f32.mrb[0].mxu0
    %v3416 = vadd.f32 %v3243, %v3415
    %v3417 = vpop.f32.mrb[0].mxu0
    %v3418 = vpop.f32.mrb[0].mxu0
    %v3419 = vadd.f32 %v3246, %v3418
    %v3420 = vpop.f32.mrb[0].mxu0
    %3421 = vmatprep.mubr.bf16.mxu0 0
    %3422 = vmatmul.mubr.bf16.gmra.mrb[0].mxu0 %v3356
    %v3423 = vpop.f32.mrb[0].mxu0
    %v3424 = vadd.f32 %v3251, %v3423
    %v3425 = vpop.f32.mrb[0].mxu0
    %v3426 = vpop.f32.mrb[0].mxu0
    %v3427 = vadd.f32 %v3254, %v3426
    %v3428 = vpop.f32.mrb[0].mxu0
    %3429 = vmatprep.mubr.bf16.mxu0 0
    %3430 = vmatmul.mubr.bf16.gmra.mrb[0].mxu0 %v3359
    %v3431 = vpop.f32.mrb[0].mxu0
    %v3432 = vadd.f32 %v3259, %v3431
    %v3433 = vpop.f32.mrb[0].mxu0
    %v3434 = vpop.f32.mrb[0].mxu0
    %v3435 = vadd.f32 %v3262, %v3434
    %v3436 = vpop.f32.mrb[0].mxu0
    %3437 = vmatprep.mubr.bf16.mxu0 0
    %3438 = vmatmul.mubr.bf16.gmra.mrb[0].mxu0 %v3362
    %v3439 = vpop.f32.mrb[0].mxu0
    %v3440 = vadd.f32 %v3267, %v3439
    %v3441 = vpop.f32.mrb[0].mxu0
    %v3442 = vpop.f32.mrb[0].mxu0
    %v3443 = vadd.f32 %v3270, %v3442
    %v3444 = vpop.f32.mrb[0].mxu0
    %3445 = vmatprep.mubr.bf16.mxu0 0
    %3446 = vmatmul.mubr.bf16.gmra.mrb[0].mxu0 %v3365
    %v3447 = vpop.f32.mrb[0].mxu0
    %v3448 = vadd.f32 %v3275, %v3447
    %v3449 = vpop.f32.mrb[0].mxu0
    %v3450 = vpop.f32.mrb[0].mxu0
    %v3451 = vadd.f32 %v3278, %v3450
    %v3452 = vpop.f32.mrb[0].mxu0
    %3453 = vmatprep.mubr.bf16.mxu0 0
    %3454 = vmatmul.mubr.bf16.gmra.mrb[0].mxu0 %v3368
    %v3455 = vpop.f32.mrb[0].mxu0
    %v3456 = vadd.f32 %v3283, %v3455
    %v3457 = vpop.f32.mrb[0].mxu0
    %v3458 = vpop.f32.mrb[0].mxu0
    %v3459 = vadd.f32 %v3286, %v3458
    %v3460 = vpop.f32.mrb[0].mxu0
    %3461 = vmatprep.mubr.bf16.mxu0 0
    %3462 = vmatmul.mubr.bf16.gmra.mrb[0].mxu0 %v3371
    %v3463 = vpop.f32.mrb[0].mxu0
    %v3464 = vadd.f32 %v3291, %v3463
    %v3465 = vpop.f32.mrb[0].mxu0
    %v3466 = vpop.f32.mrb[0].mxu0
    %v3467 = vadd.f32 %v3294, %v3466
    %v3468 = vpop.f32.mrb[0].mxu0
    %3469 = vdwg.mxu0
    %v3470 = vld [vmem:[#allocation2] sm:$0xe]
    %v3471 = vld [vmem:[#allocation2 + $0x8] sm:$0xe]
    %v3472 = vld [vmem:[#allocation2 + $0x10] sm:$0xe]
    %v3473 = vld [vmem:[#allocation2 + $0x18] sm:$0xe]
    %v3474 = vld [vmem:[#allocation2 + $0x20] sm:$0xe]
    %v3475 = vld [vmem:[#allocation2 + $0x28] sm:$0xe]
    %v3476 = vld [vmem:[#allocation2 + $0x30] sm:$0xe]
    %v3477 = vld [vmem:[#allocation2 + $0x38] sm:$0xe]
    %v3478 = vld [vmem:[#allocation2 + $0x50] sm:$0xe]
    %v3479 = vld [vmem:[#allocation2 + $0x58] sm:$0xe]
    %v3480 = vld [vmem:[#allocation2 + $0x60] sm:$0xe]
    %v3481 = vld [vmem:[#allocation2 + $0x68] sm:$0xe]
    %v3482 = vld [vmem:[#allocation2 + $0x70] sm:$0xe]
    %v3483 = vld [vmem:[#allocation2 + $0x78] sm:$0xe]
    %v3484 = vld [vmem:[#allocation2 + $0x80] sm:$0xe]
    %v3485 = vld [vmem:[#allocation2 + $0x88] sm:$0xe]
    %vm3518 = vcmask 1042432
    %vm3519 = vcmask 1046532
    %vm3520 = vmor %vm3518, %vm3519
    %v3521 = vrot.slane %v3470, 5
    %v3522 = vrot.slane %v3521, 4
    %v3523 = vrot.slane %v2895, 5
    %v3524 = vsel %vm3520, %v3522, %v3523
    %v3525 = vrot.slane %v3471, 5
    %v3526 = vrot.slane %v3525, 4
    %v3527 = vrot.slane %v2896, 5
    %v3528 = vsel %vm3520, %v3526, %v3527
    %v3529 = vrot.slane %v3472, 5
    %v3530 = vrot.slane %v3529, 4
    %v3531 = vrot.slane %v2897, 5
    %v3532 = vsel %vm3520, %v3530, %v3531
    %v3533 = vrot.slane %v3473, 5
    %v3534 = vrot.slane %v3533, 4
    %v3535 = vrot.slane %v2898, 5
    %v3536 = vsel %vm3520, %v3534, %v3535
    %v3537 = vrot.slane %v3474, 5
    %v3538 = vrot.slane %v3537, 4
    %v3539 = vrot.slane %v2899, 5
    %v3540 = vsel %vm3520, %v3538, %v3539
    %v3541 = vrot.slane %v3475, 5
    %v3542 = vrot.slane %v3541, 4
    %v3543 = vrot.slane %v2900, 5
    %v3544 = vsel %vm3520, %v3542, %v3543
    %v3545 = vrot.slane %v3476, 5
    %v3546 = vrot.slane %v3545, 4
    %v3547 = vrot.slane %v2901, 5
    %v3548 = vsel %vm3520, %v3546, %v3547
    %v3549 = vrot.slane %v3477, 5
    %v3550 = vrot.slane %v3549, 4
    %v3551 = vrot.slane %v2902, 5
    %v3552 = vsel %vm3520, %v3550, %v3551
    %v3553 = vrot.slane %v3478, 5
    %v3554 = vrot.slane %v3553, 4
    %v3555 = vrot.slane %v2903, 5
    %v3556 = vsel %vm3520, %v3554, %v3555
    %v3557 = vrot.slane %v3479, 5
    %v3558 = vrot.slane %v3557, 4
    %v3559 = vrot.slane %v2904, 5
    %v3560 = vsel %vm3520, %v3558, %v3559
    %v3561 = vrot.slane %v3480, 5
    %v3562 = vrot.slane %v3561, 4
    %v3563 = vrot.slane %v2905, 5
    %v3564 = vsel %vm3520, %v3562, %v3563
    %v3565 = vrot.slane %v3481, 5
    %v3566 = vrot.slane %v3565, 4
    %v3567 = vrot.slane %v2906, 5
    %v3568 = vsel %vm3520, %v3566, %v3567
    %v3569 = vrot.slane %v3482, 5
    %v3570 = vrot.slane %v3569, 4
    %v3571 = vrot.slane %v2907, 5
    %v3572 = vsel %vm3520, %v3570, %v3571
    %v3573 = vrot.slane %v3483, 5
    %v3574 = vrot.slane %v3573, 4
    %v3575 = vrot.slane %v2908, 5
    %v3576 = vsel %vm3520, %v3574, %v3575
    %v3577 = vrot.slane %v3484, 5
    %v3578 = vrot.slane %v3577, 4
    %v3579 = vrot.slane %v2909, 5
    %v3580 = vsel %vm3520, %v3578, %v3579
    %v3581 = vrot.slane %v3485, 5
    %v3582 = vrot.slane %v3581, 4
    %v3583 = vrot.slane %v2910, 5
    %v3584 = vsel %vm3520, %v3582, %v3583
    %v3585 = vld [vmem:[%s3 + $0x20] sm:$0xf]
    %v3586 = vld [vmem:[%s3 + $0x24] sm:$0xf]
    %v3587 = vld [vmem:[%s3 + $0x28] sm:$0xf]
    %v3588 = vld [vmem:[%s3 + $0x2c] sm:$0xf]
    %v3589 = vunpack.c.l.b16 %v3524
    %v3590 = vunpack.c.l.b16 %v3528
    %v3591 = vunpack.c.l.b16 %v3532
    %v3592 = vunpack.c.l.b16 %v3536
    %v3593 = vunpack.c.l.b16 %v3540
    %v3594 = vunpack.c.l.b16 %v3544
    %v3595 = vunpack.c.l.b16 %v3548
    %v3596 = vunpack.c.l.b16 %v3552
    %v3597 = vunpack.c.l.b16 %v3556
    %v3598 = vunpack.c.l.b16 %v3560
    %v3599 = vunpack.c.l.b16 %v3564
    %v3600 = vunpack.c.l.b16 %v3568
    %v3601 = vunpack.c.l.b16 %v3572
    %v3602 = vunpack.c.l.b16 %v3576
    %v3603 = vunpack.c.l.b16 %v3580
    %v3604 = vunpack.c.l.b16 %v3584
    %v3605 = vpack.c.b16 %v3590, %v3589
    %v3606 = vpack.c.b16 %v3592, %v3591
    %v3607 = vpack.c.b16 %v3594, %v3593
    %v3608 = vpack.c.b16 %v3596, %v3595
    %v3609 = vpack.c.b16 %v3598, %v3597
    %v3610 = vpack.c.b16 %v3600, %v3599
    %v3611 = vpack.c.b16 %v3602, %v3601
    %v3612 = vpack.c.b16 %v3604, %v3603
    %v3617 = vunpack.c.l.b16 %v3585
    %v3618 = vunpack.c.l.b16 %v3586
    %v3619 = vunpack.c.l.b16 %v3587
    %v3620 = vunpack.c.l.b16 %v3588
    %v3621 = vpack.c.b16 %v3618, %v3617
    %v3622 = vpack.c.b16 %v3620, %v3619
    %v3626 = vsel %vm3175, %v3605, 0
    %v3629 = vsel %vm3175, %v3606, 0
    %v3632 = vsel %vm3175, %v3607, 0
    %v3635 = vsel %vm3175, %v3608, 0
    %v3638 = vsel %vm3175, %v3609, 0
    %v3641 = vsel %vm3175, %v3610, 0
    %v3644 = vsel %vm3175, %v3611, 0
    %v3647 = vsel %vm3175, %v3612, 0
    %3649 = vmatprep.subr.bf16.mxu0 0
    %3650 = vmatpush1.bf16.msra.mxu0 %v3621
    %3651 = vmatprep.subr.bf16.mxu0 0
    %3652 = vmatpush1.bf16.msra.mxu0 %v3622
    %3653 = vmatprep.subr.bf16.mxu0 0
    %3654 = vmatpush1.bf16.msra.mxu0 0
    %3655 = vmatprep.subr.bf16.mxu0 0
    %3656 = vmatpush1.bf16.msra.mxu0 0
    %3657 = vmatprep.subr.bf16.mxu0 0
    %3658 = vmatpush1.bf16.msra.mxu0 0
    %3659 = vmatprep.subr.bf16.mxu0 0
    %3660 = vmatpush1.bf16.msra.mxu0 0
    %3661 = vmatprep.subr.bf16.mxu0 0
    %3662 = vmatpush1.bf16.msra.mxu0 0
    %3663 = vmatprep.subr.bf16.mxu0 0
    %3664 = vmatpush1.bf16.msra.mxu0 0
    %3665 = vmatprep.subr.bf16.mxu0 0
    %3666 = vmatpush1.bf16.msra.mxu0 0
    %3667 = vmatprep.subr.bf16.mxu0 0
    %3668 = vmatpush1.bf16.msra.mxu0 0
    %3669 = vmatprep.subr.bf16.mxu0 0
    %3670 = vmatpush1.bf16.msra.mxu0 0
    %3671 = vmatprep.subr.bf16.mxu0 0
    %3672 = vmatpush1.bf16.msra.mxu0 0
    %3673 = vmatprep.subr.bf16.mxu0 0
    %3674 = vmatpush1.bf16.msra.mxu0 0
    %3675 = vmatprep.subr.bf16.mxu0 0
    %3676 = vmatpush1.bf16.msra.mxu0 0
    %3677 = vmatprep.subr.bf16.mxu0 0
    %3678 = vmatpush1.bf16.msra.mxu0 0
    %3679 = vmatprep.subr.bf16.mxu0 0
    %3680 = vmatpush1.bf16.msra.mxu0 0
    %3681 = vmatprep.mubr.bf16.mxu0 0
    %3682 = vmatmul.mubr.bf16.gmra.mrb[0].mxu0 %v3626
    %v3683 = vpop.f32.mrb[0].mxu0
    %v3684 = vadd.f32 0.0, %v3683
    %v3685 = vpop.f32.mrb[0].mxu0
    %v3686 = vpop.f32.mrb[0].mxu0
    %v3687 = vadd.f32 0.0, %v3686
    %v3688 = vpop.f32.mrb[0].mxu0
    %3689 = vmatprep.mubr.bf16.mxu0 0
    %3690 = vmatmul.mubr.bf16.gmra.mrb[0].mxu0 %v3629
    %v3691 = vpop.f32.mrb[0].mxu0
    %v3692 = vadd.f32 0.0, %v3691
    %v3693 = vpop.f32.mrb[0].mxu0
    %v3694 = vpop.f32.mrb[0].mxu0
    %v3695 = vadd.f32 0.0, %v3694
    %v3696 = vpop.f32.mrb[0].mxu0
    %3697 = vmatprep.mubr.bf16.mxu0 0
    %3698 = vmatmul.mubr.bf16.gmra.mrb[0].mxu0 %v3632
    %v3699 = vpop.f32.mrb[0].mxu0
    %v3700 = vadd.f32 0.0, %v3699
    %v3701 = vpop.f32.mrb[0].mxu0
    %v3702 = vpop.f32.mrb[0].mxu0
    %v3703 = vadd.f32 0.0, %v3702
    %v3704 = vpop.f32.mrb[0].mxu0
    %3705 = vmatprep.mubr.bf16.mxu0 0
    %3706 = vmatmul.mubr.bf16.gmra.mrb[0].mxu0 %v3635
    %v3707 = vpop.f32.mrb[0].mxu0
    %v3708 = vadd.f32 0.0, %v3707
    %v3709 = vpop.f32.mrb[0].mxu0
    %v3710 = vpop.f32.mrb[0].mxu0
    %v3711 = vadd.f32 0.0, %v3710
    %v3712 = vpop.f32.mrb[0].mxu0
    %3713 = vmatprep.mubr.bf16.mxu0 0
    %3714 = vmatmul.mubr.bf16.gmra.mrb[0].mxu0 %v3638
    %v3715 = vpop.f32.mrb[0].mxu0
    %v3716 = vadd.f32 0.0, %v3715
    %v3717 = vpop.f32.mrb[0].mxu0
    %v3718 = vpop.f32.mrb[0].mxu0
    %v3719 = vadd.f32 0.0, %v3718
    %v3720 = vpop.f32.mrb[0].mxu0
    %3721 = vmatprep.mubr.bf16.mxu0 0
    %3722 = vmatmul.mubr.bf16.gmra.mrb[0].mxu0 %v3641
    %v3723 = vpop.f32.mrb[0].mxu0
    %v3724 = vadd.f32 0.0, %v3723
    %v3725 = vpop.f32.mrb[0].mxu0
    %v3726 = vpop.f32.mrb[0].mxu0
    %v3727 = vadd.f32 0.0, %v3726
    %v3728 = vpop.f32.mrb[0].mxu0
    %3729 = vmatprep.mubr.bf16.mxu0 0
    %3730 = vmatmul.mubr.bf16.gmra.mrb[0].mxu0 %v3644
    %v3731 = vpop.f32.mrb[0].mxu0
    %v3732 = vadd.f32 0.0, %v3731
    %v3733 = vpop.f32.mrb[0].mxu0
    %v3734 = vpop.f32.mrb[0].mxu0
    %v3735 = vadd.f32 0.0, %v3734
    %v3736 = vpop.f32.mrb[0].mxu0
    %3737 = vmatprep.mubr.bf16.mxu0 0
    %3738 = vmatmul.mubr.bf16.gmra.mrb[0].mxu0 %v3647
    %v3739 = vpop.f32.mrb[0].mxu0
    %v3740 = vadd.f32 0.0, %v3739
    %v3741 = vpop.f32.mrb[0].mxu0
    %v3742 = vpop.f32.mrb[0].mxu0
    %v3743 = vadd.f32 0.0, %v3742
    %v3744 = vpop.f32.mrb[0].mxu0
    %3745 = vdwg.mxu0
    %v3746 = vadd.f32 %v3408, %v3684
    %v3747 = vadd.f32 %v3411, %v3687
    %v3748 = vadd.f32 %v3416, %v3692
    %v3749 = vadd.f32 %v3419, %v3695
    %v3750 = vadd.f32 %v3424, %v3700
    %v3751 = vadd.f32 %v3427, %v3703
    %v3752 = vadd.f32 %v3432, %v3708
    %v3753 = vadd.f32 %v3435, %v3711
    %v3754 = vadd.f32 %v3440, %v3716
    %v3755 = vadd.f32 %v3443, %v3719
    %v3756 = vadd.f32 %v3448, %v3724
    %v3757 = vadd.f32 %v3451, %v3727
    %v3758 = vadd.f32 %v3456, %v3732
    %v3759 = vadd.f32 %v3459, %v3735
    %v3760 = vadd.f32 %v3464, %v3740
    %v3761 = vadd.f32 %v3467, %v3743
    %v3762 = vld [vmem:[%s2772] sm:$0xf]
    %v3763 = vld [vmem:[%s2772 + $0x8] sm:$0xf]
    %v3764 = vld [vmem:[%s2772 + $0x10] sm:$0xf]
    %v3765 = vld [vmem:[%s2772 + $0x18] sm:$0xf]
    %v3766 = vld [vmem:[%s2772 + $0x20] sm:$0xf]
    %v3767 = vld [vmem:[%s2772 + $0x28] sm:$0xf]
    %v3768 = vld [vmem:[%s2772 + $0x30] sm:$0xf]
    %v3769 = vld [vmem:[%s2772 + $0x38] sm:$0xf]
    %v3770 = vld [vmem:[%s2772 + $0x50] sm:$0xf]
    %v3771 = vld [vmem:[%s2772 + $0x58] sm:$0xf]
    %v3772 = vld [vmem:[%s2772 + $0x60] sm:$0xf]
    %v3773 = vld [vmem:[%s2772 + $0x68] sm:$0xf]
    %v3774 = vld [vmem:[%s2772 + $0x70] sm:$0xf]
    %v3775 = vld [vmem:[%s2772 + $0x78] sm:$0xf]
    %v3776 = vld [vmem:[%s2772 + $0x80] sm:$0xf]
    %v3777 = vld [vmem:[%s2772 + $0x88] sm:$0xf]
    %v3778 = vld [vmem:[%s3 + $0x30] sm:$0xf]
    %v3779 = vld [vmem:[%s3 + $0x34] sm:$0xf]
    %v3780 = vld [vmem:[%s3 + $0x38] sm:$0xf]
    %v3781 = vld [vmem:[%s3 + $0x3c] sm:$0xf]
    %v3798 = vunpack.c.l.b16 %v3762
    %v3799 = vunpack.c.l.b16 %v3763
    %v3800 = vunpack.c.l.b16 %v3764
    %v3801 = vunpack.c.l.b16 %v3765
    %v3802 = vunpack.c.l.b16 %v3766
    %v3803 = vunpack.c.l.b16 %v3767
    %v3804 = vunpack.c.l.b16 %v3768
    %v3805 = vunpack.c.l.b16 %v3769
    %v3806 = vunpack.c.l.b16 %v3770
    %v3807 = vunpack.c.l.b16 %v3771
    %v3808 = vunpack.c.l.b16 %v3772
    %v3809 = vunpack.c.l.b16 %v3773
    %v3810 = vunpack.c.l.b16 %v3774
    %v3811 = vunpack.c.l.b16 %v3775
    %v3812 = vunpack.c.l.b16 %v3776
    %v3813 = vunpack.c.l.b16 %v3777
    %v3814 = vpack.c.b16 %v3799, %v3798
    %v3815 = vpack.c.b16 %v3801, %v3800
    %v3816 = vpack.c.b16 %v3803, %v3802
    %v3817 = vpack.c.b16 %v3805, %v3804
    %v3818 = vpack.c.b16 %v3807, %v3806
    %v3819 = vpack.c.b16 %v3809, %v3808
    %v3820 = vpack.c.b16 %v3811, %v3810
    %v3821 = vpack.c.b16 %v3813, %v3812
    %v3826 = vunpack.c.l.b16 %v3778
    %v3827 = vunpack.c.l.b16 %v3779
    %v3828 = vunpack.c.l.b16 %v3780
    %v3829 = vunpack.c.l.b16 %v3781
    %v3830 = vpack.c.b16 %v3827, %v3826
    %v3831 = vpack.c.b16 %v3829, %v3828
    %v3835 = vsel %vm3175, %v3814, 0
    %v3838 = vsel %vm3175, %v3815, 0
    %v3841 = vsel %vm3175, %v3816, 0
    %v3844 = vsel %vm3175, %v3817, 0
    %v3847 = vsel %vm3175, %v3818, 0
    %v3850 = vsel %vm3175, %v3819, 0
    %v3853 = vsel %vm3175, %v3820, 0
    %v3856 = vsel %vm3175, %v3821, 0
    %3858 = vmatprep.subr.bf16.mxu0 0
    %3859 = vmatpush1.bf16.msra.mxu0 %v3830
    %3860 = vmatprep.subr.bf16.mxu0 0
    %3861 = vmatpush1.bf16.msra.mxu0 %v3831
    %3862 = vmatprep.subr.bf16.mxu0 0
    %3863 = vmatpush1.bf16.msra.mxu0 0
    %3864 = vmatprep.subr.bf16.mxu0 0
    %3865 = vmatpush1.bf16.msra.mxu0 0
    %3866 = vmatprep.subr.bf16.mxu0 0
    %3867 = vmatpush1.bf16.msra.mxu0 0
    %3868 = vmatprep.subr.bf16.mxu0 0
    %3869 = vmatpush1.bf16.msra.mxu0 0
    %3870 = vmatprep.subr.bf16.mxu0 0
    %3871 = vmatpush1.bf16.msra.mxu0 0
    %3872 = vmatprep.subr.bf16.mxu0 0
    %3873 = vmatpush1.bf16.msra.mxu0 0
    %3874 = vmatprep.subr.bf16.mxu0 0
    %3875 = vmatpush1.bf16.msra.mxu0 0
    %3876 = vmatprep.subr.bf16.mxu0 0
    %3877 = vmatpush1.bf16.msra.mxu0 0
    %3878 = vmatprep.subr.bf16.mxu0 0
    %3879 = vmatpush1.bf16.msra.mxu0 0
    %3880 = vmatprep.subr.bf16.mxu0 0
    %3881 = vmatpush1.bf16.msra.mxu0 0
    %3882 = vmatprep.subr.bf16.mxu0 0
    %3883 = vmatpush1.bf16.msra.mxu0 0
    %3884 = vmatprep.subr.bf16.mxu0 0
    %3885 = vmatpush1.bf16.msra.mxu0 0
    %3886 = vmatprep.subr.bf16.mxu0 0
    %3887 = vmatpush1.bf16.msra.mxu0 0
    %3888 = vmatprep.subr.bf16.mxu0 0
    %3889 = vmatpush1.bf16.msra.mxu0 0
    %3890 = vmatprep.mubr.bf16.mxu0 0
    %3891 = vmatmul.mubr.bf16.gmra.mrb[0].mxu0 %v3835
    %v3892 = vpop.f32.mrb[0].mxu0
    %v3893 = vadd.f32 0.0, %v3892
    %v3894 = vpop.f32.mrb[0].mxu0
    %v3895 = vpop.f32.mrb[0].mxu0
    %v3896 = vadd.f32 0.0, %v3895
    %v3897 = vpop.f32.mrb[0].mxu0
    %3898 = vmatprep.mubr.bf16.mxu0 0
    %3899 = vmatmul.mubr.bf16.gmra.mrb[0].mxu0 %v3838
    %v3900 = vpop.f32.mrb[0].mxu0
    %v3901 = vadd.f32 0.0, %v3900
    %v3902 = vpop.f32.mrb[0].mxu0
    %v3903 = vpop.f32.mrb[0].mxu0
    %v3904 = vadd.f32 0.0, %v3903
    %v3905 = vpop.f32.mrb[0].mxu0
    %3906 = vmatprep.mubr.bf16.mxu0 0
    %3907 = vmatmul.mubr.bf16.gmra.mrb[0].mxu0 %v3841
    %v3908 = vpop.f32.mrb[0].mxu0
    %v3909 = vadd.f32 0.0, %v3908
    %v3910 = vpop.f32.mrb[0].mxu0
    %v3911 = vpop.f32.mrb[0].mxu0
    %v3912 = vadd.f32 0.0, %v3911
    %v3913 = vpop.f32.mrb[0].mxu0
    %3914 = vmatprep.mubr.bf16.mxu0 0
    %3915 = vmatmul.mubr.bf16.gmra.mrb[0].mxu0 %v3844
    %v3916 = vpop.f32.mrb[0].mxu0
    %v3917 = vadd.f32 0.0, %v3916
    %v3918 = vpop.f32.mrb[0].mxu0
    %v3919 = vpop.f32.mrb[0].mxu0
    %v3920 = vadd.f32 0.0, %v3919
    %v3921 = vpop.f32.mrb[0].mxu0
    %3922 = vmatprep.mubr.bf16.mxu0 0
    %3923 = vmatmul.mubr.bf16.gmra.mrb[0].mxu0 %v3847
    %v3924 = vpop.f32.mrb[0].mxu0
    %v3925 = vadd.f32 0.0, %v3924
    %v3926 = vpop.f32.mrb[0].mxu0
    %v3927 = vpop.f32.mrb[0].mxu0
    %v3928 = vadd.f32 0.0, %v3927
    %v3929 = vpop.f32.mrb[0].mxu0
    %3930 = vmatprep.mubr.bf16.mxu0 0
    %3931 = vmatmul.mubr.bf16.gmra.mrb[0].mxu0 %v3850
    %v3932 = vpop.f32.mrb[0].mxu0
    %v3933 = vadd.f32 0.0, %v3932
    %v3934 = vpop.f32.mrb[0].mxu0
    %v3935 = vpop.f32.mrb[0].mxu0
    %v3936 = vadd.f32 0.0, %v3935
    %v3937 = vpop.f32.mrb[0].mxu0
    %3938 = vmatprep.mubr.bf16.mxu0 0
    %3939 = vmatmul.mubr.bf16.gmra.mrb[0].mxu0 %v3853
    %v3940 = vpop.f32.mrb[0].mxu0
    %v3941 = vadd.f32 0.0, %v3940
    %v3942 = vpop.f32.mrb[0].mxu0
    %v3943 = vpop.f32.mrb[0].mxu0
    %v3944 = vadd.f32 0.0, %v3943
    %v3945 = vpop.f32.mrb[0].mxu0
    %3946 = vmatprep.mubr.bf16.mxu0 0
    %3947 = vmatmul.mubr.bf16.gmra.mrb[0].mxu0 %v3856
    %v3948 = vpop.f32.mrb[0].mxu0
    %v3949 = vadd.f32 0.0, %v3948
    %v3950 = vpop.f32.mrb[0].mxu0
    %v3951 = vpop.f32.mrb[0].mxu0
    %v3952 = vadd.f32 0.0, %v3951
    %v3953 = vpop.f32.mrb[0].mxu0
    %3954 = vdwg.mxu0
    %v3955 = vadd.f32 %v3746, %v3893
    %v3956 = vadd.f32 %v3747, %v3896
    %v3957 = vadd.f32 %v3748, %v3901
    %v3958 = vadd.f32 %v3749, %v3904
    %v3959 = vadd.f32 %v3750, %v3909
    %v3960 = vadd.f32 %v3751, %v3912
    %v3961 = vadd.f32 %v3752, %v3917
    %v3962 = vadd.f32 %v3753, %v3920
    %v3963 = vadd.f32 %v3754, %v3925
    %v3964 = vadd.f32 %v3755, %v3928
    %v3965 = vadd.f32 %v3756, %v3933
    %v3966 = vadd.f32 %v3757, %v3936
    %v3967 = vadd.f32 %v3758, %v3941
    %v3968 = vadd.f32 %v3759, %v3944
    %v3969 = vadd.f32 %v3760, %v3949
    %v3970 = vadd.f32 %v3761, %v3952
    %v3971 = vld [vmem:[%s2772] sm:$0xf]
    %v3972 = vld [vmem:[%s2772 + $0x4] sm:$0x1]
    %v3973 = vld [vmem:[%s2772 + $0x8] sm:$0xf]
    %v3974 = vld [vmem:[%s2772 + $0xc] sm:$0x1]
    %v3975 = vld [vmem:[%s2772 + $0x10] sm:$0xf]
    %v3976 = vld [vmem:[%s2772 + $0x14] sm:$0x1]
    %v3977 = vld [vmem:[%s2772 + $0x18] sm:$0xf]
    %v3978 = vld [vmem:[%s2772 + $0x1c] sm:$0x1]
    %v3979 = vld [vmem:[%s2772 + $0x20] sm:$0xf]
    %v3980 = vld [vmem:[%s2772 + $0x24] sm:$0x1]
    %v3981 = vld [vmem:[%s2772 + $0x28] sm:$0xf]
    %v3982 = vld [vmem:[%s2772 + $0x2c] sm:$0x1]
    %v3983 = vld [vmem:[%s2772 + $0x30] sm:$0xf]
    %v3984 = vld [vmem:[%s2772 + $0x34] sm:$0x1]
    %v3985 = vld [vmem:[%s2772 + $0x38] sm:$0xf]
    %v3986 = vld [vmem:[%s2772 + $0x3c] sm:$0x1]
    %v3987 = vld [vmem:[%s2772 + $0x50] sm:$0xf]
    %v3988 = vld [vmem:[%s2772 + $0x54] sm:$0x1]
    %v3989 = vld [vmem:[%s2772 + $0x58] sm:$0xf]
    %v3990 = vld [vmem:[%s2772 + $0x5c] sm:$0x1]
    %v3991 = vld [vmem:[%s2772 + $0x60] sm:$0xf]
    %v3992 = vld [vmem:[%s2772 + $0x64] sm:$0x1]
    %v3993 = vld [vmem:[%s2772 + $0x68] sm:$0xf]
    %v3994 = vld [vmem:[%s2772 + $0x6c] sm:$0x1]
    %v3995 = vld [vmem:[%s2772 + $0x70] sm:$0xf]
    %v3996 = vld [vmem:[%s2772 + $0x74] sm:$0x1]
    %v3997 = vld [vmem:[%s2772 + $0x78] sm:$0xf]
    %v3998 = vld [vmem:[%s2772 + $0x7c] sm:$0x1]
    %v3999 = vld [vmem:[%s2772 + $0x80] sm:$0xf]
    %v4000 = vld [vmem:[%s2772 + $0x84] sm:$0x1]
    %v4001 = vld [vmem:[%s2772 + $0x88] sm:$0xf]
    %v4002 = vld [vmem:[%s2772 + $0x8c] sm:$0x1]
    %v4004 = vshrl.u32 %v3971, 16
    %v4006 = vrot.slane %v4004, 4
    %v4007 = vshll.u32 %v3971, 16
    %v4009 = vrot.slane %v4007, 5
    %v4010 = vor.u32 %v4006, %v4009
    %v4011 = vrot.slane %v4010, 4
    %v4013 = vshll.u32 %v3972, 16
    %v4015 = vrot.slane %v4013, 5
    %v4016 = vsel %vm431, %v4011, %v4015
    %v4018 = vshrl.u32 %v3973, 16
    %v4020 = vrot.slane %v4018, 4
    %v4021 = vshll.u32 %v3973, 16
    %v4023 = vrot.slane %v4021, 5
    %v4024 = vor.u32 %v4020, %v4023
    %v4025 = vrot.slane %v4024, 4
    %v4027 = vshll.u32 %v3974, 16
    %v4029 = vrot.slane %v4027, 5
    %v4030 = vsel %vm431, %v4025, %v4029
    %v4032 = vshrl.u32 %v3975, 16
    %v4034 = vrot.slane %v4032, 4
    %v4035 = vshll.u32 %v3975, 16
    %v4037 = vrot.slane %v4035, 5
    %v4038 = vor.u32 %v4034, %v4037
    %v4039 = vrot.slane %v4038, 4
    %v4041 = vshll.u32 %v3976, 16
    %v4043 = vrot.slane %v4041, 5
    %v4044 = vsel %vm431, %v4039, %v4043
    %v4046 = vshrl.u32 %v3977, 16
    %v4048 = vrot.slane %v4046, 4
    %v4049 = vshll.u32 %v3977, 16
    %v4051 = vrot.slane %v4049, 5
    %v4052 = vor.u32 %v4048, %v4051
    %v4053 = vrot.slane %v4052, 4
    %v4055 = vshll.u32 %v3978, 16
    %v4057 = vrot.slane %v4055, 5
    %v4058 = vsel %vm431, %v4053, %v4057
    %v4060 = vshrl.u32 %v3979, 16
    %v4062 = vrot.slane %v4060, 4
    %v4063 = vshll.u32 %v3979, 16
    %v4065 = vrot.slane %v4063, 5
    %v4066 = vor.u32 %v4062, %v4065
    %v4067 = vrot.slane %v4066, 4
    %v4069 = vshll.u32 %v3980, 16
    %v4071 = vrot.slane %v4069, 5
    %v4072 = vsel %vm431, %v4067, %v4071
    %v4074 = vshrl.u32 %v3981, 16
    %v4076 = vrot.slane %v4074, 4
    %v4077 = vshll.u32 %v3981, 16
    %v4079 = vrot.slane %v4077, 5
    %v4080 = vor.u32 %v4076, %v4079
    %v4081 = vrot.slane %v4080, 4
    %v4083 = vshll.u32 %v3982, 16
    %v4085 = vrot.slane %v4083, 5
    %v4086 = vsel %vm431, %v4081, %v4085
    %v4088 = vshrl.u32 %v3983, 16
    %v4090 = vrot.slane %v4088, 4
    %v4091 = vshll.u32 %v3983, 16
    %v4093 = vrot.slane %v4091, 5
    %v4094 = vor.u32 %v4090, %v4093
    %v4095 = vrot.slane %v4094, 4
    %v4097 = vshll.u32 %v3984, 16
    %v4099 = vrot.slane %v4097, 5
    %v4100 = vsel %vm431, %v4095, %v4099
    %v4102 = vshrl.u32 %v3985, 16
    %v4104 = vrot.slane %v4102, 4
    %v4105 = vshll.u32 %v3985, 16
    %v4107 = vrot.slane %v4105, 5
    %v4108 = vor.u32 %v4104, %v4107
    %v4109 = vrot.slane %v4108, 4
    %v4111 = vshll.u32 %v3986, 16
    %v4113 = vrot.slane %v4111, 5
    %v4114 = vsel %vm431, %v4109, %v4113
    %v4116 = vshrl.u32 %v3987, 16
    %v4118 = vrot.slane %v4116, 4
    %v4119 = vshll.u32 %v3987, 16
    %v4121 = vrot.slane %v4119, 5
    %v4122 = vor.u32 %v4118, %v4121
    %v4123 = vrot.slane %v4122, 4
    %v4125 = vshll.u32 %v3988, 16
    %v4127 = vrot.slane %v4125, 5
    %v4128 = vsel %vm431, %v4123, %v4127
    %v4130 = vshrl.u32 %v3989, 16
    %v4132 = vrot.slane %v4130, 4
    %v4133 = vshll.u32 %v3989, 16
    %v4135 = vrot.slane %v4133, 5
    %v4136 = vor.u32 %v4132, %v4135
    %v4137 = vrot.slane %v4136, 4
    %v4139 = vshll.u32 %v3990, 16
    %v4141 = vrot.slane %v4139, 5
    %v4142 = vsel %vm431, %v4137, %v4141
    %v4144 = vshrl.u32 %v3991, 16
    %v4146 = vrot.slane %v4144, 4
    %v4147 = vshll.u32 %v3991, 16
    %v4149 = vrot.slane %v4147, 5
    %v4150 = vor.u32 %v4146, %v4149
    %v4151 = vrot.slane %v4150, 4
    %v4153 = vshll.u32 %v3992, 16
    %v4155 = vrot.slane %v4153, 5
    %v4156 = vsel %vm431, %v4151, %v4155
    %v4158 = vshrl.u32 %v3993, 16
    %v4160 = vrot.slane %v4158, 4
    %v4161 = vshll.u32 %v3993, 16
    %v4163 = vrot.slane %v4161, 5
    %v4164 = vor.u32 %v4160, %v4163
    %v4165 = vrot.slane %v4164, 4
    %v4167 = vshll.u32 %v3994, 16
    %v4169 = vrot.slane %v4167, 5
    %v4170 = vsel %vm431, %v4165, %v4169
    %v4172 = vshrl.u32 %v3995, 16
    %v4174 = vrot.slane %v4172, 4
    %v4175 = vshll.u32 %v3995, 16
    %v4177 = vrot.slane %v4175, 5
    %v4178 = vor.u32 %v4174, %v4177
    %v4179 = vrot.slane %v4178, 4
    %v4181 = vshll.u32 %v3996, 16
    %v4183 = vrot.slane %v4181, 5
    %v4184 = vsel %vm431, %v4179, %v4183
    %v4186 = vshrl.u32 %v3997, 16
    %v4188 = vrot.slane %v4186, 4
    %v4189 = vshll.u32 %v3997, 16
    %v4191 = vrot.slane %v4189, 5
    %v4192 = vor.u32 %v4188, %v4191
    %v4193 = vrot.slane %v4192, 4
    %v4195 = vshll.u32 %v3998, 16
    %v4197 = vrot.slane %v4195, 5
    %v4198 = vsel %vm431, %v4193, %v4197
    %v4200 = vshrl.u32 %v3999, 16
    %v4202 = vrot.slane %v4200, 4
    %v4203 = vshll.u32 %v3999, 16
    %v4205 = vrot.slane %v4203, 5
    %v4206 = vor.u32 %v4202, %v4205
    %v4207 = vrot.slane %v4206, 4
    %v4209 = vshll.u32 %v4000, 16
    %v4211 = vrot.slane %v4209, 5
    %v4212 = vsel %vm431, %v4207, %v4211
    %v4214 = vshrl.u32 %v4001, 16
    %v4216 = vrot.slane %v4214, 4
    %v4217 = vshll.u32 %v4001, 16
    %v4219 = vrot.slane %v4217, 5
    %v4220 = vor.u32 %v4216, %v4219
    %v4221 = vrot.slane %v4220, 4
    %v4223 = vshll.u32 %v4002, 16
    %v4225 = vrot.slane %v4223, 5
    %v4226 = vsel %vm431, %v4221, %v4225
    %v4227 = vld [vmem:[%s3 + $0x40] sm:$0xf]
    %v4228 = vld [vmem:[%s3 + $0x44] sm:$0xf]
    %v4229 = vld [vmem:[%s3 + $0x48] sm:$0xf]
    %v4230 = vld [vmem:[%s3 + $0x4c] sm:$0xf]
    %v4231 = vunpack.c.l.b16 %v4016
    %v4232 = vunpack.c.l.b16 %v4030
    %v4233 = vunpack.c.l.b16 %v4044
    %v4234 = vunpack.c.l.b16 %v4058
    %v4235 = vunpack.c.l.b16 %v4072
    %v4236 = vunpack.c.l.b16 %v4086
    %v4237 = vunpack.c.l.b16 %v4100
    %v4238 = vunpack.c.l.b16 %v4114
    %v4239 = vunpack.c.l.b16 %v4128
    %v4240 = vunpack.c.l.b16 %v4142
    %v4241 = vunpack.c.l.b16 %v4156
    %v4242 = vunpack.c.l.b16 %v4170
    %v4243 = vunpack.c.l.b16 %v4184
    %v4244 = vunpack.c.l.b16 %v4198
    %v4245 = vunpack.c.l.b16 %v4212
    %v4246 = vunpack.c.l.b16 %v4226
    %v4247 = vpack.c.b16 %v4232, %v4231
    %v4248 = vpack.c.b16 %v4234, %v4233
    %v4249 = vpack.c.b16 %v4236, %v4235
    %v4250 = vpack.c.b16 %v4238, %v4237
    %v4251 = vpack.c.b16 %v4240, %v4239
    %v4252 = vpack.c.b16 %v4242, %v4241
    %v4253 = vpack.c.b16 %v4244, %v4243
    %v4254 = vpack.c.b16 %v4246, %v4245
    %v4259 = vunpack.c.l.b16 %v4227
    %v4260 = vunpack.c.l.b16 %v4228
    %v4261 = vunpack.c.l.b16 %v4229
    %v4262 = vunpack.c.l.b16 %v4230
    %v4263 = vpack.c.b16 %v4260, %v4259
    %v4264 = vpack.c.b16 %v4262, %v4261
    %v4268 = vsel %vm3175, %v4247, 0
    %v4271 = vsel %vm3175, %v4248, 0
    %v4274 = vsel %vm3175, %v4249, 0
    %v4277 = vsel %vm3175, %v4250, 0
    %v4280 = vsel %vm3175, %v4251, 0
    %v4283 = vsel %vm3175, %v4252, 0
    %v4286 = vsel %vm3175, %v4253, 0
    %v4289 = vsel %vm3175, %v4254, 0
    %4291 = vmatprep.subr.bf16.mxu0 0
    %4292 = vmatpush1.bf16.msra.mxu0 %v4263
    %4293 = vmatprep.subr.bf16.mxu0 0
    %4294 = vmatpush1.bf16.msra.mxu0 %v4264
    %4295 = vmatprep.subr.bf16.mxu0 0
    %4296 = vmatpush1.bf16.msra.mxu0 0
    %4297 = vmatprep.subr.bf16.mxu0 0
    %4298 = vmatpush1.bf16.msra.mxu0 0
    %4299 = vmatprep.subr.bf16.mxu0 0
    %4300 = vmatpush1.bf16.msra.mxu0 0
    %4301 = vmatprep.subr.bf16.mxu0 0
    %4302 = vmatpush1.bf16.msra.mxu0 0
    %4303 = vmatprep.subr.bf16.mxu0 0
    %4304 = vmatpush1.bf16.msra.mxu0 0
    %4305 = vmatprep.subr.bf16.mxu0 0
    %4306 = vmatpush1.bf16.msra.mxu0 0
    %4307 = vmatprep.subr.bf16.mxu0 0
    %4308 = vmatpush1.bf16.msra.mxu0 0
    %4309 = vmatprep.subr.bf16.mxu0 0
    %4310 = vmatpush1.bf16.msra.mxu0 0
    %4311 = vmatprep.subr.bf16.mxu0 0
    %4312 = vmatpush1.bf16.msra.mxu0 0
    %4313 = vmatprep.subr.bf16.mxu0 0
    %4314 = vmatpush1.bf16.msra.mxu0 0
    %4315 = vmatprep.subr.bf16.mxu0 0
    %4316 = vmatpush1.bf16.msra.mxu0 0
    %4317 = vmatprep.subr.bf16.mxu0 0
    %4318 = vmatpush1.bf16.msra.mxu0 0
    %4319 = vmatprep.subr.bf16.mxu0 0
    %4320 = vmatpush1.bf16.msra.mxu0 0
    %4321 = vmatprep.subr.bf16.mxu0 0
    %4322 = vmatpush1.bf16.msra.mxu0 0
    %4323 = vmatprep.mubr.bf16.mxu0 0
    %4324 = vmatmul.mubr.bf16.gmra.mrb[0].mxu0 %v4268
    %v4325 = vpop.f32.mrb[0].mxu0
    %v4326 = vadd.f32 0.0, %v4325
    %v4327 = vpop.f32.mrb[0].mxu0
    %v4328 = vpop.f32.mrb[0].mxu0
    %v4329 = vadd.f32 0.0, %v4328
    %v4330 = vpop.f32.mrb[0].mxu0
    %4331 = vmatprep.mubr.bf16.mxu0 0
    %4332 = vmatmul.mubr.bf16.gmra.mrb[0].mxu0 %v4271
    %v4333 = vpop.f32.mrb[0].mxu0
    %v4334 = vadd.f32 0.0, %v4333
    %v4335 = vpop.f32.mrb[0].mxu0
    %v4336 = vpop.f32.mrb[0].mxu0
    %v4337 = vadd.f32 0.0, %v4336
    %v4338 = vpop.f32.mrb[0].mxu0
    %4339 = vmatprep.mubr.bf16.mxu0 0
    %4340 = vmatmul.mubr.bf16.gmra.mrb[0].mxu0 %v4274
    %v4341 = vpop.f32.mrb[0].mxu0
    %v4342 = vadd.f32 0.0, %v4341
    %v4343 = vpop.f32.mrb[0].mxu0
    %v4344 = vpop.f32.mrb[0].mxu0
    %v4345 = vadd.f32 0.0, %v4344
    %v4346 = vpop.f32.mrb[0].mxu0
    %4347 = vmatprep.mubr.bf16.mxu0 0
    %4348 = vmatmul.mubr.bf16.gmra.mrb[0].mxu0 %v4277
    %v4349 = vpop.f32.mrb[0].mxu0
    %v4350 = vadd.f32 0.0, %v4349
    %v4351 = vpop.f32.mrb[0].mxu0
    %v4352 = vpop.f32.mrb[0].mxu0
    %v4353 = vadd.f32 0.0, %v4352
    %v4354 = vpop.f32.mrb[0].mxu0
    %4355 = vmatprep.mubr.bf16.mxu0 0
    %4356 = vmatmul.mubr.bf16.gmra.mrb[0].mxu0 %v4280
    %v4357 = vpop.f32.mrb[0].mxu0
    %v4358 = vadd.f32 0.0, %v4357
    %v4359 = vpop.f32.mrb[0].mxu0
    %v4360 = vpop.f32.mrb[0].mxu0
    %v4361 = vadd.f32 0.0, %v4360
    %v4362 = vpop.f32.mrb[0].mxu0
    %4363 = vmatprep.mubr.bf16.mxu0 0
    %4364 = vmatmul.mubr.bf16.gmra.mrb[0].mxu0 %v4283
    %v4365 = vpop.f32.mrb[0].mxu0
    %v4366 = vadd.f32 0.0, %v4365
    %v4367 = vpop.f32.mrb[0].mxu0
    %v4368 = vpop.f32.mrb[0].mxu0
    %v4369 = vadd.f32 0.0, %v4368
    %v4370 = vpop.f32.mrb[0].mxu0
    %4371 = vmatprep.mubr.bf16.mxu0 0
    %4372 = vmatmul.mubr.bf16.gmra.mrb[0].mxu0 %v4286
    %v4373 = vpop.f32.mrb[0].mxu0
    %v4374 = vadd.f32 0.0, %v4373
    %v4375 = vpop.f32.mrb[0].mxu0
    %v4376 = vpop.f32.mrb[0].mxu0
    %v4377 = vadd.f32 0.0, %v4376
    %v4378 = vpop.f32.mrb[0].mxu0
    %4379 = vmatprep.mubr.bf16.mxu0 0
    %4380 = vmatmul.mubr.bf16.gmra.mrb[0].mxu0 %v4289
    %v4381 = vpop.f32.mrb[0].mxu0
    %v4382 = vadd.f32 0.0, %v4381
    %v4383 = vpop.f32.mrb[0].mxu0
    %v4384 = vpop.f32.mrb[0].mxu0
    %v4385 = vadd.f32 0.0, %v4384
    %v4386 = vpop.f32.mrb[0].mxu0
    %4387 = vdwg.mxu0
    %v4388 = vadd.f32 %v3955, %v4326
    %v4389 = vadd.f32 %v3956, %v4329
    %v4390 = vadd.f32 %v3957, %v4334
    %v4391 = vadd.f32 %v3958, %v4337
    %v4392 = vadd.f32 %v3959, %v4342
    %v4393 = vadd.f32 %v3960, %v4345
    %v4394 = vadd.f32 %v3961, %v4350
    %v4395 = vadd.f32 %v3962, %v4353
    %v4396 = vadd.f32 %v3963, %v4358
    %v4397 = vadd.f32 %v3964, %v4361
    %v4398 = vadd.f32 %v3965, %v4366
    %v4399 = vadd.f32 %v3966, %v4369
    %v4400 = vadd.f32 %v3967, %v4374
    %v4401 = vadd.f32 %v3968, %v4377
    %v4402 = vadd.f32 %v3969, %v4382
    %v4403 = vadd.f32 %v3970, %v4385
    %v4404 = vld [vmem:[%s2772] sm:$0xe]
    %v4405 = vld [vmem:[%s2772 + $0x8] sm:$0xe]
    %v4406 = vld [vmem:[%s2772 + $0x10] sm:$0xe]
    %v4407 = vld [vmem:[%s2772 + $0x18] sm:$0xe]
    %v4408 = vld [vmem:[%s2772 + $0x20] sm:$0xe]
    %v4409 = vld [vmem:[%s2772 + $0x28] sm:$0xe]
    %v4410 = vld [vmem:[%s2772 + $0x30] sm:$0xe]
    %v4411 = vld [vmem:[%s2772 + $0x38] sm:$0xe]
    %v4412 = vld [vmem:[%s2772 + $0x50] sm:$0xe]
    %v4413 = vld [vmem:[%s2772 + $0x58] sm:$0xe]
    %v4414 = vld [vmem:[%s2772 + $0x60] sm:$0xe]
    %v4415 = vld [vmem:[%s2772 + $0x68] sm:$0xe]
    %v4416 = vld [vmem:[%s2772 + $0x70] sm:$0xe]
    %v4417 = vld [vmem:[%s2772 + $0x78] sm:$0xe]
    %v4418 = vld [vmem:[%s2772 + $0x80] sm:$0xe]
    %v4419 = vld [vmem:[%s2772 + $0x88] sm:$0xe]
    %v4452 = vrot.slane %v4404, 5
    %v4453 = vrot.slane %v4452, 4
    %v4454 = vrot.slane %v3972, 5
    %v4455 = vsel %vm3520, %v4453, %v4454
    %v4456 = vrot.slane %v4405, 5
    %v4457 = vrot.slane %v4456, 4
    %v4458 = vrot.slane %v3974, 5
    %v4459 = vsel %vm3520, %v4457, %v4458
    %v4460 = vrot.slane %v4406, 5
    %v4461 = vrot.slane %v4460, 4
    %v4462 = vrot.slane %v3976, 5
    %v4463 = vsel %vm3520, %v4461, %v4462
    %v4464 = vrot.slane %v4407, 5
    %v4465 = vrot.slane %v4464, 4
    %v4466 = vrot.slane %v3978, 5
    %v4467 = vsel %vm3520, %v4465, %v4466
    %v4468 = vrot.slane %v4408, 5
    %v4469 = vrot.slane %v4468, 4
    %v4470 = vrot.slane %v3980, 5
    %v4471 = vsel %vm3520, %v4469, %v4470
    %v4472 = vrot.slane %v4409, 5
    %v4473 = vrot.slane %v4472, 4
    %v4474 = vrot.slane %v3982, 5
    %v4475 = vsel %vm3520, %v4473, %v4474
    %v4476 = vrot.slane %v4410, 5
    %v4477 = vrot.slane %v4476, 4
    %v4478 = vrot.slane %v3984, 5
    %v4479 = vsel %vm3520, %v4477, %v4478
    %v4480 = vrot.slane %v4411, 5
    %v4481 = vrot.slane %v4480, 4
    %v4482 = vrot.slane %v3986, 5
    %v4483 = vsel %vm3520, %v4481, %v4482
    %v4484 = vrot.slane %v4412, 5
    %v4485 = vrot.slane %v4484, 4
    %v4486 = vrot.slane %v3988, 5
    %v4487 = vsel %vm3520, %v4485, %v4486
    %v4488 = vrot.slane %v4413, 5
    %v4489 = vrot.slane %v4488, 4
    %v4490 = vrot.slane %v3990, 5
    %v4491 = vsel %vm3520, %v4489, %v4490
    %v4492 = vrot.slane %v4414, 5
    %v4493 = vrot.slane %v4492, 4
    %v4494 = vrot.slane %v3992, 5
    %v4495 = vsel %vm3520, %v4493, %v4494
    %v4496 = vrot.slane %v4415, 5
    %v4497 = vrot.slane %v4496, 4
    %v4498 = vrot.slane %v3994, 5
    %v4499 = vsel %vm3520, %v4497, %v4498
    %v4500 = vrot.slane %v4416, 5
    %v4501 = vrot.slane %v4500, 4
    %v4502 = vrot.slane %v3996, 5
    %v4503 = vsel %vm3520, %v4501, %v4502
    %v4504 = vrot.slane %v4417, 5
    %v4505 = vrot.slane %v4504, 4
    %v4506 = vrot.slane %v3998, 5
    %v4507 = vsel %vm3520, %v4505, %v4506
    %v4508 = vrot.slane %v4418, 5
    %v4509 = vrot.slane %v4508, 4
    %v4510 = vrot.slane %v4000, 5
    %v4511 = vsel %vm3520, %v4509, %v4510
    %v4512 = vrot.slane %v4419, 5
    %v4513 = vrot.slane %v4512, 4
    %v4514 = vrot.slane %v4002, 5
    %v4515 = vsel %vm3520, %v4513, %v4514
    %v4516 = vld [vmem:[%s3 + $0x50] sm:$0xf]
    %v4517 = vld [vmem:[%s3 + $0x54] sm:$0xf]
    %v4518 = vld [vmem:[%s3 + $0x58] sm:$0xf]
    %v4519 = vld [vmem:[%s3 + $0x5c] sm:$0xf]
    %v4520 = vunpack.c.l.b16 %v4455
    %v4521 = vunpack.c.l.b16 %v4459
    %v4522 = vunpack.c.l.b16 %v4463
    %v4523 = vunpack.c.l.b16 %v4467
    %v4524 = vunpack.c.l.b16 %v4471
    %v4525 = vunpack.c.l.b16 %v4475
    %v4526 = vunpack.c.l.b16 %v4479
    %v4527 = vunpack.c.l.b16 %v4483
    %v4528 = vunpack.c.l.b16 %v4487
    %v4529 = vunpack.c.l.b16 %v4491
    %v4530 = vunpack.c.l.b16 %v4495
    %v4531 = vunpack.c.l.b16 %v4499
    %v4532 = vunpack.c.l.b16 %v4503
    %v4533 = vunpack.c.l.b16 %v4507
    %v4534 = vunpack.c.l.b16 %v4511
    %v4535 = vunpack.c.l.b16 %v4515
    %v4536 = vpack.c.b16 %v4521, %v4520
    %v4537 = vpack.c.b16 %v4523, %v4522
    %v4538 = vpack.c.b16 %v4525, %v4524
    %v4539 = vpack.c.b16 %v4527, %v4526
    %v4540 = vpack.c.b16 %v4529, %v4528
    %v4541 = vpack.c.b16 %v4531, %v4530
    %v4542 = vpack.c.b16 %v4533, %v4532
    %v4543 = vpack.c.b16 %v4535, %v4534
    %v4548 = vunpack.c.l.b16 %v4516
    %v4549 = vunpack.c.l.b16 %v4517
    %v4550 = vunpack.c.l.b16 %v4518
    %v4551 = vunpack.c.l.b16 %v4519
    %v4552 = vpack.c.b16 %v4549, %v4548
    %v4553 = vpack.c.b16 %v4551, %v4550
    %v4557 = vsel %vm3175, %v4536, 0
    %v4560 = vsel %vm3175, %v4537, 0
    %v4563 = vsel %vm3175, %v4538, 0
    %v4566 = vsel %vm3175, %v4539, 0
    %v4569 = vsel %vm3175, %v4540, 0
    %v4572 = vsel %vm3175, %v4541, 0
    %v4575 = vsel %vm3175, %v4542, 0
    %v4578 = vsel %vm3175, %v4543, 0
    %4580 = vmatprep.subr.bf16.mxu0 0
    %4581 = vmatpush1.bf16.msra.mxu0 %v4552
    %4582 = vmatprep.subr.bf16.mxu0 0
    %4583 = vmatpush1.bf16.msra.mxu0 %v4553
    %4584 = vmatprep.subr.bf16.mxu0 0
    %4585 = vmatpush1.bf16.msra.mxu0 0
    %4586 = vmatprep.subr.bf16.mxu0 0
    %4587 = vmatpush1.bf16.msra.mxu0 0
    %4588 = vmatprep.subr.bf16.mxu0 0
    %4589 = vmatpush1.bf16.msra.mxu0 0
    %4590 = vmatprep.subr.bf16.mxu0 0
    %4591 = vmatpush1.bf16.msra.mxu0 0
    %4592 = vmatprep.subr.bf16.mxu0 0
    %4593 = vmatpush1.bf16.msra.mxu0 0
    %4594 = vmatprep.subr.bf16.mxu0 0
    %4595 = vmatpush1.bf16.msra.mxu0 0
    %4596 = vmatprep.subr.bf16.mxu0 0
    %4597 = vmatpush1.bf16.msra.mxu0 0
    %4598 = vmatprep.subr.bf16.mxu0 0
    %4599 = vmatpush1.bf16.msra.mxu0 0
    %4600 = vmatprep.subr.bf16.mxu0 0
    %4601 = vmatpush1.bf16.msra.mxu0 0
    %4602 = vmatprep.subr.bf16.mxu0 0
    %4603 = vmatpush1.bf16.msra.mxu0 0
    %4604 = vmatprep.subr.bf16.mxu0 0
    %4605 = vmatpush1.bf16.msra.mxu0 0
    %4606 = vmatprep.subr.bf16.mxu0 0
    %4607 = vmatpush1.bf16.msra.mxu0 0
    %4608 = vmatprep.subr.bf16.mxu0 0
    %4609 = vmatpush1.bf16.msra.mxu0 0
    %4610 = vmatprep.subr.bf16.mxu0 0
    %4611 = vmatpush1.bf16.msra.mxu0 0
    %4612 = vmatprep.mubr.bf16.mxu0 0
    %4613 = vmatmul.mubr.bf16.gmra.mrb[0].mxu0 %v4557
    %v4614 = vpop.f32.mrb[0].mxu0
    %v4615 = vadd.f32 0.0, %v4614
    %v4616 = vpop.f32.mrb[0].mxu0
    %v4617 = vpop.f32.mrb[0].mxu0
    %v4618 = vadd.f32 0.0, %v4617
    %v4619 = vpop.f32.mrb[0].mxu0
    %4620 = vmatprep.mubr.bf16.mxu0 0
    %4621 = vmatmul.mubr.bf16.gmra.mrb[0].mxu0 %v4560
    %v4622 = vpop.f32.mrb[0].mxu0
    %v4623 = vadd.f32 0.0, %v4622
    %v4624 = vpop.f32.mrb[0].mxu0
    %v4625 = vpop.f32.mrb[0].mxu0
    %v4626 = vadd.f32 0.0, %v4625
    %v4627 = vpop.f32.mrb[0].mxu0
    %4628 = vmatprep.mubr.bf16.mxu0 0
    %4629 = vmatmul.mubr.bf16.gmra.mrb[0].mxu0 %v4563
    %v4630 = vpop.f32.mrb[0].mxu0
    %v4631 = vadd.f32 0.0, %v4630
    %v4632 = vpop.f32.mrb[0].mxu0
    %v4633 = vpop.f32.mrb[0].mxu0
    %v4634 = vadd.f32 0.0, %v4633
    %v4635 = vpop.f32.mrb[0].mxu0
    %4636 = vmatprep.mubr.bf16.mxu0 0
    %4637 = vmatmul.mubr.bf16.gmra.mrb[0].mxu0 %v4566
    %v4638 = vpop.f32.mrb[0].mxu0
    %v4639 = vadd.f32 0.0, %v4638
    %v4640 = vpop.f32.mrb[0].mxu0
    %v4641 = vpop.f32.mrb[0].mxu0
    %v4642 = vadd.f32 0.0, %v4641
    %v4643 = vpop.f32.mrb[0].mxu0
    %4644 = vmatprep.mubr.bf16.mxu0 0
    %4645 = vmatmul.mubr.bf16.gmra.mrb[0].mxu0 %v4569
    %v4646 = vpop.f32.mrb[0].mxu0
    %v4647 = vadd.f32 0.0, %v4646
    %v4648 = vpop.f32.mrb[0].mxu0
    %v4649 = vpop.f32.mrb[0].mxu0
    %v4650 = vadd.f32 0.0, %v4649
    %v4651 = vpop.f32.mrb[0].mxu0
    %4652 = vmatprep.mubr.bf16.mxu0 0
    %4653 = vmatmul.mubr.bf16.gmra.mrb[0].mxu0 %v4572
    %v4654 = vpop.f32.mrb[0].mxu0
    %v4655 = vadd.f32 0.0, %v4654
    %v4656 = vpop.f32.mrb[0].mxu0
    %v4657 = vpop.f32.mrb[0].mxu0
    %v4658 = vadd.f32 0.0, %v4657
    %v4659 = vpop.f32.mrb[0].mxu0
    %4660 = vmatprep.mubr.bf16.mxu0 0
    %4661 = vmatmul.mubr.bf16.gmra.mrb[0].mxu0 %v4575
    %v4662 = vpop.f32.mrb[0].mxu0
    %v4663 = vadd.f32 0.0, %v4662
    %v4664 = vpop.f32.mrb[0].mxu0
    %v4665 = vpop.f32.mrb[0].mxu0
    %v4666 = vadd.f32 0.0, %v4665
    %v4667 = vpop.f32.mrb[0].mxu0
    %4668 = vmatprep.mubr.bf16.mxu0 0
    %4669 = vmatmul.mubr.bf16.gmra.mrb[0].mxu0 %v4578
    %v4670 = vpop.f32.mrb[0].mxu0
    %v4671 = vadd.f32 0.0, %v4670
    %v4672 = vpop.f32.mrb[0].mxu0
    %v4673 = vpop.f32.mrb[0].mxu0
    %v4674 = vadd.f32 0.0, %v4673
    %v4675 = vpop.f32.mrb[0].mxu0
    %4676 = vdwg.mxu0
    %v4677 = vadd.f32 %v4388, %v4615
    %v4678 = vadd.f32 %v4389, %v4618
    %v4679 = vadd.f32 %v4390, %v4623
    %v4680 = vadd.f32 %v4391, %v4626
    %v4681 = vadd.f32 %v4392, %v4631
    %v4682 = vadd.f32 %v4393, %v4634
    %v4683 = vadd.f32 %v4394, %v4639
    %v4684 = vadd.f32 %v4395, %v4642
    %v4685 = vadd.f32 %v4396, %v4647
    %v4686 = vadd.f32 %v4397, %v4650
    %v4687 = vadd.f32 %v4398, %v4655
    %v4688 = vadd.f32 %v4399, %v4658
    %v4689 = vadd.f32 %v4400, %v4663
    %v4690 = vadd.f32 %v4401, %v4666
    %v4691 = vadd.f32 %v4402, %v4671
    %v4692 = vadd.f32 %v4403, %v4674
    %s4693 = scalar_lea.vmem [#allocation2], 16
    %v4694 = vld [vmem:[%s4693] sm:$0xf]
    %v4695 = vld [vmem:[%s4693 + $0x8] sm:$0xf]
    %v4696 = vld [vmem:[%s4693 + $0x10] sm:$0xf]
    %v4697 = vld [vmem:[%s4693 + $0x18] sm:$0xf]
    %v4698 = vld [vmem:[%s4693 + $0x20] sm:$0xf]
    %v4699 = vld [vmem:[%s4693 + $0x28] sm:$0xf]
    %v4700 = vld [vmem:[%s4693 + $0x30] sm:$0xf]
    %v4701 = vld [vmem:[%s4693 + $0x38] sm:$0xf]
    %v4702 = vld [vmem:[%s4693 + $0x50] sm:$0xf]
    %v4703 = vld [vmem:[%s4693 + $0x58] sm:$0xf]
    %v4704 = vld [vmem:[%s4693 + $0x60] sm:$0xf]
    %v4705 = vld [vmem:[%s4693 + $0x68] sm:$0xf]
    %v4706 = vld [vmem:[%s4693 + $0x70] sm:$0xf]
    %v4707 = vld [vmem:[%s4693 + $0x78] sm:$0xf]
    %v4708 = vld [vmem:[%s4693 + $0x80] sm:$0xf]
    %v4709 = vld [vmem:[%s4693 + $0x88] sm:$0xf]
    %v4710 = vld [vmem:[%s3 + $0x60] sm:$0xf]
    %v4711 = vld [vmem:[%s3 + $0x64] sm:$0xf]
    %v4712 = vld [vmem:[%s3 + $0x68] sm:$0xf]
    %v4713 = vld [vmem:[%s3 + $0x6c] sm:$0xf]
    %v4730 = vunpack.c.l.b16 %v4694
    %v4731 = vunpack.c.l.b16 %v4695
    %v4732 = vunpack.c.l.b16 %v4696
    %v4733 = vunpack.c.l.b16 %v4697
    %v4734 = vunpack.c.l.b16 %v4698
    %v4735 = vunpack.c.l.b16 %v4699
    %v4736 = vunpack.c.l.b16 %v4700
    %v4737 = vunpack.c.l.b16 %v4701
    %v4738 = vunpack.c.l.b16 %v4702
    %v4739 = vunpack.c.l.b16 %v4703
    %v4740 = vunpack.c.l.b16 %v4704
    %v4741 = vunpack.c.l.b16 %v4705
    %v4742 = vunpack.c.l.b16 %v4706
    %v4743 = vunpack.c.l.b16 %v4707
    %v4744 = vunpack.c.l.b16 %v4708
    %v4745 = vunpack.c.l.b16 %v4709
    %v4746 = vpack.c.b16 %v4731, %v4730
    %v4747 = vpack.c.b16 %v4733, %v4732
    %v4748 = vpack.c.b16 %v4735, %v4734
    %v4749 = vpack.c.b16 %v4737, %v4736
    %v4750 = vpack.c.b16 %v4739, %v4738
    %v4751 = vpack.c.b16 %v4741, %v4740
    %v4752 = vpack.c.b16 %v4743, %v4742
    %v4753 = vpack.c.b16 %v4745, %v4744
    %v4758 = vunpack.c.l.b16 %v4710
    %v4759 = vunpack.c.l.b16 %v4711
    %v4760 = vunpack.c.l.b16 %v4712
    %v4761 = vunpack.c.l.b16 %v4713
    %v4762 = vpack.c.b16 %v4759, %v4758
    %v4763 = vpack.c.b16 %v4761, %v4760
    %v4767 = vsel %vm3175, %v4746, 0
    %v4770 = vsel %vm3175, %v4747, 0
    %v4773 = vsel %vm3175, %v4748, 0
    %v4776 = vsel %vm3175, %v4749, 0
    %v4779 = vsel %vm3175, %v4750, 0
    %v4782 = vsel %vm3175, %v4751, 0
    %v4785 = vsel %vm3175, %v4752, 0
    %v4788 = vsel %vm3175, %v4753, 0
    %4790 = vmatprep.subr.bf16.mxu0 0
    %4791 = vmatpush1.bf16.msra.mxu0 %v4762
    %4792 = vmatprep.subr.bf16.mxu0 0
    %4793 = vmatpush1.bf16.msra.mxu0 %v4763
    %4794 = vmatprep.subr.bf16.mxu0 0
    %4795 = vmatpush1.bf16.msra.mxu0 0
    %4796 = vmatprep.subr.bf16.mxu0 0
    %4797 = vmatpush1.bf16.msra.mxu0 0
    %4798 = vmatprep.subr.bf16.mxu0 0
    %4799 = vmatpush1.bf16.msra.mxu0 0
    %4800 = vmatprep.subr.bf16.mxu0 0
    %4801 = vmatpush1.bf16.msra.mxu0 0
    %4802 = vmatprep.subr.bf16.mxu0 0
    %4803 = vmatpush1.bf16.msra.mxu0 0
    %4804 = vmatprep.subr.bf16.mxu0 0
    %4805 = vmatpush1.bf16.msra.mxu0 0
    %4806 = vmatprep.subr.bf16.mxu0 0
    %4807 = vmatpush1.bf16.msra.mxu0 0
    %4808 = vmatprep.subr.bf16.mxu0 0
    %4809 = vmatpush1.bf16.msra.mxu0 0
    %4810 = vmatprep.subr.bf16.mxu0 0
    %4811 = vmatpush1.bf16.msra.mxu0 0
    %4812 = vmatprep.subr.bf16.mxu0 0
    %4813 = vmatpush1.bf16.msra.mxu0 0
    %4814 = vmatprep.subr.bf16.mxu0 0
    %4815 = vmatpush1.bf16.msra.mxu0 0
    %4816 = vmatprep.subr.bf16.mxu0 0
    %4817 = vmatpush1.bf16.msra.mxu0 0
    %4818 = vmatprep.subr.bf16.mxu0 0
    %4819 = vmatpush1.bf16.msra.mxu0 0
    %4820 = vmatprep.subr.bf16.mxu0 0
    %4821 = vmatpush1.bf16.msra.mxu0 0
    %4822 = vmatprep.mubr.bf16.mxu0 0
    %4823 = vmatmul.mubr.bf16.gmra.mrb[0].mxu0 %v4767
    %v4824 = vpop.f32.mrb[0].mxu0
    %v4825 = vadd.f32 0.0, %v4824
    %v4826 = vpop.f32.mrb[0].mxu0
    %v4827 = vpop.f32.mrb[0].mxu0
    %v4828 = vadd.f32 0.0, %v4827
    %v4829 = vpop.f32.mrb[0].mxu0
    %4830 = vmatprep.mubr.bf16.mxu0 0
    %4831 = vmatmul.mubr.bf16.gmra.mrb[0].mxu0 %v4770
    %v4832 = vpop.f32.mrb[0].mxu0
    %v4833 = vadd.f32 0.0, %v4832
    %v4834 = vpop.f32.mrb[0].mxu0
    %v4835 = vpop.f32.mrb[0].mxu0
    %v4836 = vadd.f32 0.0, %v4835
    %v4837 = vpop.f32.mrb[0].mxu0
    %4838 = vmatprep.mubr.bf16.mxu0 0
    %4839 = vmatmul.mubr.bf16.gmra.mrb[0].mxu0 %v4773
    %v4840 = vpop.f32.mrb[0].mxu0
    %v4841 = vadd.f32 0.0, %v4840
    %v4842 = vpop.f32.mrb[0].mxu0
    %v4843 = vpop.f32.mrb[0].mxu0
    %v4844 = vadd.f32 0.0, %v4843
    %v4845 = vpop.f32.mrb[0].mxu0
    %4846 = vmatprep.mubr.bf16.mxu0 0
    %4847 = vmatmul.mubr.bf16.gmra.mrb[0].mxu0 %v4776
    %v4848 = vpop.f32.mrb[0].mxu0
    %v4849 = vadd.f32 0.0, %v4848
    %v4850 = vpop.f32.mrb[0].mxu0
    %v4851 = vpop.f32.mrb[0].mxu0
    %v4852 = vadd.f32 0.0, %v4851
    %v4853 = vpop.f32.mrb[0].mxu0
    %4854 = vmatprep.mubr.bf16.mxu0 0
    %4855 = vmatmul.mubr.bf16.gmra.mrb[0].mxu0 %v4779
    %v4856 = vpop.f32.mrb[0].mxu0
    %v4857 = vadd.f32 0.0, %v4856
    %v4858 = vpop.f32.mrb[0].mxu0
    %v4859 = vpop.f32.mrb[0].mxu0
    %v4860 = vadd.f32 0.0, %v4859
    %v4861 = vpop.f32.mrb[0].mxu0
    %4862 = vmatprep.mubr.bf16.mxu0 0
    %4863 = vmatmul.mubr.bf16.gmra.mrb[0].mxu0 %v4782
    %v4864 = vpop.f32.mrb[0].mxu0
    %v4865 = vadd.f32 0.0, %v4864
    %v4866 = vpop.f32.mrb[0].mxu0
    %v4867 = vpop.f32.mrb[0].mxu0
    %v4868 = vadd.f32 0.0, %v4867
    %v4869 = vpop.f32.mrb[0].mxu0
    %4870 = vmatprep.mubr.bf16.mxu0 0
    %4871 = vmatmul.mubr.bf16.gmra.mrb[0].mxu0 %v4785
    %v4872 = vpop.f32.mrb[0].mxu0
    %v4873 = vadd.f32 0.0, %v4872
    %v4874 = vpop.f32.mrb[0].mxu0
    %v4875 = vpop.f32.mrb[0].mxu0
    %v4876 = vadd.f32 0.0, %v4875
    %v4877 = vpop.f32.mrb[0].mxu0
    %4878 = vmatprep.mubr.bf16.mxu0 0
    %4879 = vmatmul.mubr.bf16.gmra.mrb[0].mxu0 %v4788
    %v4880 = vpop.f32.mrb[0].mxu0
    %v4881 = vadd.f32 0.0, %v4880
    %v4882 = vpop.f32.mrb[0].mxu0
    %v4883 = vpop.f32.mrb[0].mxu0
    %v4884 = vadd.f32 0.0, %v4883
    %v4885 = vpop.f32.mrb[0].mxu0
    %4886 = vdwg.mxu0
    %v4887 = vadd.f32 %v4677, %v4825
    %v4888 = vadd.f32 %v4678, %v4828
    %v4889 = vadd.f32 %v4679, %v4833
    %v4890 = vadd.f32 %v4680, %v4836
    %v4891 = vadd.f32 %v4681, %v4841
    %v4892 = vadd.f32 %v4682, %v4844
    %v4893 = vadd.f32 %v4683, %v4849
    %v4894 = vadd.f32 %v4684, %v4852
    %v4895 = vadd.f32 %v4685, %v4857
    %v4896 = vadd.f32 %v4686, %v4860
    %v4897 = vadd.f32 %v4687, %v4865
    %v4898 = vadd.f32 %v4688, %v4868
    %v4899 = vadd.f32 %v4689, %v4873
    %v4900 = vadd.f32 %v4690, %v4876
    %v4901 = vadd.f32 %v4691, %v4881
    %v4902 = vadd.f32 %v4692, %v4884
    %v4903 = vld [vmem:[%s4693] sm:$0xf]
    %v4904 = vld [vmem:[%s4693 + $0x4] sm:$0x1]
    %v4905 = vld [vmem:[%s4693 + $0x8] sm:$0xf]
    %v4906 = vld [vmem:[%s4693 + $0xc] sm:$0x1]
    %v4907 = vld [vmem:[%s4693 + $0x10] sm:$0xf]
    %v4908 = vld [vmem:[%s4693 + $0x14] sm:$0x1]
    %v4909 = vld [vmem:[%s4693 + $0x18] sm:$0xf]
    %v4910 = vld [vmem:[%s4693 + $0x1c] sm:$0x1]
    %v4911 = vld [vmem:[%s4693 + $0x20] sm:$0xf]
    %v4912 = vld [vmem:[%s4693 + $0x24] sm:$0x1]
    %v4913 = vld [vmem:[%s4693 + $0x28] sm:$0xf]
    %v4914 = vld [vmem:[%s4693 + $0x2c] sm:$0x1]
    %v4915 = vld [vmem:[%s4693 + $0x30] sm:$0xf]
    %v4916 = vld [vmem:[%s4693 + $0x34] sm:$0x1]
    %v4917 = vld [vmem:[%s4693 + $0x38] sm:$0xf]
    %v4918 = vld [vmem:[%s4693 + $0x3c] sm:$0x1]
    %v4919 = vld [vmem:[%s4693 + $0x50] sm:$0xf]
    %v4920 = vld [vmem:[%s4693 + $0x54] sm:$0x1]
    %v4921 = vld [vmem:[%s4693 + $0x58] sm:$0xf]
    %v4922 = vld [vmem:[%s4693 + $0x5c] sm:$0x1]
    %v4923 = vld [vmem:[%s4693 + $0x60] sm:$0xf]
    %v4924 = vld [vmem:[%s4693 + $0x64] sm:$0x1]
    %v4925 = vld [vmem:[%s4693 + $0x68] sm:$0xf]
    %v4926 = vld [vmem:[%s4693 + $0x6c] sm:$0x1]
    %v4927 = vld [vmem:[%s4693 + $0x70] sm:$0xf]
    %v4928 = vld [vmem:[%s4693 + $0x74] sm:$0x1]
    %v4929 = vld [vmem:[%s4693 + $0x78] sm:$0xf]
    %v4930 = vld [vmem:[%s4693 + $0x7c] sm:$0x1]
    %v4931 = vld [vmem:[%s4693 + $0x80] sm:$0xf]
    %v4932 = vld [vmem:[%s4693 + $0x84] sm:$0x1]
    %v4933 = vld [vmem:[%s4693 + $0x88] sm:$0xf]
    %v4934 = vld [vmem:[%s4693 + $0x8c] sm:$0x1]
    %v4936 = vshrl.u32 %v4903, 16
    %v4938 = vrot.slane %v4936, 4
    %v4939 = vshll.u32 %v4903, 16
    %v4941 = vrot.slane %v4939, 5
    %v4942 = vor.u32 %v4938, %v4941
    %v4943 = vrot.slane %v4942, 4
    %v4945 = vshll.u32 %v4904, 16
    %v4947 = vrot.slane %v4945, 5
    %v4948 = vsel %vm431, %v4943, %v4947
    %v4950 = vshrl.u32 %v4905, 16
    %v4952 = vrot.slane %v4950, 4
    %v4953 = vshll.u32 %v4905, 16
    %v4955 = vrot.slane %v4953, 5
    %v4956 = vor.u32 %v4952, %v4955
    %v4957 = vrot.slane %v4956, 4
    %v4959 = vshll.u32 %v4906, 16
    %v4961 = vrot.slane %v4959, 5
    %v4962 = vsel %vm431, %v4957, %v4961
    %v4964 = vshrl.u32 %v4907, 16
    %v4966 = vrot.slane %v4964, 4
    %v4967 = vshll.u32 %v4907, 16
    %v4969 = vrot.slane %v4967, 5
    %v4970 = vor.u32 %v4966, %v4969
    %v4971 = vrot.slane %v4970, 4
    %v4973 = vshll.u32 %v4908, 16
    %v4975 = vrot.slane %v4973, 5
    %v4976 = vsel %vm431, %v4971, %v4975
    %v4978 = vshrl.u32 %v4909, 16
    %v4980 = vrot.slane %v4978, 4
    %v4981 = vshll.u32 %v4909, 16
    %v4983 = vrot.slane %v4981, 5
    %v4984 = vor.u32 %v4980, %v4983
    %v4985 = vrot.slane %v4984, 4
    %v4987 = vshll.u32 %v4910, 16
    %v4989 = vrot.slane %v4987, 5
    %v4990 = vsel %vm431, %v4985, %v4989
    %v4992 = vshrl.u32 %v4911, 16
    %v4994 = vrot.slane %v4992, 4
    %v4995 = vshll.u32 %v4911, 16
    %v4997 = vrot.slane %v4995, 5
    %v4998 = vor.u32 %v4994, %v4997
    %v4999 = vrot.slane %v4998, 4
    %v5001 = vshll.u32 %v4912, 16
    %v5003 = vrot.slane %v5001, 5
    %v5004 = vsel %vm431, %v4999, %v5003
    %v5006 = vshrl.u32 %v4913, 16
    %v5008 = vrot.slane %v5006, 4
    %v5009 = vshll.u32 %v4913, 16
    %v5011 = vrot.slane %v5009, 5
    %v5012 = vor.u32 %v5008, %v5011
    %v5013 = vrot.slane %v5012, 4
    %v5015 = vshll.u32 %v4914, 16
    %v5017 = vrot.slane %v5015, 5
    %v5018 = vsel %vm431, %v5013, %v5017
    %v5020 = vshrl.u32 %v4915, 16
    %v5022 = vrot.slane %v5020, 4
    %v5023 = vshll.u32 %v4915, 16
    %v5025 = vrot.slane %v5023, 5
    %v5026 = vor.u32 %v5022, %v5025
    %v5027 = vrot.slane %v5026, 4
    %v5029 = vshll.u32 %v4916, 16
    %v5031 = vrot.slane %v5029, 5
    %v5032 = vsel %vm431, %v5027, %v5031
    %v5034 = vshrl.u32 %v4917, 16
    %v5036 = vrot.slane %v5034, 4
    %v5037 = vshll.u32 %v4917, 16
    %v5039 = vrot.slane %v5037, 5
    %v5040 = vor.u32 %v5036, %v5039
    %v5041 = vrot.slane %v5040, 4
    %v5043 = vshll.u32 %v4918, 16
    %v5045 = vrot.slane %v5043, 5
    %v5046 = vsel %vm431, %v5041, %v5045
    %v5048 = vshrl.u32 %v4919, 16
    %v5050 = vrot.slane %v5048, 4
    %v5051 = vshll.u32 %v4919, 16
    %v5053 = vrot.slane %v5051, 5
    %v5054 = vor.u32 %v5050, %v5053
    %v5055 = vrot.slane %v5054, 4
    %v5057 = vshll.u32 %v4920, 16
    %v5059 = vrot.slane %v5057, 5
    %v5060 = vsel %vm431, %v5055, %v5059
    %v5062 = vshrl.u32 %v4921, 16
    %v5064 = vrot.slane %v5062, 4
    %v5065 = vshll.u32 %v4921, 16
    %v5067 = vrot.slane %v5065, 5
    %v5068 = vor.u32 %v5064, %v5067
    %v5069 = vrot.slane %v5068, 4
    %v5071 = vshll.u32 %v4922, 16
    %v5073 = vrot.slane %v5071, 5
    %v5074 = vsel %vm431, %v5069, %v5073
    %v5076 = vshrl.u32 %v4923, 16
    %v5078 = vrot.slane %v5076, 4
    %v5079 = vshll.u32 %v4923, 16
    %v5081 = vrot.slane %v5079, 5
    %v5082 = vor.u32 %v5078, %v5081
    %v5083 = vrot.slane %v5082, 4
    %v5085 = vshll.u32 %v4924, 16
    %v5087 = vrot.slane %v5085, 5
    %v5088 = vsel %vm431, %v5083, %v5087
    %v5090 = vshrl.u32 %v4925, 16
    %v5092 = vrot.slane %v5090, 4
    %v5093 = vshll.u32 %v4925, 16
    %v5095 = vrot.slane %v5093, 5
    %v5096 = vor.u32 %v5092, %v5095
    %v5097 = vrot.slane %v5096, 4
    %v5099 = vshll.u32 %v4926, 16
    %v5101 = vrot.slane %v5099, 5
    %v5102 = vsel %vm431, %v5097, %v5101
    %v5104 = vshrl.u32 %v4927, 16
    %v5106 = vrot.slane %v5104, 4
    %v5107 = vshll.u32 %v4927, 16
    %v5109 = vrot.slane %v5107, 5
    %v5110 = vor.u32 %v5106, %v5109
    %v5111 = vrot.slane %v5110, 4
    %v5113 = vshll.u32 %v4928, 16
    %v5115 = vrot.slane %v5113, 5
    %v5116 = vsel %vm431, %v5111, %v5115
    %v5118 = vshrl.u32 %v4929, 16
    %v5120 = vrot.slane %v5118, 4
    %v5121 = vshll.u32 %v4929, 16
    %v5123 = vrot.slane %v5121, 5
    %v5124 = vor.u32 %v5120, %v5123
    %v5125 = vrot.slane %v5124, 4
    %v5127 = vshll.u32 %v4930, 16
    %v5129 = vrot.slane %v5127, 5
    %v5130 = vsel %vm431, %v5125, %v5129
    %v5132 = vshrl.u32 %v4931, 16
    %v5134 = vrot.slane %v5132, 4
    %v5135 = vshll.u32 %v4931, 16
    %v5137 = vrot.slane %v5135, 5
    %v5138 = vor.u32 %v5134, %v5137
    %v5139 = vrot.slane %v5138, 4
    %v5141 = vshll.u32 %v4932, 16
    %v5143 = vrot.slane %v5141, 5
    %v5144 = vsel %vm431, %v5139, %v5143
    %v5146 = vshrl.u32 %v4933, 16
    %v5148 = vrot.slane %v5146, 4
    %v5149 = vshll.u32 %v4933, 16
    %v5151 = vrot.slane %v5149, 5
    %v5152 = vor.u32 %v5148, %v5151
    %v5153 = vrot.slane %v5152, 4
    %v5155 = vshll.u32 %v4934, 16
    %v5157 = vrot.slane %v5155, 5
    %v5158 = vsel %vm431, %v5153, %v5157
    %v5159 = vld [vmem:[%s3 + $0x70] sm:$0xf]
    %v5160 = vld [vmem:[%s3 + $0x74] sm:$0xf]
    %v5161 = vld [vmem:[%s3 + $0x78] sm:$0xf]
    %v5162 = vld [vmem:[%s3 + $0x7c] sm:$0xf]
    %v5163 = vunpack.c.l.b16 %v4948
    %v5164 = vunpack.c.l.b16 %v4962
    %v5165 = vunpack.c.l.b16 %v4976
    %v5166 = vunpack.c.l.b16 %v4990
    %v5167 = vunpack.c.l.b16 %v5004
    %v5168 = vunpack.c.l.b16 %v5018
    %v5169 = vunpack.c.l.b16 %v5032
    %v5170 = vunpack.c.l.b16 %v5046
    %v5171 = vunpack.c.l.b16 %v5060
    %v5172 = vunpack.c.l.b16 %v5074
    %v5173 = vunpack.c.l.b16 %v5088
    %v5174 = vunpack.c.l.b16 %v5102
    %v5175 = vunpack.c.l.b16 %v5116
    %v5176 = vunpack.c.l.b16 %v5130
    %v5177 = vunpack.c.l.b16 %v5144
    %v5178 = vunpack.c.l.b16 %v5158
    %v5179 = vpack.c.b16 %v5164, %v5163
    %v5180 = vpack.c.b16 %v5166, %v5165
    %v5181 = vpack.c.b16 %v5168, %v5167
    %v5182 = vpack.c.b16 %v5170, %v5169
    %v5183 = vpack.c.b16 %v5172, %v5171
    %v5184 = vpack.c.b16 %v5174, %v5173
    %v5185 = vpack.c.b16 %v5176, %v5175
    %v5186 = vpack.c.b16 %v5178, %v5177
    %v5191 = vunpack.c.l.b16 %v5159
    %v5192 = vunpack.c.l.b16 %v5160
    %v5193 = vunpack.c.l.b16 %v5161
    %v5194 = vunpack.c.l.b16 %v5162
    %v5195 = vpack.c.b16 %v5192, %v5191
    %v5196 = vpack.c.b16 %v5194, %v5193
    %v5200 = vsel %vm3175, %v5179, 0
    %v5203 = vsel %vm3175, %v5180, 0
    %v5206 = vsel %vm3175, %v5181, 0
    %v5209 = vsel %vm3175, %v5182, 0
    %v5212 = vsel %vm3175, %v5183, 0
    %v5215 = vsel %vm3175, %v5184, 0
    %v5218 = vsel %vm3175, %v5185, 0
    %v5221 = vsel %vm3175, %v5186, 0
    %5223 = vmatprep.subr.bf16.mxu0 0
    %5224 = vmatpush1.bf16.msra.mxu0 %v5195
    %5225 = vmatprep.subr.bf16.mxu0 0
    %5226 = vmatpush1.bf16.msra.mxu0 %v5196
    %5227 = vmatprep.subr.bf16.mxu0 0
    %5228 = vmatpush1.bf16.msra.mxu0 0
    %5229 = vmatprep.subr.bf16.mxu0 0
    %5230 = vmatpush1.bf16.msra.mxu0 0
    %5231 = vmatprep.subr.bf16.mxu0 0
    %5232 = vmatpush1.bf16.msra.mxu0 0
    %5233 = vmatprep.subr.bf16.mxu0 0
    %5234 = vmatpush1.bf16.msra.mxu0 0
    %5235 = vmatprep.subr.bf16.mxu0 0
    %5236 = vmatpush1.bf16.msra.mxu0 0
    %5237 = vmatprep.subr.bf16.mxu0 0
    %5238 = vmatpush1.bf16.msra.mxu0 0
    %5239 = vmatprep.subr.bf16.mxu0 0
    %5240 = vmatpush1.bf16.msra.mxu0 0
    %5241 = vmatprep.subr.bf16.mxu0 0
    %5242 = vmatpush1.bf16.msra.mxu0 0
    %5243 = vmatprep.subr.bf16.mxu0 0
    %5244 = vmatpush1.bf16.msra.mxu0 0
    %5245 = vmatprep.subr.bf16.mxu0 0
    %5246 = vmatpush1.bf16.msra.mxu0 0
    %5247 = vmatprep.subr.bf16.mxu0 0
    %5248 = vmatpush1.bf16.msra.mxu0 0
    %5249 = vmatprep.subr.bf16.mxu0 0
    %5250 = vmatpush1.bf16.msra.mxu0 0
    %5251 = vmatprep.subr.bf16.mxu0 0
    %5252 = vmatpush1.bf16.msra.mxu0 0
    %5253 = vmatprep.subr.bf16.mxu0 0
    %5254 = vmatpush1.bf16.msra.mxu0 0
    %5255 = vmatprep.mubr.bf16.mxu0 0
    %5256 = vmatmul.mubr.bf16.gmra.mrb[0].mxu0 %v5200
    %v5257 = vpop.f32.mrb[0].mxu0
    %v5258 = vadd.f32 0.0, %v5257
    %v5259 = vpop.f32.mrb[0].mxu0
    %v5260 = vpop.f32.mrb[0].mxu0
    %v5261 = vadd.f32 0.0, %v5260
    %v5262 = vpop.f32.mrb[0].mxu0
    %5263 = vmatprep.mubr.bf16.mxu0 0
    %5264 = vmatmul.mubr.bf16.gmra.mrb[0].mxu0 %v5203
    %v5265 = vpop.f32.mrb[0].mxu0
    %v5266 = vadd.f32 0.0, %v5265
    %v5267 = vpop.f32.mrb[0].mxu0
    %v5268 = vpop.f32.mrb[0].mxu0
    %v5269 = vadd.f32 0.0, %v5268
    %v5270 = vpop.f32.mrb[0].mxu0
    %5271 = vmatprep.mubr.bf16.mxu0 0
    %5272 = vmatmul.mubr.bf16.gmra.mrb[0].mxu0 %v5206
    %v5273 = vpop.f32.mrb[0].mxu0
    %v5274 = vadd.f32 0.0, %v5273
    %v5275 = vpop.f32.mrb[0].mxu0
    %v5276 = vpop.f32.mrb[0].mxu0
    %v5277 = vadd.f32 0.0, %v5276
    %v5278 = vpop.f32.mrb[0].mxu0
    %5279 = vmatprep.mubr.bf16.mxu0 0
    %5280 = vmatmul.mubr.bf16.gmra.mrb[0].mxu0 %v5209
    %v5281 = vpop.f32.mrb[0].mxu0
    %v5282 = vadd.f32 0.0, %v5281
    %v5283 = vpop.f32.mrb[0].mxu0
    %v5284 = vpop.f32.mrb[0].mxu0
    %v5285 = vadd.f32 0.0, %v5284
    %v5286 = vpop.f32.mrb[0].mxu0
    %5287 = vmatprep.mubr.bf16.mxu0 0
    %5288 = vmatmul.mubr.bf16.gmra.mrb[0].mxu0 %v5212
    %v5289 = vpop.f32.mrb[0].mxu0
    %v5290 = vadd.f32 0.0, %v5289
    %v5291 = vpop.f32.mrb[0].mxu0
    %v5292 = vpop.f32.mrb[0].mxu0
    %v5293 = vadd.f32 0.0, %v5292
    %v5294 = vpop.f32.mrb[0].mxu0
    %5295 = vmatprep.mubr.bf16.mxu0 0
    %5296 = vmatmul.mubr.bf16.gmra.mrb[0].mxu0 %v5215
    %v5297 = vpop.f32.mrb[0].mxu0
    %v5298 = vadd.f32 0.0, %v5297
    %v5299 = vpop.f32.mrb[0].mxu0
    %v5300 = vpop.f32.mrb[0].mxu0
    %v5301 = vadd.f32 0.0, %v5300
    %v5302 = vpop.f32.mrb[0].mxu0
    %5303 = vmatprep.mubr.bf16.mxu0 0
    %5304 = vmatmul.mubr.bf16.gmra.mrb[0].mxu0 %v5218
    %v5305 = vpop.f32.mrb[0].mxu0
    %v5306 = vadd.f32 0.0, %v5305
    %v5307 = vpop.f32.mrb[0].mxu0
    %v5308 = vpop.f32.mrb[0].mxu0
    %v5309 = vadd.f32 0.0, %v5308
    %v5310 = vpop.f32.mrb[0].mxu0
    %5311 = vmatprep.mubr.bf16.mxu0 0
    %5312 = vmatmul.mubr.bf16.gmra.mrb[0].mxu0 %v5221
    %v5313 = vpop.f32.mrb[0].mxu0
    %v5314 = vadd.f32 0.0, %v5313
    %v5315 = vpop.f32.mrb[0].mxu0
    %v5316 = vpop.f32.mrb[0].mxu0
    %v5317 = vadd.f32 0.0, %v5316
    %v5318 = vpop.f32.mrb[0].mxu0
    %5319 = vdwg.mxu0
    %v5320 = vadd.f32 %v4887, %v5258
    %v5321 = vadd.f32 %v4888, %v5261
    %v5322 = vadd.f32 %v4889, %v5266
    %v5323 = vadd.f32 %v4890, %v5269
    %v5324 = vadd.f32 %v4891, %v5274
    %v5325 = vadd.f32 %v4892, %v5277
    %v5326 = vadd.f32 %v4893, %v5282
    %v5327 = vadd.f32 %v4894, %v5285
    %v5328 = vadd.f32 %v4895, %v5290
    %v5329 = vadd.f32 %v4896, %v5293
    %v5330 = vadd.f32 %v4897, %v5298
    %v5331 = vadd.f32 %v4898, %v5301
    %v5332 = vadd.f32 %v4899, %v5306
    %v5333 = vadd.f32 %v4900, %v5309
    %v5334 = vadd.f32 %v4901, %v5314
    %v5335 = vadd.f32 %v4902, %v5317
    %v5336 = vld [vmem:[%s4693] sm:$0xe]
    %v5337 = vld [vmem:[%s4693 + $0x8] sm:$0xe]
    %v5338 = vld [vmem:[%s4693 + $0x10] sm:$0xe]
    %v5339 = vld [vmem:[%s4693 + $0x18] sm:$0xe]
    %v5340 = vld [vmem:[%s4693 + $0x20] sm:$0xe]
    %v5341 = vld [vmem:[%s4693 + $0x28] sm:$0xe]
    %v5342 = vld [vmem:[%s4693 + $0x30] sm:$0xe]
    %v5343 = vld [vmem:[%s4693 + $0x38] sm:$0xe]
    %v5344 = vld [vmem:[%s4693 + $0x50] sm:$0xe]
    %v5345 = vld [vmem:[%s4693 + $0x58] sm:$0xe]
    %v5346 = vld [vmem:[%s4693 + $0x60] sm:$0xe]
    %v5347 = vld [vmem:[%s4693 + $0x68] sm:$0xe]
    %v5348 = vld [vmem:[%s4693 + $0x70] sm:$0xe]
    %v5349 = vld [vmem:[%s4693 + $0x78] sm:$0xe]
    %v5350 = vld [vmem:[%s4693 + $0x80] sm:$0xe]
    %v5351 = vld [vmem:[%s4693 + $0x88] sm:$0xe]
    %v5384 = vrot.slane %v5336, 5
    %v5385 = vrot.slane %v5384, 4
    %v5386 = vrot.slane %v4904, 5
    %v5387 = vsel %vm3520, %v5385, %v5386
    %v5388 = vrot.slane %v5337, 5
    %v5389 = vrot.slane %v5388, 4
    %v5390 = vrot.slane %v4906, 5
    %v5391 = vsel %vm3520, %v5389, %v5390
    %v5392 = vrot.slane %v5338, 5
    %v5393 = vrot.slane %v5392, 4
    %v5394 = vrot.slane %v4908, 5
    %v5395 = vsel %vm3520, %v5393, %v5394
    %v5396 = vrot.slane %v5339, 5
    %v5397 = vrot.slane %v5396, 4
    %v5398 = vrot.slane %v4910, 5
    %v5399 = vsel %vm3520, %v5397, %v5398
    %v5400 = vrot.slane %v5340, 5
    %v5401 = vrot.slane %v5400, 4
    %v5402 = vrot.slane %v4912, 5
    %v5403 = vsel %vm3520, %v5401, %v5402
    %v5404 = vrot.slane %v5341, 5
    %v5405 = vrot.slane %v5404, 4
    %v5406 = vrot.slane %v4914, 5
    %v5407 = vsel %vm3520, %v5405, %v5406
    %v5408 = vrot.slane %v5342, 5
    %v5409 = vrot.slane %v5408, 4
    %v5410 = vrot.slane %v4916, 5
    %v5411 = vsel %vm3520, %v5409, %v5410
    %v5412 = vrot.slane %v5343, 5
    %v5413 = vrot.slane %v5412, 4
    %v5414 = vrot.slane %v4918, 5
    %v5415 = vsel %vm3520, %v5413, %v5414
    %v5416 = vrot.slane %v5344, 5
    %v5417 = vrot.slane %v5416, 4
    %v5418 = vrot.slane %v4920, 5
    %v5419 = vsel %vm3520, %v5417, %v5418
    %v5420 = vrot.slane %v5345, 5
    %v5421 = vrot.slane %v5420, 4
    %v5422 = vrot.slane %v4922, 5
    %v5423 = vsel %vm3520, %v5421, %v5422
    %v5424 = vrot.slane %v5346, 5
    %v5425 = vrot.slane %v5424, 4
    %v5426 = vrot.slane %v4924, 5
    %v5427 = vsel %vm3520, %v5425, %v5426
    %v5428 = vrot.slane %v5347, 5
    %v5429 = vrot.slane %v5428, 4
    %v5430 = vrot.slane %v4926, 5
    %v5431 = vsel %vm3520, %v5429, %v5430
    %v5432 = vrot.slane %v5348, 5
    %v5433 = vrot.slane %v5432, 4
    %v5434 = vrot.slane %v4928, 5
    %v5435 = vsel %vm3520, %v5433, %v5434
    %v5436 = vrot.slane %v5349, 5
    %v5437 = vrot.slane %v5436, 4
    %v5438 = vrot.slane %v4930, 5
    %v5439 = vsel %vm3520, %v5437, %v5438
    %v5440 = vrot.slane %v5350, 5
    %v5441 = vrot.slane %v5440, 4
    %v5442 = vrot.slane %v4932, 5
    %v5443 = vsel %vm3520, %v5441, %v5442
    %v5444 = vrot.slane %v5351, 5
    %v5445 = vrot.slane %v5444, 4
    %v5446 = vrot.slane %v4934, 5
    %v5447 = vsel %vm3520, %v5445, %v5446
    %v5448 = vld [vmem:[%s3 + $0x80] sm:$0xf]
    %v5449 = vld [vmem:[%s3 + $0x84] sm:$0xf]
    %v5450 = vld [vmem:[%s3 + $0x88] sm:$0xf]
    %v5451 = vld [vmem:[%s3 + $0x8c] sm:$0xf]
    %v5452 = vunpack.c.l.b16 %v5387
    %v5453 = vunpack.c.l.b16 %v5391
    %v5454 = vunpack.c.l.b16 %v5395
    %v5455 = vunpack.c.l.b16 %v5399
    %v5456 = vunpack.c.l.b16 %v5403
    %v5457 = vunpack.c.l.b16 %v5407
    %v5458 = vunpack.c.l.b16 %v5411
    %v5459 = vunpack.c.l.b16 %v5415
    %v5460 = vunpack.c.l.b16 %v5419
    %v5461 = vunpack.c.l.b16 %v5423
    %v5462 = vunpack.c.l.b16 %v5427
    %v5463 = vunpack.c.l.b16 %v5431
    %v5464 = vunpack.c.l.b16 %v5435
    %v5465 = vunpack.c.l.b16 %v5439
    %v5466 = vunpack.c.l.b16 %v5443
    %v5467 = vunpack.c.l.b16 %v5447
    %v5468 = vpack.c.b16 %v5453, %v5452
    %v5469 = vpack.c.b16 %v5455, %v5454
    %v5470 = vpack.c.b16 %v5457, %v5456
    %v5471 = vpack.c.b16 %v5459, %v5458
    %v5472 = vpack.c.b16 %v5461, %v5460
    %v5473 = vpack.c.b16 %v5463, %v5462
    %v5474 = vpack.c.b16 %v5465, %v5464
    %v5475 = vpack.c.b16 %v5467, %v5466
    %v5480 = vunpack.c.l.b16 %v5448
    %v5481 = vunpack.c.l.b16 %v5449
    %v5482 = vunpack.c.l.b16 %v5450
    %v5483 = vunpack.c.l.b16 %v5451
    %v5484 = vpack.c.b16 %v5481, %v5480
    %v5485 = vpack.c.b16 %v5483, %v5482
    %v5489 = vsel %vm3175, %v5468, 0
    %v5492 = vsel %vm3175, %v5469, 0
    %v5495 = vsel %vm3175, %v5470, 0
    %v5498 = vsel %vm3175, %v5471, 0
    %v5501 = vsel %vm3175, %v5472, 0
    %v5504 = vsel %vm3175, %v5473, 0
    %v5507 = vsel %vm3175, %v5474, 0
    %v5510 = vsel %vm3175, %v5475, 0
    %5512 = vmatprep.subr.bf16.mxu0 0
    %5513 = vmatpush1.bf16.msra.mxu0 %v5484
    %5514 = vmatprep.subr.bf16.mxu0 0
    %5515 = vmatpush1.bf16.msra.mxu0 %v5485
    %5516 = vmatprep.subr.bf16.mxu0 0
    %5517 = vmatpush1.bf16.msra.mxu0 0
    %5518 = vmatprep.subr.bf16.mxu0 0
    %5519 = vmatpush1.bf16.msra.mxu0 0
    %5520 = vmatprep.subr.bf16.mxu0 0
    %5521 = vmatpush1.bf16.msra.mxu0 0
    %5522 = vmatprep.subr.bf16.mxu0 0
    %5523 = vmatpush1.bf16.msra.mxu0 0
    %5524 = vmatprep.subr.bf16.mxu0 0
    %5525 = vmatpush1.bf16.msra.mxu0 0
    %5526 = vmatprep.subr.bf16.mxu0 0
    %5527 = vmatpush1.bf16.msra.mxu0 0
    %5528 = vmatprep.subr.bf16.mxu0 0
    %5529 = vmatpush1.bf16.msra.mxu0 0
    %5530 = vmatprep.subr.bf16.mxu0 0
    %5531 = vmatpush1.bf16.msra.mxu0 0
    %5532 = vmatprep.subr.bf16.mxu0 0
    %5533 = vmatpush1.bf16.msra.mxu0 0
    %5534 = vmatprep.subr.bf16.mxu0 0
    %5535 = vmatpush1.bf16.msra.mxu0 0
    %5536 = vmatprep.subr.bf16.mxu0 0
    %5537 = vmatpush1.bf16.msra.mxu0 0
    %5538 = vmatprep.subr.bf16.mxu0 0
    %5539 = vmatpush1.bf16.msra.mxu0 0
    %5540 = vmatprep.subr.bf16.mxu0 0
    %5541 = vmatpush1.bf16.msra.mxu0 0
    %5542 = vmatprep.subr.bf16.mxu0 0
    %5543 = vmatpush1.bf16.msra.mxu0 0
    %5544 = vmatprep.mubr.bf16.mxu0 0
    %5545 = vmatmul.mubr.bf16.gmra.mrb[0].mxu0 %v5489
    %v5546 = vpop.f32.mrb[0].mxu0
    %v5547 = vadd.f32 0.0, %v5546
    %v5548 = vpop.f32.mrb[0].mxu0
    %v5549 = vpop.f32.mrb[0].mxu0
    %v5550 = vadd.f32 0.0, %v5549
    %v5551 = vpop.f32.mrb[0].mxu0
    %5552 = vmatprep.mubr.bf16.mxu0 0
    %5553 = vmatmul.mubr.bf16.gmra.mrb[0].mxu0 %v5492
    %v5554 = vpop.f32.mrb[0].mxu0
    %v5555 = vadd.f32 0.0, %v5554
    %v5556 = vpop.f32.mrb[0].mxu0
    %v5557 = vpop.f32.mrb[0].mxu0
    %v5558 = vadd.f32 0.0, %v5557
    %v5559 = vpop.f32.mrb[0].mxu0
    %5560 = vmatprep.mubr.bf16.mxu0 0
    %5561 = vmatmul.mubr.bf16.gmra.mrb[0].mxu0 %v5495
    %v5562 = vpop.f32.mrb[0].mxu0
    %v5563 = vadd.f32 0.0, %v5562
    %v5564 = vpop.f32.mrb[0].mxu0
    %v5565 = vpop.f32.mrb[0].mxu0
    %v5566 = vadd.f32 0.0, %v5565
    %v5567 = vpop.f32.mrb[0].mxu0
    %5568 = vmatprep.mubr.bf16.mxu0 0
    %5569 = vmatmul.mubr.bf16.gmra.mrb[0].mxu0 %v5498
    %v5570 = vpop.f32.mrb[0].mxu0
    %v5571 = vadd.f32 0.0, %v5570
    %v5572 = vpop.f32.mrb[0].mxu0
    %v5573 = vpop.f32.mrb[0].mxu0
    %v5574 = vadd.f32 0.0, %v5573
    %v5575 = vpop.f32.mrb[0].mxu0
    %5576 = vmatprep.mubr.bf16.mxu0 0
    %5577 = vmatmul.mubr.bf16.gmra.mrb[0].mxu0 %v5501
    %v5578 = vpop.f32.mrb[0].mxu0
    %v5579 = vadd.f32 0.0, %v5578
    %v5580 = vpop.f32.mrb[0].mxu0
    %v5581 = vpop.f32.mrb[0].mxu0
    %v5582 = vadd.f32 0.0, %v5581
    %v5583 = vpop.f32.mrb[0].mxu0
    %5584 = vmatprep.mubr.bf16.mxu0 0
    %5585 = vmatmul.mubr.bf16.gmra.mrb[0].mxu0 %v5504
    %v5586 = vpop.f32.mrb[0].mxu0
    %v5587 = vadd.f32 0.0, %v5586
    %v5588 = vpop.f32.mrb[0].mxu0
    %v5589 = vpop.f32.mrb[0].mxu0
    %v5590 = vadd.f32 0.0, %v5589
    %v5591 = vpop.f32.mrb[0].mxu0
    %5592 = vmatprep.mubr.bf16.mxu0 0
    %5593 = vmatmul.mubr.bf16.gmra.mrb[0].mxu0 %v5507
    %v5594 = vpop.f32.mrb[0].mxu0
    %v5595 = vadd.f32 0.0, %v5594
    %v5596 = vpop.f32.mrb[0].mxu0
    %v5597 = vpop.f32.mrb[0].mxu0
    %v5598 = vadd.f32 0.0, %v5597
    %v5599 = vpop.f32.mrb[0].mxu0
    %5600 = vmatprep.mubr.bf16.mxu0 0
    %5601 = vmatmul.mubr.bf16.gmra.mrb[0].mxu0 %v5510
    %v5602 = vpop.f32.mrb[0].mxu0
    %v5603 = vadd.f32 0.0, %v5602
    %v5604 = vpop.f32.mrb[0].mxu0
    %v5605 = vpop.f32.mrb[0].mxu0
    %v5606 = vadd.f32 0.0, %v5605
    %v5607 = vpop.f32.mrb[0].mxu0
    %5608 = vdwg.mxu0
    %v5609 = vadd.f32 %v5320, %v5547
    %v5610 = vadd.f32 %v5321, %v5550
    %v5611 = vadd.f32 %v5322, %v5555
    %v5612 = vadd.f32 %v5323, %v5558
    %v5613 = vadd.f32 %v5324, %v5563
    %v5614 = vadd.f32 %v5325, %v5566
    %v5615 = vadd.f32 %v5326, %v5571
    %v5616 = vadd.f32 %v5327, %v5574
    %v5617 = vadd.f32 %v5328, %v5579
    %v5618 = vadd.f32 %v5329, %v5582
    %v5619 = vadd.f32 %v5330, %v5587
    %v5620 = vadd.f32 %v5331, %v5590
    %v5621 = vadd.f32 %v5332, %v5595
    %v5622 = vadd.f32 %v5333, %v5598
    %v5623 = vadd.f32 %v5334, %v5603
    %v5624 = vadd.f32 %v5335, %v5606
    %v5625 = vld [vmem:[%s4] sm:$0x1]
    %v5627 = vlaneseq
    %v5628 = vshrl.u32 %v5627, 7
    %v5629 = vsub.s32 0, %v5628
    %v5630 = vrot.slane %v5625, %v5629
    %v5632 = vadd.f32 %v5609, %v5630
    %v5633 = vadd.f32 %v5610, %v5630
    %v5634 = vadd.f32 %v5611, %v5630
    %v5635 = vadd.f32 %v5612, %v5630
    %v5636 = vadd.f32 %v5613, %v5630
    %v5637 = vadd.f32 %v5614, %v5630
    %v5638 = vadd.f32 %v5615, %v5630
    %v5639 = vadd.f32 %v5616, %v5630
    %v5640 = vadd.f32 %v5617, %v5630
    %v5641 = vadd.f32 %v5618, %v5630
    %v5642 = vadd.f32 %v5619, %v5630
    %v5643 = vadd.f32 %v5620, %v5630
    %v5644 = vadd.f32 %v5621, %v5630
    %v5645 = vadd.f32 %v5622, %v5630
    %v5646 = vadd.f32 %v5623, %v5630
    %v5647 = vadd.f32 %v5624, %v5630
    %v5648 = vld [vmem:[%s5] sm:$0xff]
    %v5649 = vld [vmem:[%s5 + $0x8] sm:$0xff]
    %v5650 = vld [vmem:[%s5 + $0x10] sm:$0xff]
    %v5651 = vld [vmem:[%s5 + $0x18] sm:$0xff]
    %v5652 = vld [vmem:[%s5 + $0x20] sm:$0xff]
    %v5653 = vld [vmem:[%s5 + $0x28] sm:$0xff]
    %v5654 = vld [vmem:[%s5 + $0x30] sm:$0xff]
    %v5655 = vld [vmem:[%s5 + $0x38] sm:$0xff]
    %v5656 = vld [vmem:[%s5 + $0x40] sm:$0xff]
    %v5657 = vld [vmem:[%s5 + $0x48] sm:$0xff]
    %v5658 = vld [vmem:[%s5 + $0x50] sm:$0xff]
    %v5659 = vld [vmem:[%s5 + $0x58] sm:$0xff]
    %v5660 = vld [vmem:[%s5 + $0x60] sm:$0xff]
    %v5661 = vld [vmem:[%s5 + $0x68] sm:$0xff]
    %v5662 = vld [vmem:[%s5 + $0x70] sm:$0xff]
    %v5663 = vld [vmem:[%s5 + $0x78] sm:$0xff]
    %v5664 = vadd.f32 %v5632, %v5648
    %v5665 = vadd.f32 %v5633, %v5649
    %v5666 = vadd.f32 %v5634, %v5650
    %v5667 = vadd.f32 %v5635, %v5651
    %v5668 = vadd.f32 %v5636, %v5652
    %v5669 = vadd.f32 %v5637, %v5653
    %v5670 = vadd.f32 %v5638, %v5654
    %v5671 = vadd.f32 %v5639, %v5655
    %v5672 = vadd.f32 %v5640, %v5656
    %v5673 = vadd.f32 %v5641, %v5657
    %v5674 = vadd.f32 %v5642, %v5658
    %v5675 = vadd.f32 %v5643, %v5659
    %v5676 = vadd.f32 %v5644, %v5660
    %v5677 = vadd.f32 %v5645, %v5661
    %v5678 = vadd.f32 %v5646, %v5662
    %v5679 = vadd.f32 %v5647, %v5663
    %v5680 = vmax.f32 %v5664, 0.0
    %v5681 = vmax.f32 %v5665, 0.0
    %v5682 = vmax.f32 %v5666, 0.0
    %v5683 = vmax.f32 %v5667, 0.0
    %v5684 = vmax.f32 %v5668, 0.0
    %v5685 = vmax.f32 %v5669, 0.0
    %v5686 = vmax.f32 %v5670, 0.0
    %v5687 = vmax.f32 %v5671, 0.0
    %v5688 = vmax.f32 %v5672, 0.0
    %v5689 = vmax.f32 %v5673, 0.0
    %v5690 = vmax.f32 %v5674, 0.0
    %v5691 = vmax.f32 %v5675, 0.0
    %v5692 = vmax.f32 %v5676, 0.0
    %v5693 = vmax.f32 %v5677, 0.0
    %v5694 = vmax.f32 %v5678, 0.0
    %v5695 = vmax.f32 %v5679, 0.0
    %5696 = vst.msk [vmem:[#allocation3] sm:$0xff] %vm3175, %v5680
    %5697 = vst.msk [vmem:[#allocation3 + $0x8] sm:$0xff] %vm3175, %v5681
    %5698 = vst.msk [vmem:[#allocation3 + $0x10] sm:$0xff] %vm3175, %v5682
    %5699 = vst.msk [vmem:[#allocation3 + $0x18] sm:$0xff] %vm3175, %v5683
    %5700 = vst.msk [vmem:[#allocation3 + $0x20] sm:$0xff] %vm3175, %v5684
    %5701 = vst.msk [vmem:[#allocation3 + $0x28] sm:$0xff] %vm3175, %v5685
    %5702 = vst.msk [vmem:[#allocation3 + $0x30] sm:$0xff] %vm3175, %v5686
    %5703 = vst.msk [vmem:[#allocation3 + $0x38] sm:$0xff] %vm3175, %v5687
    %5704 = vst.msk [vmem:[#allocation3 + $0x40] sm:$0xff] %vm3175, %v5688
    %5705 = vst.msk [vmem:[#allocation3 + $0x48] sm:$0xff] %vm3175, %v5689
    %5706 = vst.msk [vmem:[#allocation3 + $0x50] sm:$0xff] %vm3175, %v5690
    %5707 = vst.msk [vmem:[#allocation3 + $0x58] sm:$0xff] %vm3175, %v5691
    %5708 = vst.msk [vmem:[#allocation3 + $0x60] sm:$0xff] %vm3175, %v5692
    %5709 = vst.msk [vmem:[#allocation3 + $0x68] sm:$0xff] %vm3175, %v5693
    %5710 = vst.msk [vmem:[#allocation3 + $0x70] sm:$0xff] %vm3175, %v5694
    %5711 = vst.msk [vmem:[#allocation3 + $0x78] sm:$0xff] %vm3175, %v5695
    // Predicated region
    $region26: #{basic_block_forward.1} parent=1 // pred_check
      _
    $region27: #{basic_block_forward.1} parent=1 // pred_check_branch
      %5713 = sbr.rel (0) target = $region29
    $region28: #{basic_block_forward.1} parent=1 // pred_region
      %s5715 = ssub.s32 2048, 2048
      %5716 = vsyncadd [#allocation4], %s5715
      %s5717 = sshll.u32 [#allocation3], 4
      %s5718 = int_to_ptr.vmem [resolvable:$true] %s5717
      %5723 = dma.vmem_to_hbm [thread:$0]  %s5718, 2048, %s6, [#allocation4], 128, 128, 8
    $region29: #{basic_block_forward.1} parent=1 // pred_fallthru
      _
    // Predicated region
    $region30: #{basic_block_forward.1} parent=1 // pred_check
      _
    $region31: #{basic_block_forward.1} parent=1 // pred_check_branch
      %5725 = sbr.rel (0) target = $region33
    $region32: #{basic_block_forward.1} parent=1 // pred_region
      %5726 = dma.done [#allocation4], 2048
    $region33: #{basic_block_forward.1} parent=1 // pred_fallthru
      _
    %5727 = vsyncpa [#allocation4], 1

</llo_original>
